<compile_context>
chip_gen: v6e
topology: v6e:2x2x1
jax: 0.10.0
libtpu: 0.0.40
codegen_flags: <defaults>
</compile_context>

<pallas_src>
import functools

import jax
import jax.numpy as jnp
from jax.experimental import pallas as pl
from jax.experimental.pallas import tpu as pltpu

EPS = 1e-5
_C1P = 128   # conv1 output channels zero-padded 64 -> 128 (lane-dense)


def _round_up(v, m):
    return (v + m - 1) // m * m


def _vmem_capacity_bytes():
    try:
        info = pltpu.get_tpu_info()
        cap = getattr(info, "vmem_capacity_bytes", None)
        if cap:
            return int(cap)
    except Exception:
        pass
    return 64 * 1024 * 1024          # conservative (v7x-sized) fallback


def _stage1_tiling(B, np_pad, vmem_cap):
    """Per-generation batch tile: bigger tiles on 128 MiB chips (v5e/v6e), smaller
    on 64 MiB v7x.  bt is a multiple of 8 (unmasked vst on the pooled output) and
    divides the padded batch; on v7x prefer >= 2 grid steps so both cores work."""
    small_vmem = vmem_cap <= (80 << 20)            # v7x-class chip
    cap_rows = 2048 if small_vmem else 4096        # rows of the (rows,1024) conv3 matmul
    bp = _round_up(max(B, 1), 8)
    bt = max(8, min((cap_rows // max(np_pad, 1)) // 8 * 8, bp))
    while bp % bt:
        bt -= 8
    if small_vmem and bp // bt < 2 and bt > 8:
        bt = max(8, (bt // 2) // 8 * 8)
        while bp % bt:
            bt -= 8
    return bp, bt


def _stage1_vmem_limit(rows, masked, vmem_cap):
    big = rows * 1024 * 4                 # one (rows, 1024) f32 buffer (conv3)
    mid = rows * _C1P * 4                 # one (rows, 128) f32 buffer
    est = int(1.25 * ((3 if masked else 2) * big + 4 * mid)) + (8 << 20)
    return int(min(int(vmem_cap * 0.85), max(est, 32 << 20)))


def _conv_pool_kernel(x_ref, w1_ref, b1_ref, w2_ref, b2_ref, w3_ref, b3_ref,
                      pooled_ref, *, n_valid):
    """conv1/conv2 + IN + ReLU, then conv3 with IN+ReLU folded through max-pool.
    x_ref: (bt, Np, K) channels-last tile; pooled_ref: (bt, 1024)."""
    bt, np_pad, _ = x_ref.shape
    masked = (n_valid != np_pad)
    inv_n = 1.0 / float(n_valid)
    if masked:
        pmask = jax.lax.broadcasted_iota(jnp.int32, (1, np_pad, 1), 1) < n_valid

    def conv_in_relu(h, w, b):
        cin = h.shape[-1]
        # pointwise Conv1d == one 2-D matmul over the collapsed (bt*Np) rows.
        y = jnp.dot(h.reshape(bt * np_pad, cin), w,
                    preferred_element_type=jnp.float32) + b
        y = y.reshape(bt, np_pad, -1)
        # InstanceNorm1d over the (valid) points axis; two-pass stats in f32.
        if masked:
            mu = jnp.sum(jnp.where(pmask, y, 0.0), axis=1,
                         keepdims=True) * inv_n
            d = y - mu
            var = jnp.sum(jnp.where(pmask, d * d, 0.0), axis=1,
                          keepdims=True) * inv_n
        else:
            mu = jnp.mean(y, axis=1, keepdims=True)
            d = y - mu
            var = jnp.mean(d * d, axis=1, keepdims=True)
        return jnp.maximum(d * jax.lax.rsqrt(var + EPS), 0.0)

    h = conv_in_relu(x_ref[...], w1_ref[...], b1_ref[...])    # (bt, Np, 128)
    h = conv_in_relu(h, w2_ref[...], b2_ref[...])             # (bt, Np, 128)

    # conv3: raw matmul only.  Per (batch, channel), InstanceNorm is a monotone
    # increasing affine map and ReLU is monotone, so max-pool commutes with
    # IN+ReLU: normalize just the pooled max.  The normalized (bt, Np, 1024)
    # tensor is never materialized.
    y3 = jnp.dot(h.reshape(bt * np_pad, h.shape[-1]), w3_ref[...],
                 preferred_element_type=jnp.float32) + b3_ref[...]
    y3 = y3.reshape(bt, np_pad, -1)
    if masked:
        y3v = jnp.where(pmask, y3, 0.0)
        mean = jnp.sum(y3v, axis=1) * inv_n
        mean_sq = jnp.sum(y3v * y3v, axis=1) * inv_n
        mx = jnp.max(jnp.where(pmask, y3, -jnp.inf), axis=1)
    else:
        mean = jnp.mean(y3, axis=1)
        mean_sq = jnp.mean(y3 * y3, axis=1)
        mx = jnp.max(y3, axis=1)
    # One-pass variance (clamped >= 0) keeps peak VMEM ~2x the raw conv3 output.
    var = jnp.maximum(mean_sq - mean * mean, 0.0)
    pooled_ref[...] = jnp.maximum((mx - mean) * jax.lax.rsqrt(var + EPS), 0.0)


def _fc_head_kernel(g_ref, wf1_ref, bf1_ref, wf2_ref, bf2_ref, wf3_ref,
                    bf3_iden_ref, out_ref):
    def fc_in_relu(h, w, b):
        # Unbatched InstanceNorm1d on a 2-D tensor: normalize each row over its
        # features (PyTorch treats 2-D input as (C, L)).  Two-pass stats in f32.
        y = jnp.dot(h, w, preferred_element_type=jnp.float32) + b
        mu = jnp.mean(y, axis=1, keepdims=True)
        d = y - mu
        var = jnp.mean(d * d, axis=1, keepdims=True)
        return jnp.maximum(d * jax.lax.rsqrt(var + EPS), 0.0)

    f = fc_in_relu(g_ref[...], wf1_ref[...], bf1_ref[...])    # (bt2, 512)
    f = fc_in_relu(f, wf2_ref[...], bf2_ref[...])             # (bt2, 256)
    out_ref[...] = (jnp.dot(f, wf3_ref[...], preferred_element_type=jnp.float32)
                    + bf3_iden_ref[...])                      # (bt2, k*k)


def stnkd_forward(x_bkn, params, k):
    """x_bkn: (B, k, N) float32 (PyTorch NCW layout).  Returns (B, k, k)."""
    B, K, N = x_bkn.shape
    assert K == k
    (w1, b1, w2, b2, w3, b3, wf1, bf1, wf2, bf2, wf3, bf3) = params

    # Zero-pad conv1 to 128 output channels: lane-dense h1 and a full 128-wide
    # conv2 contraction; padded channels stay exactly zero through IN+ReLU.
    w1p = jnp.pad(w1, ((0, 0), (0, _C1P - w1.shape[1])))
    b1p = jnp.pad(b1, ((0, 0), (0, _C1P - b1.shape[1])))
    w2p = jnp.pad(w2, ((0, _C1P - w2.shape[0]), (0, 0)))
    # Fold the identity into the fc3 bias (constant folding outside the kernel).
    bf3_iden = bf3 + jnp.eye(k, dtype=jnp.float32).reshape(1, k * k)

    vmem_cap = _vmem_capacity_bytes()
    Np = _round_up(N, 8)                       # sublane-aligned points axis
    Bp, bt = _stage1_tiling(B, Np, vmem_cap)   # per-generation batch tile

    # Channels-last layout + pad points/batch with zeros (padded points are
    # masked out of every reduction; padded batch rows are sliced off at the end).
    x = jnp.transpose(x_bkn, (0, 2, 1))                       # (B, N, K)
    x = jnp.pad(x, ((0, Bp - B), (0, Np - N), (0, 0)))        # (Bp, Np, K)

    conv_weights = (w1p, b1p, w2p, b2, w3, b3)

    def const_spec(shape):
        nd = len(shape)
        return pl.BlockSpec(shape, lambda i, _nd=nd: (0,) * _nd)

    # Stage 1: conv stack + (folded) max-pool over points; bt batch elements per
    # grid step, lane-dense (bt, 1024) pooled output blocks (bt is a multiple of 8).
    pooled = pl.pallas_call(
        functools.partial(_conv_pool_kernel, n_valid=N),
        out_shape=jax.ShapeDtypeStruct((Bp, 1024), jnp.float32),
        grid=(Bp // bt,),
        in_specs=[pl.BlockSpec((bt, Np, K), lambda i: (i, 0, 0))]
                 + [const_spec(w.shape) for w in conv_weights],
        out_specs=pl.BlockSpec((bt, 1024), lambda i: (i, 0)),
        compiler_params=pltpu.CompilerParams(
            dimension_semantics=("parallel",),
            vmem_limit_bytes=_stage1_vmem_limit(bt * Np, N != Np, vmem_cap)),
    )(x, *conv_weights)

    # Stage 2: FC head, gridded over batch tiles with resident weights and an
    # explicit VMEM limit (v5e default scoped limit is only 16 MiB).
    bt2 = min(Bp, 256)
    while Bp % bt2:
        bt2 -= 8
    fc_weights = (wf1, bf1, wf2, bf2, wf3, bf3_iden)
    out = pl.pallas_call(
        _fc_head_kernel,
        out_shape=jax.ShapeDtypeStruct((Bp, k * k), jnp.float32),
        grid=(Bp // bt2,),
        in_specs=[pl.BlockSpec((bt2, 1024), lambda i: (i, 0))]
                 + [const_spec(w.shape) for w in fc_weights],
        out_specs=pl.BlockSpec((bt2, k * k), lambda i: (i, 0)),
        compiler_params=pltpu.CompilerParams(
            dimension_semantics=("parallel",),
            vmem_limit_bytes=32 * 1024 * 1024),
    )(pooled, *fc_weights)

    return out[:B].reshape(B, k, k)


def init_params(key, k):
    """Deterministic synthetic parameters (shapes from STNkd.__init__)."""
    dims = [(k, 64), (64, 128), (128, 1024),        # conv1, conv2, conv3 (1x1)
            (1024, 512), (512, 256), (256, k * k)]  # fc1, fc2, fc3
    params = []
    for cin, cout in dims:
        key, kw, kb = jax.random.split(key, 3)
        scale = 1.0 / jnp.sqrt(cin).astype(jnp.float32)
        w = jax.random.uniform(kw, (cin, cout), jnp.float32, -scale, scale)
        b = jax.random.uniform(kb, (1, cout), jnp.float32, -scale, scale)
        params += [w, b]
    return tuple(params)


def stnkd_reference(x_bkn, params, k):
    """Pure-JAX reference mirroring the PyTorch forward."""
    (w1, b1, w2, b2, w3, b3, wf1, bf1, wf2, bf2, wf3, bf3) = params
    x = jnp.transpose(x_bkn, (0, 2, 1))  # (B, N, K)

    def conv_in_relu(h, w, b):
        y = h @ w + b                                  # (B, N, C)
        mu = jnp.mean(y, axis=1, keepdims=True)
        var = jnp.mean((y - mu) ** 2, axis=1, keepdims=True)
        return jnp.maximum((y - mu) * jax.lax.rsqrt(var + EPS), 0.0)

    h = conv_in_relu(x, w1, b1)
    h = conv_in_relu(h, w2, b2)
    h = conv_in_relu(h, w3, b3)
    g = jnp.max(h, axis=1)                             # (B, 1024)

    def fc_in_relu(h, w, b):
        y = h @ w + b
        mu = jnp.mean(y, axis=1, keepdims=True)
        var = jnp.mean((y - mu) ** 2, axis=1, keepdims=True)
        return jnp.maximum((y - mu) * jax.lax.rsqrt(var + EPS), 0.0)

    f = fc_in_relu(g, wf1, bf1)
    f = fc_in_relu(f, wf2, bf2)
    y = f @ wf3 + bf3 + jnp.eye(k, dtype=jnp.float32).reshape(1, k * k)
    return y.reshape(-1, k, k)


if __name__ == "__main__":
    B, K, N = 2, 16, 32   # small shapes: batch=2, k=16, points=32
    key = jax.random.PRNGKey(0)
    key, kx, kp = jax.random.split(key, 3)
    x = jax.random.normal(kx, (B, K, N), dtype=jnp.float32)   # PyTorch NCW input
    params = init_params(kp, K)

    out = jax.block_until_ready(stnkd_forward(x, params, K))
    assert out.shape == (B, K, K)

    ref = jax.block_until_ready(stnkd_reference(x, params, K))
    assert jnp.allclose(out, ref, rtol=1e-3, atol=1e-3), "mismatch vs reference"

    print("KERNEL_OK")
</pallas_src>

<mosaic_0001>
module attributes {stable_mosaic.version = 11 : i64} {
  func.func @_conv_pool_kernel(%arg0: i32, %arg1: memref<8x32x16xf32, #tpu.memory_space<vmem>>, %arg2: memref<16x128xf32, #tpu.memory_space<vmem>>, %arg3: memref<1x128xf32, #tpu.memory_space<vmem>>, %arg4: memref<128x128xf32, #tpu.memory_space<vmem>>, %arg5: memref<1x128xf32, #tpu.memory_space<vmem>>, %arg6: memref<128x1024xf32, #tpu.memory_space<vmem>>, %arg7: memref<1x1024xf32, #tpu.memory_space<vmem>>, %arg8: memref<8x1024xf32, #tpu.memory_space<vmem>>) attributes {dimension_semantics = [#tpu.dimension_semantics<parallel>], iteration_bounds = array<i64: 1>, scalar_prefetch = 0 : i64, scratch_operands = 0 : i64, tpu.core_type = #tpu.core_type<tc>, window_params = [{transform_indices = @transform_0, window_bounds = array<i64: 8, 32, 16>}, {pipeline_mode = #tpu.pipeline_mode<synchronous>, transform_indices = @transform_1, window_bounds = array<i64: 16, 128>}, {pipeline_mode = #tpu.pipeline_mode<synchronous>, transform_indices = @transform_2, window_bounds = array<i64: 1, 128>}, {pipeline_mode = #tpu.pipeline_mode<synchronous>, transform_indices = @transform_3, window_bounds = array<i64: 128, 128>}, {pipeline_mode = #tpu.pipeline_mode<synchronous>, transform_indices = @transform_4, window_bounds = array<i64: 1, 128>}, {pipeline_mode = #tpu.pipeline_mode<synchronous>, transform_indices = @transform_5, window_bounds = array<i64: 128, 1024>}, {pipeline_mode = #tpu.pipeline_mode<synchronous>, transform_indices = @transform_6, window_bounds = array<i64: 1, 1024>}, {transform_indices = @transform_7, window_bounds = array<i64: 8, 1024>}]} {
    %c0 = arith.constant 0 : index
    %c0_0 = arith.constant 0 : index
    %c0_1 = arith.constant 0 : index
    %0 = vector.load %arg1[%c0, %c0_0, %c0_1] : memref<8x32x16xf32, #tpu.memory_space<vmem>>, vector<8x32x16xf32>
    %c0_2 = arith.constant 0 : index
    %c0_3 = arith.constant 0 : index
    %1 = vector.load %arg2[%c0_2, %c0_3] : memref<16x128xf32, #tpu.memory_space<vmem>>, vector<16x128xf32>
    %c0_4 = arith.constant 0 : index
    %c0_5 = arith.constant 0 : index
    %2 = vector.load %arg3[%c0_4, %c0_5] : memref<1x128xf32, #tpu.memory_space<vmem>>, vector<1x128xf32>
    %3 = vector.shape_cast %0 : vector<8x32x16xf32> to vector<256x16xf32>
    %cst = arith.constant dense<0.000000e+00> : vector<256x128xf32>
    %4 = tpu.matmul %3, %1, %cst {dimension_numbers = #tpu.dot_dimension_numbers<[1], [0], [0], [1], [0, 0, 1, 1], [], []>} : vector<256x16xf32>, vector<16x128xf32>, vector<256x128xf32> -> vector<256x128xf32>
    %5 = vector.broadcast %2 : vector<1x128xf32> to vector<256x128xf32>
    %6 = arith.addf %4, %5 : vector<256x128xf32>
    %7 = vector.shape_cast %6 : vector<256x128xf32> to vector<8x32x128xf32>
    %cst_6 = arith.constant dense<0.000000e+00> : vector<8x128xf32>
    %8 = vector.multi_reduction <add>, %7, %cst_6 [1] : vector<8x32x128xf32> to vector<8x128xf32>
    %9 = vector.shape_cast %8 : vector<8x128xf32> to vector<8x1x128xf32>
    %cst_7 = arith.constant 3.200000e+01 : f32
    %10 = vector.broadcast %cst_7 : f32 to vector<8x1x128xf32>
    %11 = arith.divf %9, %10 : vector<8x1x128xf32>
    %12 = vector.broadcast %11 : vector<8x1x128xf32> to vector<8x32x128xf32>
    %13 = arith.subf %7, %12 : vector<8x32x128xf32>
    %14 = arith.mulf %13, %13 : vector<8x32x128xf32>
    %cst_8 = arith.constant dense<0.000000e+00> : vector<8x128xf32>
    %15 = vector.multi_reduction <add>, %14, %cst_8 [1] : vector<8x32x128xf32> to vector<8x128xf32>
    %16 = vector.shape_cast %15 : vector<8x128xf32> to vector<8x1x128xf32>
    %cst_9 = arith.constant 3.200000e+01 : f32
    %17 = vector.broadcast %cst_9 : f32 to vector<8x1x128xf32>
    %18 = arith.divf %16, %17 : vector<8x1x128xf32>
    %cst_10 = arith.constant 9.99999974E-6 : f32
    %19 = vector.broadcast %cst_10 : f32 to vector<8x1x128xf32>
    %20 = arith.addf %18, %19 : vector<8x1x128xf32>
    %21 = math.rsqrt %20 : vector<8x1x128xf32>
    %22 = vector.broadcast %21 : vector<8x1x128xf32> to vector<8x32x128xf32>
    %23 = arith.mulf %13, %22 : vector<8x32x128xf32>
    %cst_11 = arith.constant 0.000000e+00 : f32
    %24 = vector.broadcast %cst_11 : f32 to vector<8x32x128xf32>
    %25 = arith.maximumf %23, %24 : vector<8x32x128xf32>
    %c0_12 = arith.constant 0 : index
    %c0_13 = arith.constant 0 : index
    %26 = vector.load %arg4[%c0_12, %c0_13] : memref<128x128xf32, #tpu.memory_space<vmem>>, vector<128x128xf32>
    %c0_14 = arith.constant 0 : index
    %c0_15 = arith.constant 0 : index
    %27 = vector.load %arg5[%c0_14, %c0_15] : memref<1x128xf32, #tpu.memory_space<vmem>>, vector<1x128xf32>
    %28 = vector.shape_cast %25 : vector<8x32x128xf32> to vector<256x128xf32>
    %cst_16 = arith.constant dense<0.000000e+00> : vector<256x128xf32>
    %29 = tpu.matmul %28, %26, %cst_16 {dimension_numbers = #tpu.dot_dimension_numbers<[1], [0], [0], [1], [0, 0, 1, 1], [], []>} : vector<256x128xf32>, vector<128x128xf32>, vector<256x128xf32> -> vector<256x128xf32>
    %30 = vector.broadcast %27 : vector<1x128xf32> to vector<256x128xf32>
    %31 = arith.addf %29, %30 : vector<256x128xf32>
    %32 = vector.shape_cast %31 : vector<256x128xf32> to vector<8x32x128xf32>
    %cst_17 = arith.constant dense<0.000000e+00> : vector<8x128xf32>
    %33 = vector.multi_reduction <add>, %32, %cst_17 [1] : vector<8x32x128xf32> to vector<8x128xf32>
    %34 = vector.shape_cast %33 : vector<8x128xf32> to vector<8x1x128xf32>
    %cst_18 = arith.constant 3.200000e+01 : f32
    %35 = vector.broadcast %cst_18 : f32 to vector<8x1x128xf32>
    %36 = arith.divf %34, %35 : vector<8x1x128xf32>
    %37 = vector.broadcast %36 : vector<8x1x128xf32> to vector<8x32x128xf32>
    %38 = arith.subf %32, %37 : vector<8x32x128xf32>
    %39 = arith.mulf %38, %38 : vector<8x32x128xf32>
    %cst_19 = arith.constant dense<0.000000e+00> : vector<8x128xf32>
    %40 = vector.multi_reduction <add>, %39, %cst_19 [1] : vector<8x32x128xf32> to vector<8x128xf32>
    %41 = vector.shape_cast %40 : vector<8x128xf32> to vector<8x1x128xf32>
    %cst_20 = arith.constant 3.200000e+01 : f32
    %42 = vector.broadcast %cst_20 : f32 to vector<8x1x128xf32>
    %43 = arith.divf %41, %42 : vector<8x1x128xf32>
    %cst_21 = arith.constant 9.99999974E-6 : f32
    %44 = vector.broadcast %cst_21 : f32 to vector<8x1x128xf32>
    %45 = arith.addf %43, %44 : vector<8x1x128xf32>
    %46 = math.rsqrt %45 : vector<8x1x128xf32>
    %47 = vector.broadcast %46 : vector<8x1x128xf32> to vector<8x32x128xf32>
    %48 = arith.mulf %38, %47 : vector<8x32x128xf32>
    %cst_22 = arith.constant 0.000000e+00 : f32
    %49 = vector.broadcast %cst_22 : f32 to vector<8x32x128xf32>
    %50 = arith.maximumf %48, %49 : vector<8x32x128xf32>
    %51 = vector.shape_cast %50 : vector<8x32x128xf32> to vector<256x128xf32>
    %c0_23 = arith.constant 0 : index
    %c0_24 = arith.constant 0 : index
    %52 = vector.load %arg6[%c0_23, %c0_24] : memref<128x1024xf32, #tpu.memory_space<vmem>>, vector<128x1024xf32>
    %cst_25 = arith.constant dense<0.000000e+00> : vector<256x1024xf32>
    %53 = tpu.matmul %51, %52, %cst_25 {dimension_numbers = #tpu.dot_dimension_numbers<[1], [0], [0], [1], [0, 0, 1, 1], [], []>} : vector<256x128xf32>, vector<128x1024xf32>, vector<256x1024xf32> -> vector<256x1024xf32>
    %c0_26 = arith.constant 0 : index
    %c0_27 = arith.constant 0 : index
    %54 = vector.load %arg7[%c0_26, %c0_27] : memref<1x1024xf32, #tpu.memory_space<vmem>>, vector<1x1024xf32>
    %55 = vector.broadcast %54 : vector<1x1024xf32> to vector<256x1024xf32>
    %56 = arith.addf %53, %55 : vector<256x1024xf32>
    %57 = vector.shape_cast %56 : vector<256x1024xf32> to vector<8x32x1024xf32>
    %cst_28 = arith.constant dense<0.000000e+00> : vector<8x1024xf32>
    %58 = vector.multi_reduction <add>, %57, %cst_28 [1] : vector<8x32x1024xf32> to vector<8x1024xf32>
    %cst_29 = arith.constant 3.200000e+01 : f32
    %59 = vector.broadcast %cst_29 : f32 to vector<8x1024xf32>
    %60 = arith.divf %58, %59 : vector<8x1024xf32>
    %61 = arith.mulf %57, %57 : vector<8x32x1024xf32>
    %cst_30 = arith.constant dense<0.000000e+00> : vector<8x1024xf32>
    %62 = vector.multi_reduction <add>, %61, %cst_30 [1] : vector<8x32x1024xf32> to vector<8x1024xf32>
    %cst_31 = arith.constant 3.200000e+01 : f32
    %63 = vector.broadcast %cst_31 : f32 to vector<8x1024xf32>
    %64 = arith.divf %62, %63 : vector<8x1024xf32>
    %cst_32 = arith.constant dense<0xFF800000> : vector<8x1024xf32>
    %65 = vector.multi_reduction <maximumf>, %57, %cst_32 [1] : vector<8x32x1024xf32> to vector<8x1024xf32>
    %66 = arith.mulf %60, %60 : vector<8x1024xf32>
    %67 = arith.subf %64, %66 : vector<8x1024xf32>
    %cst_33 = arith.constant 0.000000e+00 : f32
    %68 = vector.broadcast %cst_33 : f32 to vector<8x1024xf32>
    %69 = arith.maximumf %67, %68 : vector<8x1024xf32>
    %70 = arith.subf %65, %60 : vector<8x1024xf32>
    %cst_34 = arith.constant 9.99999974E-6 : f32
    %71 = vector.broadcast %cst_34 : f32 to vector<8x1024xf32>
    %72 = arith.addf %69, %71 : vector<8x1024xf32>
    %73 = math.rsqrt %72 : vector<8x1024xf32>
    %74 = arith.mulf %70, %73 : vector<8x1024xf32>
    %cst_35 = arith.constant 0.000000e+00 : f32
    %75 = vector.broadcast %cst_35 : f32 to vector<8x1024xf32>
    %76 = arith.maximumf %74, %75 : vector<8x1024xf32>
    %c0_36 = arith.constant 0 : index
    %c0_37 = arith.constant 0 : index
    %77 = vector.load %arg8[%c0_36, %c0_37] : memref<8x1024xf32, #tpu.memory_space<vmem>>, vector<8x1024xf32>
    tpu.vector_store %arg8[%c0_36, %c0_37], %76 {strides = array<i32>} : memref<8x1024xf32, #tpu.memory_space<vmem>>, vector<8x1024xf32>,
    return
  }
  func.func @transform_0(%arg0: i32) -> (i32, i32, i32) {
    %c0_i32 = arith.constant 0 : i32
    %c0_i32_0 = arith.constant 0 : i32
    %c0_i32_1 = arith.constant 0 : i32
    return %arg0, %c0_i32, %c0_i32_0 : i32, i32, i32
  }
  func.func @transform_1(%arg0: i32) -> (i32, i32) {
    %c0_i32 = arith.constant 0 : i32
    %c0_i32_0 = arith.constant 0 : i32
    %c0_i32_1 = arith.constant 0 : i32
    return %c0_i32, %c0_i32_0 : i32, i32
  }
  func.func @transform_2(%arg0: i32) -> (i32, i32) {
    %c0_i32 = arith.constant 0 : i32
    %c0_i32_0 = arith.constant 0 : i32
    %c0_i32_1 = arith.constant 0 : i32
    return %c0_i32, %c0_i32_0 : i32, i32
  }
  func.func @transform_3(%arg0: i32) -> (i32, i32) {
    %c0_i32 = arith.constant 0 : i32
    %c0_i32_0 = arith.constant 0 : i32
    %c0_i32_1 = arith.constant 0 : i32
    return %c0_i32, %c0_i32_0 : i32, i32
  }
  func.func @transform_4(%arg0: i32) -> (i32, i32) {
    %c0_i32 = arith.constant 0 : i32
    %c0_i32_0 = arith.constant 0 : i32
    %c0_i32_1 = arith.constant 0 : i32
    return %c0_i32, %c0_i32_0 : i32, i32
  }
  func.func @transform_5(%arg0: i32) -> (i32, i32) {
    %c0_i32 = arith.constant 0 : i32
    %c0_i32_0 = arith.constant 0 : i32
    %c0_i32_1 = arith.constant 0 : i32
    return %c0_i32, %c0_i32_0 : i32, i32
  }
  func.func @transform_6(%arg0: i32) -> (i32, i32) {
    %c0_i32 = arith.constant 0 : i32
    %c0_i32_0 = arith.constant 0 : i32
    %c0_i32_1 = arith.constant 0 : i32
    return %c0_i32, %c0_i32_0 : i32, i32
  }
  func.func @transform_7(%arg0: i32) -> (i32, i32) {
    %c0_i32 = arith.constant 0 : i32
    %c0_i32_0 = arith.constant 0 : i32
    return %arg0, %c0_i32 : i32, i32
  }
}

</mosaic_0001>

<llo_original>
// kernel: tpu_custom_call.1
$region0: #{tpu_custom_call.1}
  #allocation0 [shape = 'u32[]', space=smem, size = 0x4, offset = 0x4, fixed_abs, tag = 'smem constant byte address 0x4 - core index']
  #allocation1 [shape = 'u32[144,128]{1,0:T(1,128)}', space=vmem, size = 0x12000, scoped, tag = 'internal scratch']
  %s0 = inlined_call_operand.vmem [shape: f32[8,32,16], index: 0, kind: input, shape index: {}]
  %s1 = inlined_call_operand.vmem [shape: f32[16,128], index: 1, kind: input, shape index: {}]
  %s2 = inlined_call_operand.vmem [shape: f32[1,128], index: 2, kind: input, shape index: {}]
  %s3 = inlined_call_operand.vmem [shape: f32[128,128], index: 3, kind: input, shape index: {}]
  %s4 = inlined_call_operand.vmem [shape: f32[1,128], index: 4, kind: input, shape index: {}]
  %s5 = inlined_call_operand.hbm [shape: f32[128,1024], index: 5, kind: input, shape index: {}]
  %s6 = inlined_call_operand.vmem [shape: f32[1,1024], index: 6, kind: input, shape index: {}]
  %s7 = inlined_call_operand.hbm [shape: f32[8,1024], index: 7, kind: output, shape index: {}]
  %s8 = sld [smem:[#allocation0]]
  $region42: #{tpu_custom_call.1} parent=0
    _
  %s10 = ssub.s32 1, %s8
  %s11 = scalar_select 0, %s10, %s8
  $region1: #{tpu_custom_call.1} parent=0
    #allocation2 [shape = 'u8[524288]{0}', space=vmem, size = 0x80000, scoped, tag = 'input window, operand 5, single buffered']
    #allocation3 [shape = 's32[1]{0}', space=sflag, size = 0x4, scoped, tag = 'scoped memory for tpu_custom_call.1']
    #allocation4 [shape = 's32[1]{0}', space=sflag, size = 0x4, scoped, tag = 'scoped memory for tpu_custom_call.1']
    #allocation5 [shape = 'u8[32768]{0}', space=vmem, size = 0x8000, scoped, tag = 'output window, operand 0, single buffered']
    %12 = vsyncpa [#allocation3], 0
    %13 = vsyncpa [#allocation4], 0
    // Predicated region
    $region2: #{tpu_custom_call.1} parent=1 // pred_check
      _
    $region3: #{tpu_custom_call.1} parent=1 // pred_check_branch
      %15 = sbr.rel (0) target = $region5
    $region4: #{tpu_custom_call.1} parent=1 // pred_region
      _
    $region5: #{tpu_custom_call.1} parent=1 // pred_fallthru
      _
    // Predicated region
    $region6: #{tpu_custom_call.1} parent=1 // pred_check
      _
    $region7: #{tpu_custom_call.1} parent=1 // pred_check_branch
      %17 = sbr.rel (0) target = $region9
    $region8: #{tpu_custom_call.1} parent=1 // pred_region
      _
    $region9: #{tpu_custom_call.1} parent=1 // pred_fallthru
      _
    // Predicated region
    $region10: #{tpu_custom_call.1} parent=1 // pred_check
      _
    $region11: #{tpu_custom_call.1} parent=1 // pred_check_branch
      %19 = sbr.rel (0) target = $region13
    $region12: #{tpu_custom_call.1} parent=1 // pred_region
      _
    $region13: #{tpu_custom_call.1} parent=1 // pred_fallthru
      _
    // Predicated region
    $region14: #{tpu_custom_call.1} parent=1 // pred_check
      _
    $region15: #{tpu_custom_call.1} parent=1 // pred_check_branch
      %21 = sbr.rel (0) target = $region17
    $region16: #{tpu_custom_call.1} parent=1 // pred_region
      _
    $region17: #{tpu_custom_call.1} parent=1 // pred_fallthru
      _
    // Predicated region
    $region18: #{tpu_custom_call.1} parent=1 // pred_check
      _
    $region19: #{tpu_custom_call.1} parent=1 // pred_check_branch
      %23 = sbr.rel (0) target = $region21
    $region20: #{tpu_custom_call.1} parent=1 // pred_region
      _
    $region21: #{tpu_custom_call.1} parent=1 // pred_fallthru
      _
    // Predicated region
    $region22: #{tpu_custom_call.1} parent=1 // pred_check
      _
    $region23: #{tpu_custom_call.1} parent=1 // pred_check_branch
      %25 = sbr.rel (0) target = $region25
    $region24: #{tpu_custom_call.1} parent=1 // pred_region
      %s27 = ssub.s32 16384, 16384
      %28 = vsyncadd [#allocation3], %s27
      %s29 = sshll.u32 [#allocation2], 4
      %s30 = int_to_ptr.vmem [resolvable:$true] %s29
      %35 = dma.hbm_to_vmem [thread:$0]  %s5, 16384, %s30, [#allocation3], 1024, 1024, 64
    $region25: #{tpu_custom_call.1} parent=1 // pred_fallthru
      _
    // Predicated region
    $region26: #{tpu_custom_call.1} parent=1 // pred_check
      _
    $region27: #{tpu_custom_call.1} parent=1 // pred_check_branch
      %37 = sbr.rel (0) target = $region29
    $region28: #{tpu_custom_call.1} parent=1 // pred_region
      _
    $region29: #{tpu_custom_call.1} parent=1 // pred_fallthru
      _
    // Predicated region
    $region30: #{tpu_custom_call.1} parent=1 // pred_check
      _
    $region31: #{tpu_custom_call.1} parent=1 // pred_check_branch
      %39 = sbr.rel (0) target = $region33
    $region32: #{tpu_custom_call.1} parent=1 // pred_region
      %40 = dma.done [#allocation3], 16384
    $region33: #{tpu_custom_call.1} parent=1 // pred_fallthru
      _
    %v41 = vld [vmem:[%s0] sm:$0xff]
    %v42 = vld [vmem:[%s0 + $0x8] sm:$0xff]
    %v43 = vld [vmem:[%s0 + $0x10] sm:$0xff]
    %v44 = vld [vmem:[%s0 + $0x18] sm:$0xff]
    %v45 = vld [vmem:[%s0 + $0x20] sm:$0xff]
    %v46 = vld [vmem:[%s0 + $0x28] sm:$0xff]
    %v47 = vld [vmem:[%s0 + $0x30] sm:$0xff]
    %v48 = vld [vmem:[%s0 + $0x38] sm:$0xff]
    %v49 = vld [vmem:[%s0 + $0x40] sm:$0xff]
    %v50 = vld [vmem:[%s0 + $0x48] sm:$0xff]
    %v51 = vld [vmem:[%s0 + $0x50] sm:$0xff]
    %v52 = vld [vmem:[%s0 + $0x58] sm:$0xff]
    %v53 = vld [vmem:[%s0 + $0x60] sm:$0xff]
    %v54 = vld [vmem:[%s0 + $0x68] sm:$0xff]
    %v55 = vld [vmem:[%s0 + $0x70] sm:$0xff]
    %v56 = vld [vmem:[%s0 + $0x78] sm:$0xff]
    %v57 = vld [vmem:[%s0 + $0x80] sm:$0xff]
    %v58 = vld [vmem:[%s0 + $0x88] sm:$0xff]
    %v59 = vld [vmem:[%s0 + $0x90] sm:$0xff]
    %v60 = vld [vmem:[%s0 + $0x98] sm:$0xff]
    %v61 = vld [vmem:[%s0 + $0xa0] sm:$0xff]
    %v62 = vld [vmem:[%s0 + $0xa8] sm:$0xff]
    %v63 = vld [vmem:[%s0 + $0xb0] sm:$0xff]
    %v64 = vld [vmem:[%s0 + $0xb8] sm:$0xff]
    %v65 = vld [vmem:[%s0 + $0xc0] sm:$0xff]
    %v66 = vld [vmem:[%s0 + $0xc8] sm:$0xff]
    %v67 = vld [vmem:[%s0 + $0xd0] sm:$0xff]
    %v68 = vld [vmem:[%s0 + $0xd8] sm:$0xff]
    %v69 = vld [vmem:[%s0 + $0xe0] sm:$0xff]
    %v70 = vld [vmem:[%s0 + $0xe8] sm:$0xff]
    %v71 = vld [vmem:[%s0 + $0xf0] sm:$0xff]
    %v72 = vld [vmem:[%s0 + $0xf8] sm:$0xff]
    %v73 = vld [vmem:[%s1] sm:$0xff]
    %v74 = vld [vmem:[%s1 + $0x8] sm:$0xff]
    %v75 = vld [vmem:[%s2] sm:$0x1]
    %v77 = vlaneseq
    %v78 = vshrl.u32 %v77, 7
    %v79 = vsub.s32 0, %v78
    %v80 = vrot.slane %v75, %v79
    %vm82 = vcmask 130048
    %v84 = vsel %vm82, %v41, 0
    %v87 = vsel %vm82, %v42, 0
    %v90 = vsel %vm82, %v43, 0
    %v93 = vsel %vm82, %v44, 0
    %v96 = vsel %vm82, %v45, 0
    %v99 = vsel %vm82, %v46, 0
    %v102 = vsel %vm82, %v47, 0
    %v105 = vsel %vm82, %v48, 0
    %v108 = vsel %vm82, %v49, 0
    %v111 = vsel %vm82, %v50, 0
    %v114 = vsel %vm82, %v51, 0
    %v117 = vsel %vm82, %v52, 0
    %v120 = vsel %vm82, %v53, 0
    %v123 = vsel %vm82, %v54, 0
    %v126 = vsel %vm82, %v55, 0
    %v129 = vsel %vm82, %v56, 0
    %v132 = vsel %vm82, %v57, 0
    %v135 = vsel %vm82, %v58, 0
    %v138 = vsel %vm82, %v59, 0
    %v141 = vsel %vm82, %v60, 0
    %v144 = vsel %vm82, %v61, 0
    %v147 = vsel %vm82, %v62, 0
    %v150 = vsel %vm82, %v63, 0
    %v153 = vsel %vm82, %v64, 0
    %v156 = vsel %vm82, %v65, 0
    %v159 = vsel %vm82, %v66, 0
    %v162 = vsel %vm82, %v67, 0
    %v165 = vsel %vm82, %v68, 0
    %v168 = vsel %vm82, %v69, 0
    %v171 = vsel %vm82, %v70, 0
    %v174 = vsel %vm82, %v71, 0
    %v177 = vsel %vm82, %v72, 0
    %179 = vmatprep.subr.mxu0 0.0
    %180 = vmatpush1.msra.mxu0 0.0
    %181 = vmatprep.subr.mxu0 0.0
    %182 = vmatpush1.msra.mxu0 0.0
    %183 = vmatprep.subr.mxu0 0.0
    %184 = vmatpush1.msra.mxu0 0.0
    %185 = vmatprep.subr.mxu0 0.0
    %186 = vmatpush1.msra.mxu0 0.0
    %187 = vmatprep.subr.mxu0 0.0
    %188 = vmatpush1.msra.mxu0 0.0
    %189 = vmatprep.subr.mxu0 0.0
    %190 = vmatpush1.msra.mxu0 0.0
    %191 = vmatprep.subr.mxu0 0.0
    %192 = vmatpush1.msra.mxu0 0.0
    %193 = vmatprep.subr.mxu0 0.0
    %194 = vmatpush1.msra.mxu0 0.0
    %195 = vmatprep.subr.mxu0 0.0
    %196 = vmatpush1.msra.mxu0 0.0
    %197 = vmatprep.subr.mxu0 0.0
    %198 = vmatpush1.msra.mxu0 0.0
    %199 = vmatprep.subr.mxu0 0.0
    %200 = vmatpush1.msra.mxu0 0.0
    %201 = vmatprep.subr.mxu0 0.0
    %202 = vmatpush1.msra.mxu0 0.0
    %203 = vmatprep.subr.mxu0 0.0
    %204 = vmatpush1.msra.mxu0 0.0
    %205 = vmatprep.subr.mxu0 0.0
    %206 = vmatpush1.msra.mxu0 0.0
    %207 = vmatprep.subr.mxu0 0.0
    %208 = vmatpush1.msra.mxu0 %v74
    %209 = vmatprep.subr.mxu0 0.0
    %210 = vmatpush1.msra.mxu0 %v73
    %211 = vmatprep.subr.mxu0 0.0
    %212 = vmatpush2.msra.mxu0 0.0
    %213 = vmatprep.subr.mxu0 0.0
    %214 = vmatpush2.msra.mxu0 0.0
    %215 = vmatprep.subr.mxu0 0.0
    %216 = vmatpush2.msra.mxu0 0.0
    %217 = vmatprep.subr.mxu0 0.0
    %218 = vmatpush2.msra.mxu0 0.0
    %219 = vmatprep.subr.mxu0 0.0
    %220 = vmatpush2.msra.mxu0 0.0
    %221 = vmatprep.subr.mxu0 0.0
    %222 = vmatpush2.msra.mxu0 0.0
    %223 = vmatprep.subr.mxu0 0.0
    %224 = vmatpush2.msra.mxu0 0.0
    %225 = vmatprep.subr.mxu0 0.0
    %226 = vmatpush2.msra.mxu0 0.0
    %227 = vmatprep.subr.mxu0 0.0
    %228 = vmatpush2.msra.mxu0 0.0
    %229 = vmatprep.subr.mxu0 0.0
    %230 = vmatpush2.msra.mxu0 0.0
    %231 = vmatprep.subr.mxu0 0.0
    %232 = vmatpush2.msra.mxu0 0.0
    %233 = vmatprep.subr.mxu0 0.0
    %234 = vmatpush2.msra.mxu0 0.0
    %235 = vmatprep.subr.mxu0 0.0
    %236 = vmatpush2.msra.mxu0 0.0
    %237 = vmatprep.subr.mxu0 0.0
    %238 = vmatpush2.msra.mxu0 0.0
    %239 = vmatprep.subr.mxu0 0.0
    %240 = vmatpush2.msra.mxu0 0.0
    %241 = vmatprep.subr.mxu0 0.0
    %242 = vmatpush2.msra.mxu0 0.0
    %243 = vmatprep.mubr.f32.mxu0 0.0
    %244 = vmatmul.mubr.f32.gmra.mxu0 %v84
    %v245 = vpop.f32.mrf.mxu0
    %v246 = vadd.f32 %v80, %v245
    %v247 = vpop.f32.mrf.mxu0
    %248 = vmatprep.mubr.f32.mxu0 0.0
    %249 = vmatmul.mubr.f32.gmra.mxu0 %v87
    %v250 = vpop.f32.mrf.mxu0
    %v251 = vadd.f32 %v80, %v250
    %v252 = vpop.f32.mrf.mxu0
    %253 = vmatprep.mubr.f32.mxu0 0.0
    %254 = vmatmul.mubr.f32.gmra.mxu0 %v90
    %v255 = vpop.f32.mrf.mxu0
    %v256 = vadd.f32 %v80, %v255
    %v257 = vpop.f32.mrf.mxu0
    %258 = vmatprep.mubr.f32.mxu0 0.0
    %259 = vmatmul.mubr.f32.gmra.mxu0 %v93
    %v260 = vpop.f32.mrf.mxu0
    %v261 = vadd.f32 %v80, %v260
    %v262 = vpop.f32.mrf.mxu0
    %263 = vmatprep.mubr.f32.mxu0 0.0
    %264 = vmatmul.mubr.f32.gmra.mxu0 %v96
    %v265 = vpop.f32.mrf.mxu0
    %v266 = vadd.f32 %v80, %v265
    %v267 = vpop.f32.mrf.mxu0
    %268 = vmatprep.mubr.f32.mxu0 0.0
    %269 = vmatmul.mubr.f32.gmra.mxu0 %v99
    %v270 = vpop.f32.mrf.mxu0
    %v271 = vadd.f32 %v80, %v270
    %v272 = vpop.f32.mrf.mxu0
    %273 = vmatprep.mubr.f32.mxu0 0.0
    %274 = vmatmul.mubr.f32.gmra.mxu0 %v102
    %v275 = vpop.f32.mrf.mxu0
    %v276 = vadd.f32 %v80, %v275
    %v277 = vpop.f32.mrf.mxu0
    %278 = vmatprep.mubr.f32.mxu0 0.0
    %279 = vmatmul.mubr.f32.gmra.mxu0 %v105
    %v280 = vpop.f32.mrf.mxu0
    %v281 = vadd.f32 %v80, %v280
    %v282 = vpop.f32.mrf.mxu0
    %283 = vmatprep.mubr.f32.mxu0 0.0
    %284 = vmatmul.mubr.f32.gmra.mxu0 %v108
    %v285 = vpop.f32.mrf.mxu0
    %v286 = vadd.f32 %v80, %v285
    %v287 = vpop.f32.mrf.mxu0
    %288 = vmatprep.mubr.f32.mxu0 0.0
    %289 = vmatmul.mubr.f32.gmra.mxu0 %v111
    %v290 = vpop.f32.mrf.mxu0
    %v291 = vadd.f32 %v80, %v290
    %v292 = vpop.f32.mrf.mxu0
    %293 = vmatprep.mubr.f32.mxu0 0.0
    %294 = vmatmul.mubr.f32.gmra.mxu0 %v114
    %v295 = vpop.f32.mrf.mxu0
    %v296 = vadd.f32 %v80, %v295
    %v297 = vpop.f32.mrf.mxu0
    %298 = vmatprep.mubr.f32.mxu0 0.0
    %299 = vmatmul.mubr.f32.gmra.mxu0 %v117
    %v300 = vpop.f32.mrf.mxu0
    %v301 = vadd.f32 %v80, %v300
    %v302 = vpop.f32.mrf.mxu0
    %303 = vmatprep.mubr.f32.mxu0 0.0
    %304 = vmatmul.mubr.f32.gmra.mxu0 %v120
    %v305 = vpop.f32.mrf.mxu0
    %v306 = vadd.f32 %v80, %v305
    %v307 = vpop.f32.mrf.mxu0
    %308 = vmatprep.mubr.f32.mxu0 0.0
    %309 = vmatmul.mubr.f32.gmra.mxu0 %v123
    %v310 = vpop.f32.mrf.mxu0
    %v311 = vadd.f32 %v80, %v310
    %v312 = vpop.f32.mrf.mxu0
    %313 = vmatprep.mubr.f32.mxu0 0.0
    %314 = vmatmul.mubr.f32.gmra.mxu0 %v126
    %v315 = vpop.f32.mrf.mxu0
    %v316 = vadd.f32 %v80, %v315
    %v317 = vpop.f32.mrf.mxu0
    %318 = vmatprep.mubr.f32.mxu0 0.0
    %319 = vmatmul.mubr.f32.gmra.mxu0 %v129
    %v320 = vpop.f32.mrf.mxu0
    %v321 = vadd.f32 %v80, %v320
    %v322 = vpop.f32.mrf.mxu0
    %323 = vmatprep.mubr.f32.mxu0 0.0
    %324 = vmatmul.mubr.f32.gmra.mxu0 %v132
    %v325 = vpop.f32.mrf.mxu0
    %v326 = vadd.f32 %v80, %v325
    %v327 = vpop.f32.mrf.mxu0
    %328 = vmatprep.mubr.f32.mxu0 0.0
    %329 = vmatmul.mubr.f32.gmra.mxu0 %v135
    %v330 = vpop.f32.mrf.mxu0
    %v331 = vadd.f32 %v80, %v330
    %v332 = vpop.f32.mrf.mxu0
    %333 = vmatprep.mubr.f32.mxu0 0.0
    %334 = vmatmul.mubr.f32.gmra.mxu0 %v138
    %v335 = vpop.f32.mrf.mxu0
    %v336 = vadd.f32 %v80, %v335
    %v337 = vpop.f32.mrf.mxu0
    %338 = vmatprep.mubr.f32.mxu0 0.0
    %339 = vmatmul.mubr.f32.gmra.mxu0 %v141
    %v340 = vpop.f32.mrf.mxu0
    %v341 = vadd.f32 %v80, %v340
    %v342 = vpop.f32.mrf.mxu0
    %343 = vmatprep.mubr.f32.mxu0 0.0
    %344 = vmatmul.mubr.f32.gmra.mxu0 %v144
    %v345 = vpop.f32.mrf.mxu0
    %v346 = vadd.f32 %v80, %v345
    %v347 = vpop.f32.mrf.mxu0
    %348 = vmatprep.mubr.f32.mxu0 0.0
    %349 = vmatmul.mubr.f32.gmra.mxu0 %v147
    %v350 = vpop.f32.mrf.mxu0
    %v351 = vadd.f32 %v80, %v350
    %v352 = vpop.f32.mrf.mxu0
    %353 = vmatprep.mubr.f32.mxu0 0.0
    %354 = vmatmul.mubr.f32.gmra.mxu0 %v150
    %v355 = vpop.f32.mrf.mxu0
    %v356 = vadd.f32 %v80, %v355
    %v357 = vpop.f32.mrf.mxu0
    %358 = vmatprep.mubr.f32.mxu0 0.0
    %359 = vmatmul.mubr.f32.gmra.mxu0 %v153
    %v360 = vpop.f32.mrf.mxu0
    %v361 = vadd.f32 %v80, %v360
    %v362 = vpop.f32.mrf.mxu0
    %363 = vmatprep.mubr.f32.mxu0 0.0
    %364 = vmatmul.mubr.f32.gmra.mxu0 %v156
    %v365 = vpop.f32.mrf.mxu0
    %v366 = vadd.f32 %v80, %v365
    %v367 = vpop.f32.mrf.mxu0
    %368 = vmatprep.mubr.f32.mxu0 0.0
    %369 = vmatmul.mubr.f32.gmra.mxu0 %v159
    %v370 = vpop.f32.mrf.mxu0
    %v371 = vadd.f32 %v80, %v370
    %v372 = vpop.f32.mrf.mxu0
    %373 = vmatprep.mubr.f32.mxu0 0.0
    %374 = vmatmul.mubr.f32.gmra.mxu0 %v162
    %v375 = vpop.f32.mrf.mxu0
    %v376 = vadd.f32 %v80, %v375
    %v377 = vpop.f32.mrf.mxu0
    %378 = vmatprep.mubr.f32.mxu0 0.0
    %379 = vmatmul.mubr.f32.gmra.mxu0 %v165
    %v380 = vpop.f32.mrf.mxu0
    %v381 = vadd.f32 %v80, %v380
    %v382 = vpop.f32.mrf.mxu0
    %383 = vmatprep.mubr.f32.mxu0 0.0
    %384 = vmatmul.mubr.f32.gmra.mxu0 %v168
    %v385 = vpop.f32.mrf.mxu0
    %v386 = vadd.f32 %v80, %v385
    %v387 = vpop.f32.mrf.mxu0
    %388 = vmatprep.mubr.f32.mxu0 0.0
    %389 = vmatmul.mubr.f32.gmra.mxu0 %v171
    %v390 = vpop.f32.mrf.mxu0
    %v391 = vadd.f32 %v80, %v390
    %v392 = vpop.f32.mrf.mxu0
    %393 = vmatprep.mubr.f32.mxu0 0.0
    %394 = vmatmul.mubr.f32.gmra.mxu0 %v174
    %v395 = vpop.f32.mrf.mxu0
    %v396 = vadd.f32 %v80, %v395
    %v397 = vpop.f32.mrf.mxu0
    %398 = vmatprep.mubr.f32.mxu0 0.0
    %399 = vmatmul.mubr.f32.gmra.mxu0 %v177
    %v400 = vpop.f32.mrf.mxu0
    %v401 = vadd.f32 %v80, %v400
    %v402 = vpop.f32.mrf.mxu0
    %403 = vdwg.mxu0
    %v404 = vadd.f32 %v246, %v251
    %v405 = vadd.f32 %v404, %v256
    %v406 = vadd.f32 %v405, %v261
    %v407 = vrot.slane %v406, 4
    %v408 = vadd.f32 %v406, %v407
    %v409 = vrot.slane %v408, 2
    %v410 = vadd.f32 %v408, %v409
    %v411 = vrot.slane %v410, 1
    %v412 = vadd.f32 %v410, %v411
    %v413 = vadd.f32 %v266, %v271
    %v414 = vadd.f32 %v413, %v276
    %v415 = vadd.f32 %v414, %v281
    %v416 = vrot.slane %v415, 4
    %v417 = vadd.f32 %v415, %v416
    %v418 = vrot.slane %v417, 2
    %v419 = vadd.f32 %v417, %v418
    %v420 = vrot.slane %v419, 1
    %v421 = vadd.f32 %v419, %v420
    %v422 = vadd.f32 %v286, %v291
    %v423 = vadd.f32 %v422, %v296
    %v424 = vadd.f32 %v423, %v301
    %v425 = vrot.slane %v424, 4
    %v426 = vadd.f32 %v424, %v425
    %v427 = vrot.slane %v426, 2
    %v428 = vadd.f32 %v426, %v427
    %v429 = vrot.slane %v428, 1
    %v430 = vadd.f32 %v428, %v429
    %v431 = vadd.f32 %v306, %v311
    %v432 = vadd.f32 %v431, %v316
    %v433 = vadd.f32 %v432, %v321
    %v434 = vrot.slane %v433, 4
    %v435 = vadd.f32 %v433, %v434
    %v436 = vrot.slane %v435, 2
    %v437 = vadd.f32 %v435, %v436
    %v438 = vrot.slane %v437, 1
    %v439 = vadd.f32 %v437, %v438
    %v440 = vadd.f32 %v326, %v331
    %v441 = vadd.f32 %v440, %v336
    %v442 = vadd.f32 %v441, %v341
    %v443 = vrot.slane %v442, 4
    %v444 = vadd.f32 %v442, %v443
    %v445 = vrot.slane %v444, 2
    %v446 = vadd.f32 %v444, %v445
    %v447 = vrot.slane %v446, 1
    %v448 = vadd.f32 %v446, %v447
    %v449 = vadd.f32 %v346, %v351
    %v450 = vadd.f32 %v449, %v356
    %v451 = vadd.f32 %v450, %v361
    %v452 = vrot.slane %v451, 4
    %v453 = vadd.f32 %v451, %v452
    %v454 = vrot.slane %v453, 2
    %v455 = vadd.f32 %v453, %v454
    %v456 = vrot.slane %v455, 1
    %v457 = vadd.f32 %v455, %v456
    %v458 = vadd.f32 %v366, %v371
    %v459 = vadd.f32 %v458, %v376
    %v460 = vadd.f32 %v459, %v381
    %v461 = vrot.slane %v460, 4
    %v462 = vadd.f32 %v460, %v461
    %v463 = vrot.slane %v462, 2
    %v464 = vadd.f32 %v462, %v463
    %v465 = vrot.slane %v464, 1
    %v466 = vadd.f32 %v464, %v465
    %v467 = vadd.f32 %v386, %v391
    %v468 = vadd.f32 %v467, %v396
    %v469 = vadd.f32 %v468, %v401
    %v470 = vrot.slane %v469, 4
    %v471 = vadd.f32 %v469, %v470
    %v472 = vrot.slane %v471, 2
    %v473 = vadd.f32 %v471, %v472
    %v474 = vrot.slane %v473, 1
    %v475 = vadd.f32 %v473, %v474
    %v476 = vrcp.pop 32.0
    %v477 = vmul.f32 %v412, %v476
    %v478 = vmul.f32 %v421, %v476
    %v479 = vmul.f32 %v430, %v476
    %v480 = vmul.f32 %v439, %v476
    %v481 = vmul.f32 %v448, %v476
    %v482 = vmul.f32 %v457, %v476
    %v483 = vmul.f32 %v466, %v476
    %v484 = vmul.f32 %v475, %v476
    %v485 = vsub.f32 %v246, %v477
    %v486 = vsub.f32 %v251, %v477
    %v487 = vsub.f32 %v256, %v477
    %v488 = vsub.f32 %v261, %v477
    %v489 = vsub.f32 %v266, %v478
    %v490 = vsub.f32 %v271, %v478
    %v491 = vsub.f32 %v276, %v478
    %v492 = vsub.f32 %v281, %v478
    %v493 = vsub.f32 %v286, %v479
    %v494 = vsub.f32 %v291, %v479
    %v495 = vsub.f32 %v296, %v479
    %v496 = vsub.f32 %v301, %v479
    %v497 = vsub.f32 %v306, %v480
    %v498 = vsub.f32 %v311, %v480
    %v499 = vsub.f32 %v316, %v480
    %v500 = vsub.f32 %v321, %v480
    %v501 = vsub.f32 %v326, %v481
    %v502 = vsub.f32 %v331, %v481
    %v503 = vsub.f32 %v336, %v481
    %v504 = vsub.f32 %v341, %v481
    %v505 = vsub.f32 %v346, %v482
    %v506 = vsub.f32 %v351, %v482
    %v507 = vsub.f32 %v356, %v482
    %v508 = vsub.f32 %v361, %v482
    %v509 = vsub.f32 %v366, %v483
    %v510 = vsub.f32 %v371, %v483
    %v511 = vsub.f32 %v376, %v483
    %v512 = vsub.f32 %v381, %v483
    %v513 = vsub.f32 %v386, %v484
    %v514 = vsub.f32 %v391, %v484
    %v515 = vsub.f32 %v396, %v484
    %v516 = vsub.f32 %v401, %v484
    %v517 = vmul.f32 %v485, %v485
    %v518 = vmul.f32 %v486, %v486
    %v519 = vmul.f32 %v487, %v487
    %v520 = vmul.f32 %v488, %v488
    %v521 = vmul.f32 %v489, %v489
    %v522 = vmul.f32 %v490, %v490
    %v523 = vmul.f32 %v491, %v491
    %v524 = vmul.f32 %v492, %v492
    %v525 = vmul.f32 %v493, %v493
    %v526 = vmul.f32 %v494, %v494
    %v527 = vmul.f32 %v495, %v495
    %v528 = vmul.f32 %v496, %v496
    %v529 = vmul.f32 %v497, %v497
    %v530 = vmul.f32 %v498, %v498
    %v531 = vmul.f32 %v499, %v499
    %v532 = vmul.f32 %v500, %v500
    %v533 = vmul.f32 %v501, %v501
    %v534 = vmul.f32 %v502, %v502
    %v535 = vmul.f32 %v503, %v503
    %v536 = vmul.f32 %v504, %v504
    %v537 = vmul.f32 %v505, %v505
    %v538 = vmul.f32 %v506, %v506
    %v539 = vmul.f32 %v507, %v507
    %v540 = vmul.f32 %v508, %v508
    %v541 = vmul.f32 %v509, %v509
    %v542 = vmul.f32 %v510, %v510
    %v543 = vmul.f32 %v511, %v511
    %v544 = vmul.f32 %v512, %v512
    %v545 = vmul.f32 %v513, %v513
    %v546 = vmul.f32 %v514, %v514
    %v547 = vmul.f32 %v515, %v515
    %v548 = vmul.f32 %v516, %v516
    %v549 = vadd.f32 %v517, %v518
    %v550 = vadd.f32 %v549, %v519
    %v551 = vadd.f32 %v550, %v520
    %v552 = vrot.slane %v551, 4
    %v553 = vadd.f32 %v551, %v552
    %v554 = vrot.slane %v553, 2
    %v555 = vadd.f32 %v553, %v554
    %v556 = vrot.slane %v555, 1
    %v557 = vadd.f32 %v555, %v556
    %v558 = vadd.f32 %v521, %v522
    %v559 = vadd.f32 %v558, %v523
    %v560 = vadd.f32 %v559, %v524
    %v561 = vrot.slane %v560, 4
    %v562 = vadd.f32 %v560, %v561
    %v563 = vrot.slane %v562, 2
    %v564 = vadd.f32 %v562, %v563
    %v565 = vrot.slane %v564, 1
    %v566 = vadd.f32 %v564, %v565
    %v567 = vadd.f32 %v525, %v526
    %v568 = vadd.f32 %v567, %v527
    %v569 = vadd.f32 %v568, %v528
    %v570 = vrot.slane %v569, 4
    %v571 = vadd.f32 %v569, %v570
    %v572 = vrot.slane %v571, 2
    %v573 = vadd.f32 %v571, %v572
    %v574 = vrot.slane %v573, 1
    %v575 = vadd.f32 %v573, %v574
    %v576 = vadd.f32 %v529, %v530
    %v577 = vadd.f32 %v576, %v531
    %v578 = vadd.f32 %v577, %v532
    %v579 = vrot.slane %v578, 4
    %v580 = vadd.f32 %v578, %v579
    %v581 = vrot.slane %v580, 2
    %v582 = vadd.f32 %v580, %v581
    %v583 = vrot.slane %v582, 1
    %v584 = vadd.f32 %v582, %v583
    %v585 = vadd.f32 %v533, %v534
    %v586 = vadd.f32 %v585, %v535
    %v587 = vadd.f32 %v586, %v536
    %v588 = vrot.slane %v587, 4
    %v589 = vadd.f32 %v587, %v588
    %v590 = vrot.slane %v589, 2
    %v591 = vadd.f32 %v589, %v590
    %v592 = vrot.slane %v591, 1
    %v593 = vadd.f32 %v591, %v592
    %v594 = vadd.f32 %v537, %v538
    %v595 = vadd.f32 %v594, %v539
    %v596 = vadd.f32 %v595, %v540
    %v597 = vrot.slane %v596, 4
    %v598 = vadd.f32 %v596, %v597
    %v599 = vrot.slane %v598, 2
    %v600 = vadd.f32 %v598, %v599
    %v601 = vrot.slane %v600, 1
    %v602 = vadd.f32 %v600, %v601
    %v603 = vadd.f32 %v541, %v542
    %v604 = vadd.f32 %v603, %v543
    %v605 = vadd.f32 %v604, %v544
    %v606 = vrot.slane %v605, 4
    %v607 = vadd.f32 %v605, %v606
    %v608 = vrot.slane %v607, 2
    %v609 = vadd.f32 %v607, %v608
    %v610 = vrot.slane %v609, 1
    %v611 = vadd.f32 %v609, %v610
    %v612 = vadd.f32 %v545, %v546
    %v613 = vadd.f32 %v612, %v547
    %v614 = vadd.f32 %v613, %v548
    %v615 = vrot.slane %v614, 4
    %v616 = vadd.f32 %v614, %v615
    %v617 = vrot.slane %v616, 2
    %v618 = vadd.f32 %v616, %v617
    %v619 = vrot.slane %v618, 1
    %v620 = vadd.f32 %v618, %v619
    %v621 = vmul.f32 %v557, %v476
    %v622 = vmul.f32 %v566, %v476
    %v623 = vmul.f32 %v575, %v476
    %v624 = vmul.f32 %v584, %v476
    %v625 = vmul.f32 %v593, %v476
    %v626 = vmul.f32 %v602, %v476
    %v627 = vmul.f32 %v611, %v476
    %v628 = vmul.f32 %v620, %v476
    %v629 = vadd.f32 %v621, 1e-05
    %v630 = vadd.f32 %v622, 1e-05
    %v631 = vadd.f32 %v623, 1e-05
    %v632 = vadd.f32 %v624, 1e-05
    %v633 = vadd.f32 %v625, 1e-05
    %v634 = vadd.f32 %v626, 1e-05
    %v635 = vadd.f32 %v627, 1e-05
    %v636 = vadd.f32 %v628, 1e-05
    %v637 = vrsqrt.pop %v629
    %v638 = vrsqrt.pop %v630
    %v639 = vrsqrt.pop %v631
    %v640 = vrsqrt.pop %v632
    %v641 = vrsqrt.pop %v633
    %v642 = vrsqrt.pop %v634
    %v643 = vrsqrt.pop %v635
    %v644 = vrsqrt.pop %v636
    %v645 = vmul.f32 %v485, %v637
    %v646 = vmul.f32 %v486, %v637
    %v647 = vmul.f32 %v487, %v637
    %v648 = vmul.f32 %v488, %v637
    %v649 = vmul.f32 %v489, %v638
    %v650 = vmul.f32 %v490, %v638
    %v651 = vmul.f32 %v491, %v638
    %v652 = vmul.f32 %v492, %v638
    %v653 = vmul.f32 %v493, %v639
    %v654 = vmul.f32 %v494, %v639
    %v655 = vmul.f32 %v495, %v639
    %v656 = vmul.f32 %v496, %v639
    %v657 = vmul.f32 %v497, %v640
    %v658 = vmul.f32 %v498, %v640
    %v659 = vmul.f32 %v499, %v640
    %v660 = vmul.f32 %v500, %v640
    %v661 = vmul.f32 %v501, %v641
    %v662 = vmul.f32 %v502, %v641
    %v663 = vmul.f32 %v503, %v641
    %v664 = vmul.f32 %v504, %v641
    %v665 = vmul.f32 %v505, %v642
    %v666 = vmul.f32 %v506, %v642
    %v667 = vmul.f32 %v507, %v642
    %v668 = vmul.f32 %v508, %v642
    %v669 = vmul.f32 %v509, %v643
    %v670 = vmul.f32 %v510, %v643
    %v671 = vmul.f32 %v511, %v643
    %v672 = vmul.f32 %v512, %v643
    %v673 = vmul.f32 %v513, %v644
    %v674 = vmul.f32 %v514, %v644
    %v675 = vmul.f32 %v515, %v644
    %v676 = vmul.f32 %v516, %v644
    %v677 = vmax.f32 %v645, 0.0
    %v678 = vmax.f32 %v646, 0.0
    %v679 = vmax.f32 %v647, 0.0
    %v680 = vmax.f32 %v648, 0.0
    %v681 = vmax.f32 %v649, 0.0
    %v682 = vmax.f32 %v650, 0.0
    %v683 = vmax.f32 %v651, 0.0
    %v684 = vmax.f32 %v652, 0.0
    %v685 = vmax.f32 %v653, 0.0
    %v686 = vmax.f32 %v654, 0.0
    %v687 = vmax.f32 %v655, 0.0
    %v688 = vmax.f32 %v656, 0.0
    %v689 = vmax.f32 %v657, 0.0
    %v690 = vmax.f32 %v658, 0.0
    %v691 = vmax.f32 %v659, 0.0
    %v692 = vmax.f32 %v660, 0.0
    %v693 = vmax.f32 %v661, 0.0
    %v694 = vmax.f32 %v662, 0.0
    %v695 = vmax.f32 %v663, 0.0
    %v696 = vmax.f32 %v664, 0.0
    %v697 = vmax.f32 %v665, 0.0
    %v698 = vmax.f32 %v666, 0.0
    %v699 = vmax.f32 %v667, 0.0
    %v700 = vmax.f32 %v668, 0.0
    %v701 = vmax.f32 %v669, 0.0
    %v702 = vmax.f32 %v670, 0.0
    %v703 = vmax.f32 %v671, 0.0
    %v704 = vmax.f32 %v672, 0.0
    %v705 = vmax.f32 %v673, 0.0
    %v706 = vmax.f32 %v674, 0.0
    %v707 = vmax.f32 %v675, 0.0
    %v708 = vmax.f32 %v676, 0.0
    %v709 = vld [vmem:[%s3] sm:$0xff]
    %v710 = vld [vmem:[%s3 + $0x8] sm:$0xff]
    %v711 = vld [vmem:[%s3 + $0x10] sm:$0xff]
    %v712 = vld [vmem:[%s3 + $0x18] sm:$0xff]
    %v713 = vld [vmem:[%s3 + $0x20] sm:$0xff]
    %v714 = vld [vmem:[%s3 + $0x28] sm:$0xff]
    %v715 = vld [vmem:[%s3 + $0x30] sm:$0xff]
    %v716 = vld [vmem:[%s3 + $0x38] sm:$0xff]
    %v717 = vld [vmem:[%s3 + $0x40] sm:$0xff]
    %v718 = vld [vmem:[%s3 + $0x48] sm:$0xff]
    %v719 = vld [vmem:[%s3 + $0x50] sm:$0xff]
    %v720 = vld [vmem:[%s3 + $0x58] sm:$0xff]
    %v721 = vld [vmem:[%s3 + $0x60] sm:$0xff]
    %v722 = vld [vmem:[%s3 + $0x68] sm:$0xff]
    %v723 = vld [vmem:[%s3 + $0x70] sm:$0xff]
    %v724 = vld [vmem:[%s3 + $0x78] sm:$0xff]
    %v725 = vld [vmem:[%s4] sm:$0x1]
    %v727 = vlaneseq
    %v728 = vshrl.u32 %v727, 7
    %v729 = vsub.s32 0, %v728
    %v730 = vrot.slane %v725, %v729
    %732 = vmatprep.subr.mxu0 0.0
    %733 = vmatpush1.msra.mxu0 %v724
    %734 = vmatprep.subr.mxu0 0.0
    %735 = vmatpush1.msra.mxu0 %v723
    %736 = vmatprep.subr.mxu0 0.0
    %737 = vmatpush1.msra.mxu0 %v722
    %738 = vmatprep.subr.mxu0 0.0
    %739 = vmatpush1.msra.mxu0 %v721
    %740 = vmatprep.subr.mxu0 0.0
    %741 = vmatpush1.msra.mxu0 %v720
    %742 = vmatprep.subr.mxu0 0.0
    %743 = vmatpush1.msra.mxu0 %v719
    %744 = vmatprep.subr.mxu0 0.0
    %745 = vmatpush1.msra.mxu0 %v718
    %746 = vmatprep.subr.mxu0 0.0
    %747 = vmatpush1.msra.mxu0 %v717
    %748 = vmatprep.subr.mxu0 0.0
    %749 = vmatpush1.msra.mxu0 %v716
    %750 = vmatprep.subr.mxu0 0.0
    %751 = vmatpush1.msra.mxu0 %v715
    %752 = vmatprep.subr.mxu0 0.0
    %753 = vmatpush1.msra.mxu0 %v714
    %754 = vmatprep.subr.mxu0 0.0
    %755 = vmatpush1.msra.mxu0 %v713
    %756 = vmatprep.subr.mxu0 0.0
    %757 = vmatpush1.msra.mxu0 %v712
    %758 = vmatprep.subr.mxu0 0.0
    %759 = vmatpush1.msra.mxu0 %v711
    %760 = vmatprep.subr.mxu0 0.0
    %761 = vmatpush1.msra.mxu0 %v710
    %762 = vmatprep.subr.mxu0 0.0
    %763 = vmatpush1.msra.mxu0 %v709
    %764 = vmatprep.subr.mxu0 0.0
    %765 = vmatpush2.msra.mxu0 0.0
    %766 = vmatprep.subr.mxu0 0.0
    %767 = vmatpush2.msra.mxu0 0.0
    %768 = vmatprep.subr.mxu0 0.0
    %769 = vmatpush2.msra.mxu0 0.0
    %770 = vmatprep.subr.mxu0 0.0
    %771 = vmatpush2.msra.mxu0 0.0
    %772 = vmatprep.subr.mxu0 0.0
    %773 = vmatpush2.msra.mxu0 0.0
    %774 = vmatprep.subr.mxu0 0.0
    %775 = vmatpush2.msra.mxu0 0.0
    %776 = vmatprep.subr.mxu0 0.0
    %777 = vmatpush2.msra.mxu0 0.0
    %778 = vmatprep.subr.mxu0 0.0
    %779 = vmatpush2.msra.mxu0 0.0
    %780 = vmatprep.subr.mxu0 0.0
    %781 = vmatpush2.msra.mxu0 0.0
    %782 = vmatprep.subr.mxu0 0.0
    %783 = vmatpush2.msra.mxu0 0.0
    %784 = vmatprep.subr.mxu0 0.0
    %785 = vmatpush2.msra.mxu0 0.0
    %786 = vmatprep.subr.mxu0 0.0
    %787 = vmatpush2.msra.mxu0 0.0
    %788 = vmatprep.subr.mxu0 0.0
    %789 = vmatpush2.msra.mxu0 0.0
    %790 = vmatprep.subr.mxu0 0.0
    %791 = vmatpush2.msra.mxu0 0.0
    %792 = vmatprep.subr.mxu0 0.0
    %793 = vmatpush2.msra.mxu0 0.0
    %794 = vmatprep.subr.mxu0 0.0
    %795 = vmatpush2.msra.mxu0 0.0
    %796 = vmatprep.mubr.f32.mxu0 0.0
    %797 = vmatmul.mubr.f32.gmra.mxu0 %v677
    %v798 = vpop.f32.mrf.mxu0
    %v799 = vadd.f32 %v730, %v798
    %v800 = vpop.f32.mrf.mxu0
    %801 = vmatprep.mubr.f32.mxu0 0.0
    %802 = vmatmul.mubr.f32.gmra.mxu0 %v678
    %v803 = vpop.f32.mrf.mxu0
    %v804 = vadd.f32 %v730, %v803
    %v805 = vpop.f32.mrf.mxu0
    %806 = vmatprep.mubr.f32.mxu0 0.0
    %807 = vmatmul.mubr.f32.gmra.mxu0 %v679
    %v808 = vpop.f32.mrf.mxu0
    %v809 = vadd.f32 %v730, %v808
    %v810 = vpop.f32.mrf.mxu0
    %811 = vmatprep.mubr.f32.mxu0 0.0
    %812 = vmatmul.mubr.f32.gmra.mxu0 %v680
    %v813 = vpop.f32.mrf.mxu0
    %v814 = vadd.f32 %v730, %v813
    %v815 = vpop.f32.mrf.mxu0
    %816 = vmatprep.mubr.f32.mxu0 0.0
    %817 = vmatmul.mubr.f32.gmra.mxu0 %v681
    %v818 = vpop.f32.mrf.mxu0
    %v819 = vadd.f32 %v730, %v818
    %v820 = vpop.f32.mrf.mxu0
    %821 = vmatprep.mubr.f32.mxu0 0.0
    %822 = vmatmul.mubr.f32.gmra.mxu0 %v682
    %v823 = vpop.f32.mrf.mxu0
    %v824 = vadd.f32 %v730, %v823
    %v825 = vpop.f32.mrf.mxu0
    %826 = vmatprep.mubr.f32.mxu0 0.0
    %827 = vmatmul.mubr.f32.gmra.mxu0 %v683
    %v828 = vpop.f32.mrf.mxu0
    %v829 = vadd.f32 %v730, %v828
    %v830 = vpop.f32.mrf.mxu0
    %831 = vmatprep.mubr.f32.mxu0 0.0
    %832 = vmatmul.mubr.f32.gmra.mxu0 %v684
    %v833 = vpop.f32.mrf.mxu0
    %v834 = vadd.f32 %v730, %v833
    %v835 = vpop.f32.mrf.mxu0
    %836 = vmatprep.mubr.f32.mxu0 0.0
    %837 = vmatmul.mubr.f32.gmra.mxu0 %v685
    %v838 = vpop.f32.mrf.mxu0
    %v839 = vadd.f32 %v730, %v838
    %v840 = vpop.f32.mrf.mxu0
    %841 = vmatprep.mubr.f32.mxu0 0.0
    %842 = vmatmul.mubr.f32.gmra.mxu0 %v686
    %v843 = vpop.f32.mrf.mxu0
    %v844 = vadd.f32 %v730, %v843
    %v845 = vpop.f32.mrf.mxu0
    %846 = vmatprep.mubr.f32.mxu0 0.0
    %847 = vmatmul.mubr.f32.gmra.mxu0 %v687
    %v848 = vpop.f32.mrf.mxu0
    %v849 = vadd.f32 %v730, %v848
    %v850 = vpop.f32.mrf.mxu0
    %851 = vmatprep.mubr.f32.mxu0 0.0
    %852 = vmatmul.mubr.f32.gmra.mxu0 %v688
    %v853 = vpop.f32.mrf.mxu0
    %v854 = vadd.f32 %v730, %v853
    %v855 = vpop.f32.mrf.mxu0
    %856 = vmatprep.mubr.f32.mxu0 0.0
    %857 = vmatmul.mubr.f32.gmra.mxu0 %v689
    %v858 = vpop.f32.mrf.mxu0
    %v859 = vadd.f32 %v730, %v858
    %v860 = vpop.f32.mrf.mxu0
    %861 = vmatprep.mubr.f32.mxu0 0.0
    %862 = vmatmul.mubr.f32.gmra.mxu0 %v690
    %v863 = vpop.f32.mrf.mxu0
    %v864 = vadd.f32 %v730, %v863
    %v865 = vpop.f32.mrf.mxu0
    %866 = vmatprep.mubr.f32.mxu0 0.0
    %867 = vmatmul.mubr.f32.gmra.mxu0 %v691
    %v868 = vpop.f32.mrf.mxu0
    %v869 = vadd.f32 %v730, %v868
    %v870 = vpop.f32.mrf.mxu0
    %871 = vmatprep.mubr.f32.mxu0 0.0
    %872 = vmatmul.mubr.f32.gmra.mxu0 %v692
    %v873 = vpop.f32.mrf.mxu0
    %v874 = vadd.f32 %v730, %v873
    %v875 = vpop.f32.mrf.mxu0
    %876 = vmatprep.mubr.f32.mxu0 0.0
    %877 = vmatmul.mubr.f32.gmra.mxu0 %v693
    %v878 = vpop.f32.mrf.mxu0
    %v879 = vadd.f32 %v730, %v878
    %v880 = vpop.f32.mrf.mxu0
    %881 = vmatprep.mubr.f32.mxu0 0.0
    %882 = vmatmul.mubr.f32.gmra.mxu0 %v694
    %v883 = vpop.f32.mrf.mxu0
    %v884 = vadd.f32 %v730, %v883
    %v885 = vpop.f32.mrf.mxu0
    %886 = vmatprep.mubr.f32.mxu0 0.0
    %887 = vmatmul.mubr.f32.gmra.mxu0 %v695
    %v888 = vpop.f32.mrf.mxu0
    %v889 = vadd.f32 %v730, %v888
    %v890 = vpop.f32.mrf.mxu0
    %891 = vmatprep.mubr.f32.mxu0 0.0
    %892 = vmatmul.mubr.f32.gmra.mxu0 %v696
    %v893 = vpop.f32.mrf.mxu0
    %v894 = vadd.f32 %v730, %v893
    %v895 = vpop.f32.mrf.mxu0
    %896 = vmatprep.mubr.f32.mxu0 0.0
    %897 = vmatmul.mubr.f32.gmra.mxu0 %v697
    %v898 = vpop.f32.mrf.mxu0
    %v899 = vadd.f32 %v730, %v898
    %v900 = vpop.f32.mrf.mxu0
    %901 = vmatprep.mubr.f32.mxu0 0.0
    %902 = vmatmul.mubr.f32.gmra.mxu0 %v698
    %v903 = vpop.f32.mrf.mxu0
    %v904 = vadd.f32 %v730, %v903
    %v905 = vpop.f32.mrf.mxu0
    %906 = vmatprep.mubr.f32.mxu0 0.0
    %907 = vmatmul.mubr.f32.gmra.mxu0 %v699
    %v908 = vpop.f32.mrf.mxu0
    %v909 = vadd.f32 %v730, %v908
    %v910 = vpop.f32.mrf.mxu0
    %911 = vmatprep.mubr.f32.mxu0 0.0
    %912 = vmatmul.mubr.f32.gmra.mxu0 %v700
    %v913 = vpop.f32.mrf.mxu0
    %v914 = vadd.f32 %v730, %v913
    %v915 = vpop.f32.mrf.mxu0
    %916 = vmatprep.mubr.f32.mxu0 0.0
    %917 = vmatmul.mubr.f32.gmra.mxu0 %v701
    %v918 = vpop.f32.mrf.mxu0
    %v919 = vadd.f32 %v730, %v918
    %v920 = vpop.f32.mrf.mxu0
    %921 = vmatprep.mubr.f32.mxu0 0.0
    %922 = vmatmul.mubr.f32.gmra.mxu0 %v702
    %v923 = vpop.f32.mrf.mxu0
    %v924 = vadd.f32 %v730, %v923
    %v925 = vpop.f32.mrf.mxu0
    %926 = vmatprep.mubr.f32.mxu0 0.0
    %927 = vmatmul.mubr.f32.gmra.mxu0 %v703
    %v928 = vpop.f32.mrf.mxu0
    %v929 = vadd.f32 %v730, %v928
    %v930 = vpop.f32.mrf.mxu0
    %931 = vmatprep.mubr.f32.mxu0 0.0
    %932 = vmatmul.mubr.f32.gmra.mxu0 %v704
    %v933 = vpop.f32.mrf.mxu0
    %v934 = vadd.f32 %v730, %v933
    %v935 = vpop.f32.mrf.mxu0
    %936 = vmatprep.mubr.f32.mxu0 0.0
    %937 = vmatmul.mubr.f32.gmra.mxu0 %v705
    %v938 = vpop.f32.mrf.mxu0
    %v939 = vadd.f32 %v730, %v938
    %v940 = vpop.f32.mrf.mxu0
    %941 = vmatprep.mubr.f32.mxu0 0.0
    %942 = vmatmul.mubr.f32.gmra.mxu0 %v706
    %v943 = vpop.f32.mrf.mxu0
    %v944 = vadd.f32 %v730, %v943
    %v945 = vpop.f32.mrf.mxu0
    %946 = vmatprep.mubr.f32.mxu0 0.0
    %947 = vmatmul.mubr.f32.gmra.mxu0 %v707
    %v948 = vpop.f32.mrf.mxu0
    %v949 = vadd.f32 %v730, %v948
    %v950 = vpop.f32.mrf.mxu0
    %951 = vmatprep.mubr.f32.mxu0 0.0
    %952 = vmatmul.mubr.f32.gmra.mxu0 %v708
    %v953 = vpop.f32.mrf.mxu0
    %v954 = vadd.f32 %v730, %v953
    %v955 = vpop.f32.mrf.mxu0
    %956 = vdwg.mxu0
    %v957 = vadd.f32 %v799, %v804
    %v958 = vadd.f32 %v957, %v809
    %v959 = vadd.f32 %v958, %v814
    %v960 = vrot.slane %v959, 4
    %v961 = vadd.f32 %v959, %v960
    %v962 = vrot.slane %v961, 2
    %v963 = vadd.f32 %v961, %v962
    %v964 = vrot.slane %v963, 1
    %v965 = vadd.f32 %v963, %v964
    %v966 = vadd.f32 %v819, %v824
    %v967 = vadd.f32 %v966, %v829
    %v968 = vadd.f32 %v967, %v834
    %v969 = vrot.slane %v968, 4
    %v970 = vadd.f32 %v968, %v969
    %v971 = vrot.slane %v970, 2
    %v972 = vadd.f32 %v970, %v971
    %v973 = vrot.slane %v972, 1
    %v974 = vadd.f32 %v972, %v973
    %v975 = vadd.f32 %v839, %v844
    %v976 = vadd.f32 %v975, %v849
    %v977 = vadd.f32 %v976, %v854
    %v978 = vrot.slane %v977, 4
    %v979 = vadd.f32 %v977, %v978
    %v980 = vrot.slane %v979, 2
    %v981 = vadd.f32 %v979, %v980
    %v982 = vrot.slane %v981, 1
    %v983 = vadd.f32 %v981, %v982
    %v984 = vadd.f32 %v859, %v864
    %v985 = vadd.f32 %v984, %v869
    %v986 = vadd.f32 %v985, %v874
    %v987 = vrot.slane %v986, 4
    %v988 = vadd.f32 %v986, %v987
    %v989 = vrot.slane %v988, 2
    %v990 = vadd.f32 %v988, %v989
    %v991 = vrot.slane %v990, 1
    %v992 = vadd.f32 %v990, %v991
    %v993 = vadd.f32 %v879, %v884
    %v994 = vadd.f32 %v993, %v889
    %v995 = vadd.f32 %v994, %v894
    %v996 = vrot.slane %v995, 4
    %v997 = vadd.f32 %v995, %v996
    %v998 = vrot.slane %v997, 2
    %v999 = vadd.f32 %v997, %v998
    %v1000 = vrot.slane %v999, 1
    %v1001 = vadd.f32 %v999, %v1000
    %v1002 = vadd.f32 %v899, %v904
    %v1003 = vadd.f32 %v1002, %v909
    %v1004 = vadd.f32 %v1003, %v914
    %v1005 = vrot.slane %v1004, 4
    %v1006 = vadd.f32 %v1004, %v1005
    %v1007 = vrot.slane %v1006, 2
    %v1008 = vadd.f32 %v1006, %v1007
    %v1009 = vrot.slane %v1008, 1
    %v1010 = vadd.f32 %v1008, %v1009
    %v1011 = vadd.f32 %v919, %v924
    %v1012 = vadd.f32 %v1011, %v929
    %v1013 = vadd.f32 %v1012, %v934
    %v1014 = vrot.slane %v1013, 4
    %v1015 = vadd.f32 %v1013, %v1014
    %v1016 = vrot.slane %v1015, 2
    %v1017 = vadd.f32 %v1015, %v1016
    %v1018 = vrot.slane %v1017, 1
    %v1019 = vadd.f32 %v1017, %v1018
    %v1020 = vadd.f32 %v939, %v944
    %v1021 = vadd.f32 %v1020, %v949
    %v1022 = vadd.f32 %v1021, %v954
    %v1023 = vrot.slane %v1022, 4
    %v1024 = vadd.f32 %v1022, %v1023
    %v1025 = vrot.slane %v1024, 2
    %v1026 = vadd.f32 %v1024, %v1025
    %v1027 = vrot.slane %v1026, 1
    %v1028 = vadd.f32 %v1026, %v1027
    %v1029 = vmul.f32 %v965, %v476
    %v1030 = vmul.f32 %v974, %v476
    %v1031 = vmul.f32 %v983, %v476
    %v1032 = vmul.f32 %v992, %v476
    %v1033 = vmul.f32 %v1001, %v476
    %v1034 = vmul.f32 %v1010, %v476
    %v1035 = vmul.f32 %v1019, %v476
    %v1036 = vmul.f32 %v1028, %v476
    %v1037 = vsub.f32 %v799, %v1029
    %v1038 = vsub.f32 %v804, %v1029
    %v1039 = vsub.f32 %v809, %v1029
    %v1040 = vsub.f32 %v814, %v1029
    %v1041 = vsub.f32 %v819, %v1030
    %v1042 = vsub.f32 %v824, %v1030
    %v1043 = vsub.f32 %v829, %v1030
    %v1044 = vsub.f32 %v834, %v1030
    %v1045 = vsub.f32 %v839, %v1031
    %v1046 = vsub.f32 %v844, %v1031
    %v1047 = vsub.f32 %v849, %v1031
    %v1048 = vsub.f32 %v854, %v1031
    %v1049 = vsub.f32 %v859, %v1032
    %v1050 = vsub.f32 %v864, %v1032
    %v1051 = vsub.f32 %v869, %v1032
    %v1052 = vsub.f32 %v874, %v1032
    %v1053 = vsub.f32 %v879, %v1033
    %v1054 = vsub.f32 %v884, %v1033
    %v1055 = vsub.f32 %v889, %v1033
    %v1056 = vsub.f32 %v894, %v1033
    %v1057 = vsub.f32 %v899, %v1034
    %v1058 = vsub.f32 %v904, %v1034
    %v1059 = vsub.f32 %v909, %v1034
    %v1060 = vsub.f32 %v914, %v1034
    %v1061 = vsub.f32 %v919, %v1035
    %v1062 = vsub.f32 %v924, %v1035
    %v1063 = vsub.f32 %v929, %v1035
    %v1064 = vsub.f32 %v934, %v1035
    %v1065 = vsub.f32 %v939, %v1036
    %v1066 = vsub.f32 %v944, %v1036
    %v1067 = vsub.f32 %v949, %v1036
    %v1068 = vsub.f32 %v954, %v1036
    %v1069 = vmul.f32 %v1037, %v1037
    %v1070 = vmul.f32 %v1038, %v1038
    %v1071 = vmul.f32 %v1039, %v1039
    %v1072 = vmul.f32 %v1040, %v1040
    %v1073 = vmul.f32 %v1041, %v1041
    %v1074 = vmul.f32 %v1042, %v1042
    %v1075 = vmul.f32 %v1043, %v1043
    %v1076 = vmul.f32 %v1044, %v1044
    %v1077 = vmul.f32 %v1045, %v1045
    %v1078 = vmul.f32 %v1046, %v1046
    %v1079 = vmul.f32 %v1047, %v1047
    %v1080 = vmul.f32 %v1048, %v1048
    %v1081 = vmul.f32 %v1049, %v1049
    %v1082 = vmul.f32 %v1050, %v1050
    %v1083 = vmul.f32 %v1051, %v1051
    %v1084 = vmul.f32 %v1052, %v1052
    %v1085 = vmul.f32 %v1053, %v1053
    %v1086 = vmul.f32 %v1054, %v1054
    %v1087 = vmul.f32 %v1055, %v1055
    %v1088 = vmul.f32 %v1056, %v1056
    %v1089 = vmul.f32 %v1057, %v1057
    %v1090 = vmul.f32 %v1058, %v1058
    %v1091 = vmul.f32 %v1059, %v1059
    %v1092 = vmul.f32 %v1060, %v1060
    %v1093 = vmul.f32 %v1061, %v1061
    %v1094 = vmul.f32 %v1062, %v1062
    %v1095 = vmul.f32 %v1063, %v1063
    %v1096 = vmul.f32 %v1064, %v1064
    %v1097 = vmul.f32 %v1065, %v1065
    %v1098 = vmul.f32 %v1066, %v1066
    %v1099 = vmul.f32 %v1067, %v1067
    %v1100 = vmul.f32 %v1068, %v1068
    %v1101 = vadd.f32 %v1069, %v1070
    %v1102 = vadd.f32 %v1101, %v1071
    %v1103 = vadd.f32 %v1102, %v1072
    %v1104 = vrot.slane %v1103, 4
    %v1105 = vadd.f32 %v1103, %v1104
    %v1106 = vrot.slane %v1105, 2
    %v1107 = vadd.f32 %v1105, %v1106
    %v1108 = vrot.slane %v1107, 1
    %v1109 = vadd.f32 %v1107, %v1108
    %v1110 = vadd.f32 %v1073, %v1074
    %v1111 = vadd.f32 %v1110, %v1075
    %v1112 = vadd.f32 %v1111, %v1076
    %v1113 = vrot.slane %v1112, 4
    %v1114 = vadd.f32 %v1112, %v1113
    %v1115 = vrot.slane %v1114, 2
    %v1116 = vadd.f32 %v1114, %v1115
    %v1117 = vrot.slane %v1116, 1
    %v1118 = vadd.f32 %v1116, %v1117
    %v1119 = vadd.f32 %v1077, %v1078
    %v1120 = vadd.f32 %v1119, %v1079
    %v1121 = vadd.f32 %v1120, %v1080
    %v1122 = vrot.slane %v1121, 4
    %v1123 = vadd.f32 %v1121, %v1122
    %v1124 = vrot.slane %v1123, 2
    %v1125 = vadd.f32 %v1123, %v1124
    %v1126 = vrot.slane %v1125, 1
    %v1127 = vadd.f32 %v1125, %v1126
    %v1128 = vadd.f32 %v1081, %v1082
    %v1129 = vadd.f32 %v1128, %v1083
    %v1130 = vadd.f32 %v1129, %v1084
    %v1131 = vrot.slane %v1130, 4
    %v1132 = vadd.f32 %v1130, %v1131
    %v1133 = vrot.slane %v1132, 2
    %v1134 = vadd.f32 %v1132, %v1133
    %v1135 = vrot.slane %v1134, 1
    %v1136 = vadd.f32 %v1134, %v1135
    %v1137 = vadd.f32 %v1085, %v1086
    %v1138 = vadd.f32 %v1137, %v1087
    %v1139 = vadd.f32 %v1138, %v1088
    %v1140 = vrot.slane %v1139, 4
    %v1141 = vadd.f32 %v1139, %v1140
    %v1142 = vrot.slane %v1141, 2
    %v1143 = vadd.f32 %v1141, %v1142
    %v1144 = vrot.slane %v1143, 1
    %v1145 = vadd.f32 %v1143, %v1144
    %v1146 = vadd.f32 %v1089, %v1090
    %v1147 = vadd.f32 %v1146, %v1091
    %v1148 = vadd.f32 %v1147, %v1092
    %v1149 = vrot.slane %v1148, 4
    %v1150 = vadd.f32 %v1148, %v1149
    %v1151 = vrot.slane %v1150, 2
    %v1152 = vadd.f32 %v1150, %v1151
    %v1153 = vrot.slane %v1152, 1
    %v1154 = vadd.f32 %v1152, %v1153
    %v1155 = vadd.f32 %v1093, %v1094
    %v1156 = vadd.f32 %v1155, %v1095
    %v1157 = vadd.f32 %v1156, %v1096
    %v1158 = vrot.slane %v1157, 4
    %v1159 = vadd.f32 %v1157, %v1158
    %v1160 = vrot.slane %v1159, 2
    %v1161 = vadd.f32 %v1159, %v1160
    %v1162 = vrot.slane %v1161, 1
    %v1163 = vadd.f32 %v1161, %v1162
    %v1164 = vadd.f32 %v1097, %v1098
    %v1165 = vadd.f32 %v1164, %v1099
    %v1166 = vadd.f32 %v1165, %v1100
    %v1167 = vrot.slane %v1166, 4
    %v1168 = vadd.f32 %v1166, %v1167
    %v1169 = vrot.slane %v1168, 2
    %v1170 = vadd.f32 %v1168, %v1169
    %v1171 = vrot.slane %v1170, 1
    %v1172 = vadd.f32 %v1170, %v1171
    %v1173 = vmul.f32 %v1109, %v476
    %v1174 = vmul.f32 %v1118, %v476
    %v1175 = vmul.f32 %v1127, %v476
    %v1176 = vmul.f32 %v1136, %v476
    %v1177 = vmul.f32 %v1145, %v476
    %v1178 = vmul.f32 %v1154, %v476
    %v1179 = vmul.f32 %v1163, %v476
    %v1180 = vmul.f32 %v1172, %v476
    %v1181 = vadd.f32 %v1173, 1e-05
    %v1182 = vadd.f32 %v1174, 1e-05
    %v1183 = vadd.f32 %v1175, 1e-05
    %v1184 = vadd.f32 %v1176, 1e-05
    %v1185 = vadd.f32 %v1177, 1e-05
    %v1186 = vadd.f32 %v1178, 1e-05
    %v1187 = vadd.f32 %v1179, 1e-05
    %v1188 = vadd.f32 %v1180, 1e-05
    %v1189 = vrsqrt.pop %v1181
    %v1190 = vrsqrt.pop %v1182
    %v1191 = vrsqrt.pop %v1183
    %v1192 = vrsqrt.pop %v1184
    %v1193 = vrsqrt.pop %v1185
    %v1194 = vrsqrt.pop %v1186
    %v1195 = vrsqrt.pop %v1187
    %v1196 = vrsqrt.pop %v1188
    %v1197 = vmul.f32 %v1037, %v1189
    %v1198 = vmul.f32 %v1038, %v1189
    %v1199 = vmul.f32 %v1039, %v1189
    %v1200 = vmul.f32 %v1040, %v1189
    %v1201 = vmul.f32 %v1041, %v1190
    %v1202 = vmul.f32 %v1042, %v1190
    %v1203 = vmul.f32 %v1043, %v1190
    %v1204 = vmul.f32 %v1044, %v1190
    %v1205 = vmul.f32 %v1045, %v1191
    %v1206 = vmul.f32 %v1046, %v1191
    %v1207 = vmul.f32 %v1047, %v1191
    %v1208 = vmul.f32 %v1048, %v1191
    %v1209 = vmul.f32 %v1049, %v1192
    %v1210 = vmul.f32 %v1050, %v1192
    %v1211 = vmul.f32 %v1051, %v1192
    %v1212 = vmul.f32 %v1052, %v1192
    %v1213 = vmul.f32 %v1053, %v1193
    %v1214 = vmul.f32 %v1054, %v1193
    %v1215 = vmul.f32 %v1055, %v1193
    %v1216 = vmul.f32 %v1056, %v1193
    %v1217 = vmul.f32 %v1057, %v1194
    %v1218 = vmul.f32 %v1058, %v1194
    %v1219 = vmul.f32 %v1059, %v1194
    %v1220 = vmul.f32 %v1060, %v1194
    %v1221 = vmul.f32 %v1061, %v1195
    %v1222 = vmul.f32 %v1062, %v1195
    %v1223 = vmul.f32 %v1063, %v1195
    %v1224 = vmul.f32 %v1064, %v1195
    %v1225 = vmul.f32 %v1065, %v1196
    %v1226 = vmul.f32 %v1066, %v1196
    %v1227 = vmul.f32 %v1067, %v1196
    %v1228 = vmul.f32 %v1068, %v1196
    %v1229 = vmax.f32 %v1197, 0.0
    %v1230 = vmax.f32 %v1198, 0.0
    %v1231 = vmax.f32 %v1199, 0.0
    %v1232 = vmax.f32 %v1200, 0.0
    %v1233 = vmax.f32 %v1201, 0.0
    %v1234 = vmax.f32 %v1202, 0.0
    %v1235 = vmax.f32 %v1203, 0.0
    %v1236 = vmax.f32 %v1204, 0.0
    %v1237 = vmax.f32 %v1205, 0.0
    %v1238 = vmax.f32 %v1206, 0.0
    %v1239 = vmax.f32 %v1207, 0.0
    %v1240 = vmax.f32 %v1208, 0.0
    %v1241 = vmax.f32 %v1209, 0.0
    %v1242 = vmax.f32 %v1210, 0.0
    %v1243 = vmax.f32 %v1211, 0.0
    %v1244 = vmax.f32 %v1212, 0.0
    %v1245 = vmax.f32 %v1213, 0.0
    %v1246 = vmax.f32 %v1214, 0.0
    %v1247 = vmax.f32 %v1215, 0.0
    %v1248 = vmax.f32 %v1216, 0.0
    %v1249 = vmax.f32 %v1217, 0.0
    %v1250 = vmax.f32 %v1218, 0.0
    %v1251 = vmax.f32 %v1219, 0.0
    %v1252 = vmax.f32 %v1220, 0.0
    %v1253 = vmax.f32 %v1221, 0.0
    %v1254 = vmax.f32 %v1222, 0.0
    %v1255 = vmax.f32 %v1223, 0.0
    %v1256 = vmax.f32 %v1224, 0.0
    %v1257 = vmax.f32 %v1225, 0.0
    %v1258 = vmax.f32 %v1226, 0.0
    %v1259 = vmax.f32 %v1227, 0.0
    %v1260 = vmax.f32 %v1228, 0.0
    %v1261 = vld [vmem:[#allocation2] sm:$0xff]
    %v1262 = vld [vmem:[#allocation2 + $0x8] sm:$0xff]
    %v1263 = vld [vmem:[#allocation2 + $0x10] sm:$0xff]
    %v1264 = vld [vmem:[#allocation2 + $0x18] sm:$0xff]
    %v1265 = vld [vmem:[#allocation2 + $0x20] sm:$0xff]
    %v1266 = vld [vmem:[#allocation2 + $0x28] sm:$0xff]
    %v1267 = vld [vmem:[#allocation2 + $0x30] sm:$0xff]
    %v1268 = vld [vmem:[#allocation2 + $0x38] sm:$0xff]
    %v1269 = vld [vmem:[#allocation2 + $0x40] sm:$0xff]
    %v1270 = vld [vmem:[#allocation2 + $0x48] sm:$0xff]
    %v1271 = vld [vmem:[#allocation2 + $0x50] sm:$0xff]
    %v1272 = vld [vmem:[#allocation2 + $0x58] sm:$0xff]
    %v1273 = vld [vmem:[#allocation2 + $0x60] sm:$0xff]
    %v1274 = vld [vmem:[#allocation2 + $0x68] sm:$0xff]
    %v1275 = vld [vmem:[#allocation2 + $0x70] sm:$0xff]
    %v1276 = vld [vmem:[#allocation2 + $0x78] sm:$0xff]
    %v1277 = vld [vmem:[#allocation2 + $0x80] sm:$0xff]
    %v1278 = vld [vmem:[#allocation2 + $0x88] sm:$0xff]
    %v1279 = vld [vmem:[#allocation2 + $0x90] sm:$0xff]
    %v1280 = vld [vmem:[#allocation2 + $0x98] sm:$0xff]
    %v1281 = vld [vmem:[#allocation2 + $0xa0] sm:$0xff]
    %v1282 = vld [vmem:[#allocation2 + $0xa8] sm:$0xff]
    %v1283 = vld [vmem:[#allocation2 + $0xb0] sm:$0xff]
    %v1284 = vld [vmem:[#allocation2 + $0xb8] sm:$0xff]
    %v1285 = vld [vmem:[#allocation2 + $0xc0] sm:$0xff]
    %v1286 = vld [vmem:[#allocation2 + $0xc8] sm:$0xff]
    %v1287 = vld [vmem:[#allocation2 + $0xd0] sm:$0xff]
    %v1288 = vld [vmem:[#allocation2 + $0xd8] sm:$0xff]
    %v1289 = vld [vmem:[#allocation2 + $0xe0] sm:$0xff]
    %v1290 = vld [vmem:[#allocation2 + $0xe8] sm:$0xff]
    %v1291 = vld [vmem:[#allocation2 + $0xf0] sm:$0xff]
    %v1292 = vld [vmem:[#allocation2 + $0xf8] sm:$0xff]
    %v1293 = vld [vmem:[#allocation2 + $0x100] sm:$0xff]
    %v1294 = vld [vmem:[#allocation2 + $0x108] sm:$0xff]
    %v1295 = vld [vmem:[#allocation2 + $0x110] sm:$0xff]
    %v1296 = vld [vmem:[#allocation2 + $0x118] sm:$0xff]
    %v1297 = vld [vmem:[#allocation2 + $0x120] sm:$0xff]
    %v1298 = vld [vmem:[#allocation2 + $0x128] sm:$0xff]
    %v1299 = vld [vmem:[#allocation2 + $0x130] sm:$0xff]
    %v1300 = vld [vmem:[#allocation2 + $0x138] sm:$0xff]
    %v1301 = vld [vmem:[#allocation2 + $0x140] sm:$0xff]
    %v1302 = vld [vmem:[#allocation2 + $0x148] sm:$0xff]
    %v1303 = vld [vmem:[#allocation2 + $0x150] sm:$0xff]
    %v1304 = vld [vmem:[#allocation2 + $0x158] sm:$0xff]
    %v1305 = vld [vmem:[#allocation2 + $0x160] sm:$0xff]
    %v1306 = vld [vmem:[#allocation2 + $0x168] sm:$0xff]
    %v1307 = vld [vmem:[#allocation2 + $0x170] sm:$0xff]
    %v1308 = vld [vmem:[#allocation2 + $0x178] sm:$0xff]
    %v1309 = vld [vmem:[#allocation2 + $0x180] sm:$0xff]
    %v1310 = vld [vmem:[#allocation2 + $0x188] sm:$0xff]
    %v1311 = vld [vmem:[#allocation2 + $0x190] sm:$0xff]
    %v1312 = vld [vmem:[#allocation2 + $0x198] sm:$0xff]
    %v1313 = vld [vmem:[#allocation2 + $0x1a0] sm:$0xff]
    %v1314 = vld [vmem:[#allocation2 + $0x1a8] sm:$0xff]
    %v1315 = vld [vmem:[#allocation2 + $0x1b0] sm:$0xff]
    %v1316 = vld [vmem:[#allocation2 + $0x1b8] sm:$0xff]
    %v1317 = vld [vmem:[#allocation2 + $0x1c0] sm:$0xff]
    %v1318 = vld [vmem:[#allocation2 + $0x1c8] sm:$0xff]
    %v1319 = vld [vmem:[#allocation2 + $0x1d0] sm:$0xff]
    %v1320 = vld [vmem:[#allocation2 + $0x1d8] sm:$0xff]
    %v1321 = vld [vmem:[#allocation2 + $0x1e0] sm:$0xff]
    %v1322 = vld [vmem:[#allocation2 + $0x1e8] sm:$0xff]
    %v1323 = vld [vmem:[#allocation2 + $0x1f0] sm:$0xff]
    %v1324 = vld [vmem:[#allocation2 + $0x1f8] sm:$0xff]
    %v1325 = vld [vmem:[#allocation2 + $0x200] sm:$0xff]
    %v1326 = vld [vmem:[#allocation2 + $0x208] sm:$0xff]
    %v1327 = vld [vmem:[#allocation2 + $0x210] sm:$0xff]
    %v1328 = vld [vmem:[#allocation2 + $0x218] sm:$0xff]
    %v1329 = vld [vmem:[#allocation2 + $0x220] sm:$0xff]
    %v1330 = vld [vmem:[#allocation2 + $0x228] sm:$0xff]
    %v1331 = vld [vmem:[#allocation2 + $0x230] sm:$0xff]
    %v1332 = vld [vmem:[#allocation2 + $0x238] sm:$0xff]
    %v1333 = vld [vmem:[#allocation2 + $0x240] sm:$0xff]
    %v1334 = vld [vmem:[#allocation2 + $0x248] sm:$0xff]
    %v1335 = vld [vmem:[#allocation2 + $0x250] sm:$0xff]
    %v1336 = vld [vmem:[#allocation2 + $0x258] sm:$0xff]
    %v1337 = vld [vmem:[#allocation2 + $0x260] sm:$0xff]
    %v1338 = vld [vmem:[#allocation2 + $0x268] sm:$0xff]
    %v1339 = vld [vmem:[#allocation2 + $0x270] sm:$0xff]
    %v1340 = vld [vmem:[#allocation2 + $0x278] sm:$0xff]
    %v1341 = vld [vmem:[#allocation2 + $0x280] sm:$0xff]
    %v1342 = vld [vmem:[#allocation2 + $0x288] sm:$0xff]
    %v1343 = vld [vmem:[#allocation2 + $0x290] sm:$0xff]
    %v1344 = vld [vmem:[#allocation2 + $0x298] sm:$0xff]
    %v1345 = vld [vmem:[#allocation2 + $0x2a0] sm:$0xff]
    %v1346 = vld [vmem:[#allocation2 + $0x2a8] sm:$0xff]
    %v1347 = vld [vmem:[#allocation2 + $0x2b0] sm:$0xff]
    %v1348 = vld [vmem:[#allocation2 + $0x2b8] sm:$0xff]
    %v1349 = vld [vmem:[#allocation2 + $0x2c0] sm:$0xff]
    %v1350 = vld [vmem:[#allocation2 + $0x2c8] sm:$0xff]
    %v1351 = vld [vmem:[#allocation2 + $0x2d0] sm:$0xff]
    %v1352 = vld [vmem:[#allocation2 + $0x2d8] sm:$0xff]
    %v1353 = vld [vmem:[#allocation2 + $0x2e0] sm:$0xff]
    %v1354 = vld [vmem:[#allocation2 + $0x2e8] sm:$0xff]
    %v1355 = vld [vmem:[#allocation2 + $0x2f0] sm:$0xff]
    %v1356 = vld [vmem:[#allocation2 + $0x2f8] sm:$0xff]
    %v1357 = vld [vmem:[#allocation2 + $0x300] sm:$0xff]
    %v1358 = vld [vmem:[#allocation2 + $0x308] sm:$0xff]
    %v1359 = vld [vmem:[#allocation2 + $0x310] sm:$0xff]
    %v1360 = vld [vmem:[#allocation2 + $0x318] sm:$0xff]
    %v1361 = vld [vmem:[#allocation2 + $0x320] sm:$0xff]
    %v1362 = vld [vmem:[#allocation2 + $0x328] sm:$0xff]
    %v1363 = vld [vmem:[#allocation2 + $0x330] sm:$0xff]
    %v1364 = vld [vmem:[#allocation2 + $0x338] sm:$0xff]
    %v1365 = vld [vmem:[#allocation2 + $0x340] sm:$0xff]
    %v1366 = vld [vmem:[#allocation2 + $0x348] sm:$0xff]
    %v1367 = vld [vmem:[#allocation2 + $0x350] sm:$0xff]
    %v1368 = vld [vmem:[#allocation2 + $0x358] sm:$0xff]
    %v1369 = vld [vmem:[#allocation2 + $0x360] sm:$0xff]
    %v1370 = vld [vmem:[#allocation2 + $0x368] sm:$0xff]
    %v1371 = vld [vmem:[#allocation2 + $0x370] sm:$0xff]
    %v1372 = vld [vmem:[#allocation2 + $0x378] sm:$0xff]
    %v1373 = vld [vmem:[#allocation2 + $0x380] sm:$0xff]
    %v1374 = vld [vmem:[#allocation2 + $0x388] sm:$0xff]
    %v1375 = vld [vmem:[#allocation2 + $0x390] sm:$0xff]
    %v1376 = vld [vmem:[#allocation2 + $0x398] sm:$0xff]
    %v1377 = vld [vmem:[#allocation2 + $0x3a0] sm:$0xff]
    %v1378 = vld [vmem:[#allocation2 + $0x3a8] sm:$0xff]
    %v1379 = vld [vmem:[#allocation2 + $0x3b0] sm:$0xff]
    %v1380 = vld [vmem:[#allocation2 + $0x3b8] sm:$0xff]
    %v1381 = vld [vmem:[#allocation2 + $0x3c0] sm:$0xff]
    %v1382 = vld [vmem:[#allocation2 + $0x3c8] sm:$0xff]
    %v1383 = vld [vmem:[#allocation2 + $0x3d0] sm:$0xff]
    %v1384 = vld [vmem:[#allocation2 + $0x3d8] sm:$0xff]
    %v1385 = vld [vmem:[#allocation2 + $0x3e0] sm:$0xff]
    %v1386 = vld [vmem:[#allocation2 + $0x3e8] sm:$0xff]
    %v1387 = vld [vmem:[#allocation2 + $0x3f0] sm:$0xff]
    %v1388 = vld [vmem:[#allocation2 + $0x3f8] sm:$0xff]
    %v1389 = vld [vmem:[%s6] sm:$0xff]
    %v1391 = vlaneseq
    %v1392 = vshrl.u32 %v1391, 7
    %v1393 = vsub.s32 0, %v1392
    %v1394 = vrot.slane %v1389, %v1393
    %v1395 = vlaneseq
    %v1396 = vshrl.u32 %v1395, 7
    %v1397 = vsub.s32 1, %v1396
    %v1398 = vrot.slane %v1389, %v1397
    %v1399 = vlaneseq
    %v1400 = vshrl.u32 %v1399, 7
    %v1401 = vsub.s32 2, %v1400
    %v1402 = vrot.slane %v1389, %v1401
    %v1403 = vlaneseq
    %v1404 = vshrl.u32 %v1403, 7
    %v1405 = vsub.s32 3, %v1404
    %v1406 = vrot.slane %v1389, %v1405
    %v1407 = vlaneseq
    %v1408 = vshrl.u32 %v1407, 7
    %v1409 = vsub.s32 4, %v1408
    %v1410 = vrot.slane %v1389, %v1409
    %v1411 = vlaneseq
    %v1412 = vshrl.u32 %v1411, 7
    %v1413 = vsub.s32 5, %v1412
    %v1414 = vrot.slane %v1389, %v1413
    %v1415 = vlaneseq
    %v1416 = vshrl.u32 %v1415, 7
    %v1417 = vsub.s32 6, %v1416
    %v1418 = vrot.slane %v1389, %v1417
    %v1419 = vlaneseq
    %v1420 = vshrl.u32 %v1419, 7
    %v1421 = vsub.s32 7, %v1420
    %v1422 = vrot.slane %v1389, %v1421
    %1431 = vmatprep.subr.mxu0 %v1382
    %1432 = vmatpush1.msra.mxu0 %v1381
    %1433 = vmatprep.subr.mxu0 %v1374
    %1434 = vmatpush1.msra.mxu0 %v1373
    %1435 = vmatprep.subr.mxu0 %v1366
    %1436 = vmatpush1.msra.mxu0 %v1365
    %1437 = vmatprep.subr.mxu0 %v1358
    %1438 = vmatpush1.msra.mxu0 %v1357
    %1439 = vmatprep.subr.mxu0 %v1350
    %1440 = vmatpush1.msra.mxu0 %v1349
    %1441 = vmatprep.subr.mxu0 %v1342
    %1442 = vmatpush1.msra.mxu0 %v1341
    %1443 = vmatprep.subr.mxu0 %v1334
    %1444 = vmatpush1.msra.mxu0 %v1333
    %1445 = vmatprep.subr.mxu0 %v1326
    %1446 = vmatpush1.msra.mxu0 %v1325
    %1447 = vmatprep.subr.mxu0 %v1318
    %1448 = vmatpush1.msra.mxu0 %v1317
    %1449 = vmatprep.subr.mxu0 %v1310
    %1450 = vmatpush1.msra.mxu0 %v1309
    %1451 = vmatprep.subr.mxu0 %v1302
    %1452 = vmatpush1.msra.mxu0 %v1301
    %1453 = vmatprep.subr.mxu0 %v1294
    %1454 = vmatpush1.msra.mxu0 %v1293
    %1455 = vmatprep.subr.mxu0 %v1286
    %1456 = vmatpush1.msra.mxu0 %v1285
    %1457 = vmatprep.subr.mxu0 %v1278
    %1458 = vmatpush1.msra.mxu0 %v1277
    %1459 = vmatprep.subr.mxu0 %v1270
    %1460 = vmatpush1.msra.mxu0 %v1269
    %1461 = vmatprep.subr.mxu0 %v1262
    %1462 = vmatpush1.msra.mxu0 %v1261
    %1463 = vmatprep.subr.mxu0 0.0
    %1464 = vmatpush2.msra.mxu0 0.0
    %1465 = vmatprep.subr.mxu0 0.0
    %1466 = vmatpush2.msra.mxu0 0.0
    %1467 = vmatprep.subr.mxu0 0.0
    %1468 = vmatpush2.msra.mxu0 0.0
    %1469 = vmatprep.subr.mxu0 0.0
    %1470 = vmatpush2.msra.mxu0 0.0
    %1471 = vmatprep.subr.mxu0 0.0
    %1472 = vmatpush2.msra.mxu0 0.0
    %1473 = vmatprep.subr.mxu0 0.0
    %1474 = vmatpush2.msra.mxu0 0.0
    %1475 = vmatprep.subr.mxu0 0.0
    %1476 = vmatpush2.msra.mxu0 0.0
    %1477 = vmatprep.subr.mxu0 0.0
    %1478 = vmatpush2.msra.mxu0 0.0
    %1479 = vmatprep.subr.mxu0 0.0
    %1480 = vmatpush2.msra.mxu0 0.0
    %1481 = vmatprep.subr.mxu0 0.0
    %1482 = vmatpush2.msra.mxu0 0.0
    %1483 = vmatprep.subr.mxu0 0.0
    %1484 = vmatpush2.msra.mxu0 0.0
    %1485 = vmatprep.subr.mxu0 0.0
    %1486 = vmatpush2.msra.mxu0 0.0
    %1487 = vmatprep.subr.mxu0 0.0
    %1488 = vmatpush2.msra.mxu0 0.0
    %1489 = vmatprep.subr.mxu0 0.0
    %1490 = vmatpush2.msra.mxu0 0.0
    %1491 = vmatprep.subr.mxu0 0.0
    %1492 = vmatpush2.msra.mxu0 0.0
    %1493 = vmatprep.subr.mxu0 0.0
    %1494 = vmatpush2.msra.mxu0 0.0
    %1495 = vmatprep.mubr.f32.mxu0 0.0
    %1496 = vmatmul.mubr.f32.gmra.mxu0 %v1229
    %v1497 = vpop.f32.mrf.mxu0
    %v1498 = vadd.f32 %v1394, %v1497
    %v1499 = vpop.f32.mrf.mxu0
    %v1500 = vadd.f32 %v1398, %v1499
    %1501 = vmatprep.mubr.f32.mxu0 0.0
    %1502 = vmatmul.mubr.f32.gmra.mxu0 %v1230
    %v1503 = vpop.f32.mrf.mxu0
    %v1504 = vadd.f32 %v1394, %v1503
    %v1505 = vpop.f32.mrf.mxu0
    %v1506 = vadd.f32 %v1398, %v1505
    %1507 = vmatprep.mubr.f32.mxu0 0.0
    %1508 = vmatmul.mubr.f32.gmra.mxu0 %v1231
    %v1509 = vpop.f32.mrf.mxu0
    %v1510 = vadd.f32 %v1394, %v1509
    %v1511 = vpop.f32.mrf.mxu0
    %v1512 = vadd.f32 %v1398, %v1511
    %1513 = vmatprep.mubr.f32.mxu0 0.0
    %1514 = vmatmul.mubr.f32.gmra.mxu0 %v1232
    %v1515 = vpop.f32.mrf.mxu0
    %v1516 = vadd.f32 %v1394, %v1515
    %v1517 = vpop.f32.mrf.mxu0
    %v1518 = vadd.f32 %v1398, %v1517
    %1519 = vmatprep.mubr.f32.mxu0 0.0
    %1520 = vmatmul.mubr.f32.gmra.mxu0 %v1233
    %v1521 = vpop.f32.mrf.mxu0
    %v1522 = vadd.f32 %v1394, %v1521
    %v1523 = vpop.f32.mrf.mxu0
    %v1524 = vadd.f32 %v1398, %v1523
    %1525 = vmatprep.mubr.f32.mxu0 0.0
    %1526 = vmatmul.mubr.f32.gmra.mxu0 %v1234
    %v1527 = vpop.f32.mrf.mxu0
    %v1528 = vadd.f32 %v1394, %v1527
    %v1529 = vpop.f32.mrf.mxu0
    %v1530 = vadd.f32 %v1398, %v1529
    %1531 = vmatprep.mubr.f32.mxu0 0.0
    %1532 = vmatmul.mubr.f32.gmra.mxu0 %v1235
    %v1533 = vpop.f32.mrf.mxu0
    %v1534 = vadd.f32 %v1394, %v1533
    %v1535 = vpop.f32.mrf.mxu0
    %v1536 = vadd.f32 %v1398, %v1535
    %1537 = vmatprep.mubr.f32.mxu0 0.0
    %1538 = vmatmul.mubr.f32.gmra.mxu0 %v1236
    %v1539 = vpop.f32.mrf.mxu0
    %v1540 = vadd.f32 %v1394, %v1539
    %v1541 = vpop.f32.mrf.mxu0
    %v1542 = vadd.f32 %v1398, %v1541
    %1543 = vmatprep.mubr.f32.mxu0 0.0
    %1544 = vmatmul.mubr.f32.gmra.mxu0 %v1237
    %v1545 = vpop.f32.mrf.mxu0
    %v1546 = vadd.f32 %v1394, %v1545
    %v1547 = vpop.f32.mrf.mxu0
    %v1548 = vadd.f32 %v1398, %v1547
    %1549 = vmatprep.mubr.f32.mxu0 0.0
    %1550 = vmatmul.mubr.f32.gmra.mxu0 %v1238
    %v1551 = vpop.f32.mrf.mxu0
    %v1552 = vadd.f32 %v1394, %v1551
    %v1553 = vpop.f32.mrf.mxu0
    %v1554 = vadd.f32 %v1398, %v1553
    %1555 = vmatprep.mubr.f32.mxu0 0.0
    %1556 = vmatmul.mubr.f32.gmra.mxu0 %v1239
    %v1557 = vpop.f32.mrf.mxu0
    %v1558 = vadd.f32 %v1394, %v1557
    %v1559 = vpop.f32.mrf.mxu0
    %v1560 = vadd.f32 %v1398, %v1559
    %1561 = vmatprep.mubr.f32.mxu0 0.0
    %1562 = vmatmul.mubr.f32.gmra.mxu0 %v1240
    %v1563 = vpop.f32.mrf.mxu0
    %v1564 = vadd.f32 %v1394, %v1563
    %v1565 = vpop.f32.mrf.mxu0
    %v1566 = vadd.f32 %v1398, %v1565
    %1567 = vmatprep.mubr.f32.mxu0 0.0
    %1568 = vmatmul.mubr.f32.gmra.mxu0 %v1241
    %v1569 = vpop.f32.mrf.mxu0
    %v1570 = vadd.f32 %v1394, %v1569
    %v1571 = vpop.f32.mrf.mxu0
    %v1572 = vadd.f32 %v1398, %v1571
    %1573 = vmatprep.mubr.f32.mxu0 0.0
    %1574 = vmatmul.mubr.f32.gmra.mxu0 %v1242
    %v1575 = vpop.f32.mrf.mxu0
    %v1576 = vadd.f32 %v1394, %v1575
    %v1577 = vpop.f32.mrf.mxu0
    %v1578 = vadd.f32 %v1398, %v1577
    %1579 = vmatprep.mubr.f32.mxu0 0.0
    %1580 = vmatmul.mubr.f32.gmra.mxu0 %v1243
    %v1581 = vpop.f32.mrf.mxu0
    %v1582 = vadd.f32 %v1394, %v1581
    %v1583 = vpop.f32.mrf.mxu0
    %v1584 = vadd.f32 %v1398, %v1583
    %1585 = vmatprep.mubr.f32.mxu0 0.0
    %1586 = vmatmul.mubr.f32.gmra.mxu0 %v1244
    %v1587 = vpop.f32.mrf.mxu0
    %v1588 = vadd.f32 %v1394, %v1587
    %v1589 = vpop.f32.mrf.mxu0
    %v1590 = vadd.f32 %v1398, %v1589
    %1591 = vmatprep.mubr.f32.mxu0 0.0
    %1592 = vmatmul.mubr.f32.gmra.mxu0 %v1245
    %v1593 = vpop.f32.mrf.mxu0
    %v1594 = vadd.f32 %v1394, %v1593
    %v1595 = vpop.f32.mrf.mxu0
    %v1596 = vadd.f32 %v1398, %v1595
    %1597 = vmatprep.mubr.f32.mxu0 0.0
    %1598 = vmatmul.mubr.f32.gmra.mxu0 %v1246
    %v1599 = vpop.f32.mrf.mxu0
    %v1600 = vadd.f32 %v1394, %v1599
    %v1601 = vpop.f32.mrf.mxu0
    %v1602 = vadd.f32 %v1398, %v1601
    %1603 = vmatprep.mubr.f32.mxu0 0.0
    %1604 = vmatmul.mubr.f32.gmra.mxu0 %v1247
    %v1605 = vpop.f32.mrf.mxu0
    %v1606 = vadd.f32 %v1394, %v1605
    %v1607 = vpop.f32.mrf.mxu0
    %v1608 = vadd.f32 %v1398, %v1607
    %1609 = vmatprep.mubr.f32.mxu0 0.0
    %1610 = vmatmul.mubr.f32.gmra.mxu0 %v1248
    %v1611 = vpop.f32.mrf.mxu0
    %v1612 = vadd.f32 %v1394, %v1611
    %v1613 = vpop.f32.mrf.mxu0
    %v1614 = vadd.f32 %v1398, %v1613
    %1615 = vmatprep.mubr.f32.mxu0 0.0
    %1616 = vmatmul.mubr.f32.gmra.mxu0 %v1249
    %v1617 = vpop.f32.mrf.mxu0
    %v1618 = vadd.f32 %v1394, %v1617
    %v1619 = vpop.f32.mrf.mxu0
    %v1620 = vadd.f32 %v1398, %v1619
    %1621 = vmatprep.mubr.f32.mxu0 0.0
    %1622 = vmatmul.mubr.f32.gmra.mxu0 %v1250
    %v1623 = vpop.f32.mrf.mxu0
    %v1624 = vadd.f32 %v1394, %v1623
    %v1625 = vpop.f32.mrf.mxu0
    %v1626 = vadd.f32 %v1398, %v1625
    %1627 = vmatprep.mubr.f32.mxu0 0.0
    %1628 = vmatmul.mubr.f32.gmra.mxu0 %v1251
    %v1629 = vpop.f32.mrf.mxu0
    %v1630 = vadd.f32 %v1394, %v1629
    %v1631 = vpop.f32.mrf.mxu0
    %v1632 = vadd.f32 %v1398, %v1631
    %1633 = vmatprep.mubr.f32.mxu0 0.0
    %1634 = vmatmul.mubr.f32.gmra.mxu0 %v1252
    %v1635 = vpop.f32.mrf.mxu0
    %v1636 = vadd.f32 %v1394, %v1635
    %v1637 = vpop.f32.mrf.mxu0
    %v1638 = vadd.f32 %v1398, %v1637
    %1639 = vmatprep.mubr.f32.mxu0 0.0
    %1640 = vmatmul.mubr.f32.gmra.mxu0 %v1253
    %v1641 = vpop.f32.mrf.mxu0
    %v1642 = vadd.f32 %v1394, %v1641
    %v1643 = vpop.f32.mrf.mxu0
    %v1644 = vadd.f32 %v1398, %v1643
    %1645 = vmatprep.mubr.f32.mxu0 0.0
    %1646 = vmatmul.mubr.f32.gmra.mxu0 %v1254
    %v1647 = vpop.f32.mrf.mxu0
    %v1648 = vadd.f32 %v1394, %v1647
    %v1649 = vpop.f32.mrf.mxu0
    %v1650 = vadd.f32 %v1398, %v1649
    %1651 = vmatprep.mubr.f32.mxu0 0.0
    %1652 = vmatmul.mubr.f32.gmra.mxu0 %v1255
    %v1653 = vpop.f32.mrf.mxu0
    %v1654 = vadd.f32 %v1394, %v1653
    %v1655 = vpop.f32.mrf.mxu0
    %v1656 = vadd.f32 %v1398, %v1655
    %1657 = vmatprep.mubr.f32.mxu0 0.0
    %1658 = vmatmul.mubr.f32.gmra.mxu0 %v1256
    %v1659 = vpop.f32.mrf.mxu0
    %v1660 = vadd.f32 %v1394, %v1659
    %v1661 = vpop.f32.mrf.mxu0
    %v1662 = vadd.f32 %v1398, %v1661
    %1663 = vmatprep.mubr.f32.mxu0 0.0
    %1664 = vmatmul.mubr.f32.gmra.mxu0 %v1257
    %v1665 = vpop.f32.mrf.mxu0
    %v1666 = vadd.f32 %v1394, %v1665
    %v1667 = vpop.f32.mrf.mxu0
    %v1668 = vadd.f32 %v1398, %v1667
    %1669 = vmatprep.mubr.f32.mxu0 0.0
    %1670 = vmatmul.mubr.f32.gmra.mxu0 %v1258
    %v1671 = vpop.f32.mrf.mxu0
    %v1672 = vadd.f32 %v1394, %v1671
    %v1673 = vpop.f32.mrf.mxu0
    %v1674 = vadd.f32 %v1398, %v1673
    %1675 = vmatprep.mubr.f32.mxu0 0.0
    %1676 = vmatmul.mubr.f32.gmra.mxu0 %v1259
    %v1677 = vpop.f32.mrf.mxu0
    %v1678 = vadd.f32 %v1394, %v1677
    %v1679 = vpop.f32.mrf.mxu0
    %v1680 = vadd.f32 %v1398, %v1679
    %1681 = vmatprep.mubr.f32.mxu0 0.0
    %1682 = vmatmul.mubr.f32.gmra.mxu0 %v1260
    %v1683 = vpop.f32.mrf.mxu0
    %v1684 = vadd.f32 %v1394, %v1683
    %v1685 = vpop.f32.mrf.mxu0
    %v1686 = vadd.f32 %v1398, %v1685
    %1687 = vdwg.mxu0
    %1688 = vmatprep.subr.mxu0 %v1384
    %1689 = vmatpush1.msra.mxu0 %v1383
    %1690 = vmatprep.subr.mxu0 %v1376
    %1691 = vmatpush1.msra.mxu0 %v1375
    %1692 = vmatprep.subr.mxu0 %v1368
    %1693 = vmatpush1.msra.mxu0 %v1367
    %1694 = vmatprep.subr.mxu0 %v1360
    %1695 = vmatpush1.msra.mxu0 %v1359
    %1696 = vmatprep.subr.mxu0 %v1352
    %1697 = vmatpush1.msra.mxu0 %v1351
    %1698 = vmatprep.subr.mxu0 %v1344
    %1699 = vmatpush1.msra.mxu0 %v1343
    %1700 = vmatprep.subr.mxu0 %v1336
    %1701 = vmatpush1.msra.mxu0 %v1335
    %1702 = vmatprep.subr.mxu0 %v1328
    %1703 = vmatpush1.msra.mxu0 %v1327
    %1704 = vmatprep.subr.mxu0 %v1320
    %1705 = vmatpush1.msra.mxu0 %v1319
    %1706 = vmatprep.subr.mxu0 %v1312
    %1707 = vmatpush1.msra.mxu0 %v1311
    %1708 = vmatprep.subr.mxu0 %v1304
    %1709 = vmatpush1.msra.mxu0 %v1303
    %1710 = vmatprep.subr.mxu0 %v1296
    %1711 = vmatpush1.msra.mxu0 %v1295
    %1712 = vmatprep.subr.mxu0 %v1288
    %1713 = vmatpush1.msra.mxu0 %v1287
    %1714 = vmatprep.subr.mxu0 %v1280
    %1715 = vmatpush1.msra.mxu0 %v1279
    %1716 = vmatprep.subr.mxu0 %v1272
    %1717 = vmatpush1.msra.mxu0 %v1271
    %1718 = vmatprep.subr.mxu0 %v1264
    %1719 = vmatpush1.msra.mxu0 %v1263
    %1720 = vmatprep.subr.mxu0 0.0
    %1721 = vmatpush2.msra.mxu0 0.0
    %1722 = vmatprep.subr.mxu0 0.0
    %1723 = vmatpush2.msra.mxu0 0.0
    %1724 = vmatprep.subr.mxu0 0.0
    %1725 = vmatpush2.msra.mxu0 0.0
    %1726 = vmatprep.subr.mxu0 0.0
    %1727 = vmatpush2.msra.mxu0 0.0
    %1728 = vmatprep.subr.mxu0 0.0
    %1729 = vmatpush2.msra.mxu0 0.0
    %1730 = vmatprep.subr.mxu0 0.0
    %1731 = vmatpush2.msra.mxu0 0.0
    %1732 = vmatprep.subr.mxu0 0.0
    %1733 = vmatpush2.msra.mxu0 0.0
    %1734 = vmatprep.subr.mxu0 0.0
    %1735 = vmatpush2.msra.mxu0 0.0
    %1736 = vmatprep.subr.mxu0 0.0
    %1737 = vmatpush2.msra.mxu0 0.0
    %1738 = vmatprep.subr.mxu0 0.0
    %1739 = vmatpush2.msra.mxu0 0.0
    %1740 = vmatprep.subr.mxu0 0.0
    %1741 = vmatpush2.msra.mxu0 0.0
    %1742 = vmatprep.subr.mxu0 0.0
    %1743 = vmatpush2.msra.mxu0 0.0
    %1744 = vmatprep.subr.mxu0 0.0
    %1745 = vmatpush2.msra.mxu0 0.0
    %1746 = vmatprep.subr.mxu0 0.0
    %1747 = vmatpush2.msra.mxu0 0.0
    %1748 = vmatprep.subr.mxu0 0.0
    %1749 = vmatpush2.msra.mxu0 0.0
    %1750 = vmatprep.subr.mxu0 0.0
    %1751 = vmatpush2.msra.mxu0 0.0
    %1752 = vmatprep.mubr.f32.mxu0 0.0
    %1753 = vmatmul.mubr.f32.gmra.mxu0 %v1229
    %v1754 = vpop.f32.mrf.mxu0
    %v1755 = vadd.f32 %v1402, %v1754
    %v1756 = vpop.f32.mrf.mxu0
    %v1757 = vadd.f32 %v1406, %v1756
    %1758 = vmatprep.mubr.f32.mxu0 0.0
    %1759 = vmatmul.mubr.f32.gmra.mxu0 %v1230
    %v1760 = vpop.f32.mrf.mxu0
    %v1761 = vadd.f32 %v1402, %v1760
    %v1762 = vpop.f32.mrf.mxu0
    %v1763 = vadd.f32 %v1406, %v1762
    %1764 = vmatprep.mubr.f32.mxu0 0.0
    %1765 = vmatmul.mubr.f32.gmra.mxu0 %v1231
    %v1766 = vpop.f32.mrf.mxu0
    %v1767 = vadd.f32 %v1402, %v1766
    %v1768 = vpop.f32.mrf.mxu0
    %v1769 = vadd.f32 %v1406, %v1768
    %1770 = vmatprep.mubr.f32.mxu0 0.0
    %1771 = vmatmul.mubr.f32.gmra.mxu0 %v1232
    %v1772 = vpop.f32.mrf.mxu0
    %v1773 = vadd.f32 %v1402, %v1772
    %v1774 = vpop.f32.mrf.mxu0
    %v1775 = vadd.f32 %v1406, %v1774
    %1776 = vmatprep.mubr.f32.mxu0 0.0
    %1777 = vmatmul.mubr.f32.gmra.mxu0 %v1233
    %v1778 = vpop.f32.mrf.mxu0
    %v1779 = vadd.f32 %v1402, %v1778
    %v1780 = vpop.f32.mrf.mxu0
    %v1781 = vadd.f32 %v1406, %v1780
    %1782 = vmatprep.mubr.f32.mxu0 0.0
    %1783 = vmatmul.mubr.f32.gmra.mxu0 %v1234
    %v1784 = vpop.f32.mrf.mxu0
    %v1785 = vadd.f32 %v1402, %v1784
    %v1786 = vpop.f32.mrf.mxu0
    %v1787 = vadd.f32 %v1406, %v1786
    %1788 = vmatprep.mubr.f32.mxu0 0.0
    %1789 = vmatmul.mubr.f32.gmra.mxu0 %v1235
    %v1790 = vpop.f32.mrf.mxu0
    %v1791 = vadd.f32 %v1402, %v1790
    %v1792 = vpop.f32.mrf.mxu0
    %v1793 = vadd.f32 %v1406, %v1792
    %1794 = vmatprep.mubr.f32.mxu0 0.0
    %1795 = vmatmul.mubr.f32.gmra.mxu0 %v1236
    %v1796 = vpop.f32.mrf.mxu0
    %v1797 = vadd.f32 %v1402, %v1796
    %v1798 = vpop.f32.mrf.mxu0
    %v1799 = vadd.f32 %v1406, %v1798
    %1800 = vmatprep.mubr.f32.mxu0 0.0
    %1801 = vmatmul.mubr.f32.gmra.mxu0 %v1237
    %v1802 = vpop.f32.mrf.mxu0
    %v1803 = vadd.f32 %v1402, %v1802
    %v1804 = vpop.f32.mrf.mxu0
    %v1805 = vadd.f32 %v1406, %v1804
    %1806 = vmatprep.mubr.f32.mxu0 0.0
    %1807 = vmatmul.mubr.f32.gmra.mxu0 %v1238
    %v1808 = vpop.f32.mrf.mxu0
    %v1809 = vadd.f32 %v1402, %v1808
    %v1810 = vpop.f32.mrf.mxu0
    %v1811 = vadd.f32 %v1406, %v1810
    %1812 = vmatprep.mubr.f32.mxu0 0.0
    %1813 = vmatmul.mubr.f32.gmra.mxu0 %v1239
    %v1814 = vpop.f32.mrf.mxu0
    %v1815 = vadd.f32 %v1402, %v1814
    %v1816 = vpop.f32.mrf.mxu0
    %v1817 = vadd.f32 %v1406, %v1816
    %1818 = vmatprep.mubr.f32.mxu0 0.0
    %1819 = vmatmul.mubr.f32.gmra.mxu0 %v1240
    %v1820 = vpop.f32.mrf.mxu0
    %v1821 = vadd.f32 %v1402, %v1820
    %v1822 = vpop.f32.mrf.mxu0
    %v1823 = vadd.f32 %v1406, %v1822
    %1824 = vmatprep.mubr.f32.mxu0 0.0
    %1825 = vmatmul.mubr.f32.gmra.mxu0 %v1241
    %v1826 = vpop.f32.mrf.mxu0
    %v1827 = vadd.f32 %v1402, %v1826
    %v1828 = vpop.f32.mrf.mxu0
    %v1829 = vadd.f32 %v1406, %v1828
    %1830 = vmatprep.mubr.f32.mxu0 0.0
    %1831 = vmatmul.mubr.f32.gmra.mxu0 %v1242
    %v1832 = vpop.f32.mrf.mxu0
    %v1833 = vadd.f32 %v1402, %v1832
    %v1834 = vpop.f32.mrf.mxu0
    %v1835 = vadd.f32 %v1406, %v1834
    %1836 = vmatprep.mubr.f32.mxu0 0.0
    %1837 = vmatmul.mubr.f32.gmra.mxu0 %v1243
    %v1838 = vpop.f32.mrf.mxu0
    %v1839 = vadd.f32 %v1402, %v1838
    %v1840 = vpop.f32.mrf.mxu0
    %v1841 = vadd.f32 %v1406, %v1840
    %1842 = vmatprep.mubr.f32.mxu0 0.0
    %1843 = vmatmul.mubr.f32.gmra.mxu0 %v1244
    %v1844 = vpop.f32.mrf.mxu0
    %v1845 = vadd.f32 %v1402, %v1844
    %v1846 = vpop.f32.mrf.mxu0
    %v1847 = vadd.f32 %v1406, %v1846
    %1848 = vmatprep.mubr.f32.mxu0 0.0
    %1849 = vmatmul.mubr.f32.gmra.mxu0 %v1245
    %v1850 = vpop.f32.mrf.mxu0
    %v1851 = vadd.f32 %v1402, %v1850
    %v1852 = vpop.f32.mrf.mxu0
    %v1853 = vadd.f32 %v1406, %v1852
    %1854 = vmatprep.mubr.f32.mxu0 0.0
    %1855 = vmatmul.mubr.f32.gmra.mxu0 %v1246
    %v1856 = vpop.f32.mrf.mxu0
    %v1857 = vadd.f32 %v1402, %v1856
    %v1858 = vpop.f32.mrf.mxu0
    %v1859 = vadd.f32 %v1406, %v1858
    %1860 = vmatprep.mubr.f32.mxu0 0.0
    %1861 = vmatmul.mubr.f32.gmra.mxu0 %v1247
    %v1862 = vpop.f32.mrf.mxu0
    %v1863 = vadd.f32 %v1402, %v1862
    %v1864 = vpop.f32.mrf.mxu0
    %v1865 = vadd.f32 %v1406, %v1864
    %1866 = vmatprep.mubr.f32.mxu0 0.0
    %1867 = vmatmul.mubr.f32.gmra.mxu0 %v1248
    %v1868 = vpop.f32.mrf.mxu0
    %v1869 = vadd.f32 %v1402, %v1868
    %v1870 = vpop.f32.mrf.mxu0
    %v1871 = vadd.f32 %v1406, %v1870
    %1872 = vmatprep.mubr.f32.mxu0 0.0
    %1873 = vmatmul.mubr.f32.gmra.mxu0 %v1249
    %v1874 = vpop.f32.mrf.mxu0
    %v1875 = vadd.f32 %v1402, %v1874
    %v1876 = vpop.f32.mrf.mxu0
    %v1877 = vadd.f32 %v1406, %v1876
    %1878 = vmatprep.mubr.f32.mxu0 0.0
    %1879 = vmatmul.mubr.f32.gmra.mxu0 %v1250
    %v1880 = vpop.f32.mrf.mxu0
    %v1881 = vadd.f32 %v1402, %v1880
    %v1882 = vpop.f32.mrf.mxu0
    %v1883 = vadd.f32 %v1406, %v1882
    %1884 = vmatprep.mubr.f32.mxu0 0.0
    %1885 = vmatmul.mubr.f32.gmra.mxu0 %v1251
    %v1886 = vpop.f32.mrf.mxu0
    %v1887 = vadd.f32 %v1402, %v1886
    %v1888 = vpop.f32.mrf.mxu0
    %v1889 = vadd.f32 %v1406, %v1888
    %1890 = vmatprep.mubr.f32.mxu0 0.0
    %1891 = vmatmul.mubr.f32.gmra.mxu0 %v1252
    %v1892 = vpop.f32.mrf.mxu0
    %v1893 = vadd.f32 %v1402, %v1892
    %v1894 = vpop.f32.mrf.mxu0
    %v1895 = vadd.f32 %v1406, %v1894
    %1896 = vmatprep.mubr.f32.mxu0 0.0
    %1897 = vmatmul.mubr.f32.gmra.mxu0 %v1253
    %v1898 = vpop.f32.mrf.mxu0
    %v1899 = vadd.f32 %v1402, %v1898
    %v1900 = vpop.f32.mrf.mxu0
    %v1901 = vadd.f32 %v1406, %v1900
    %1902 = vmatprep.mubr.f32.mxu0 0.0
    %1903 = vmatmul.mubr.f32.gmra.mxu0 %v1254
    %v1904 = vpop.f32.mrf.mxu0
    %v1905 = vadd.f32 %v1402, %v1904
    %v1906 = vpop.f32.mrf.mxu0
    %v1907 = vadd.f32 %v1406, %v1906
    %1908 = vmatprep.mubr.f32.mxu0 0.0
    %1909 = vmatmul.mubr.f32.gmra.mxu0 %v1255
    %v1910 = vpop.f32.mrf.mxu0
    %v1911 = vadd.f32 %v1402, %v1910
    %v1912 = vpop.f32.mrf.mxu0
    %v1913 = vadd.f32 %v1406, %v1912
    %1914 = vmatprep.mubr.f32.mxu0 0.0
    %1915 = vmatmul.mubr.f32.gmra.mxu0 %v1256
    %v1916 = vpop.f32.mrf.mxu0
    %v1917 = vadd.f32 %v1402, %v1916
    %v1918 = vpop.f32.mrf.mxu0
    %v1919 = vadd.f32 %v1406, %v1918
    %1920 = vmatprep.mubr.f32.mxu0 0.0
    %1921 = vmatmul.mubr.f32.gmra.mxu0 %v1257
    %v1922 = vpop.f32.mrf.mxu0
    %v1923 = vadd.f32 %v1402, %v1922
    %v1924 = vpop.f32.mrf.mxu0
    %v1925 = vadd.f32 %v1406, %v1924
    %1926 = vmatprep.mubr.f32.mxu0 0.0
    %1927 = vmatmul.mubr.f32.gmra.mxu0 %v1258
    %v1928 = vpop.f32.mrf.mxu0
    %v1929 = vadd.f32 %v1402, %v1928
    %v1930 = vpop.f32.mrf.mxu0
    %v1931 = vadd.f32 %v1406, %v1930
    %1932 = vmatprep.mubr.f32.mxu0 0.0
    %1933 = vmatmul.mubr.f32.gmra.mxu0 %v1259
    %v1934 = vpop.f32.mrf.mxu0
    %v1935 = vadd.f32 %v1402, %v1934
    %v1936 = vpop.f32.mrf.mxu0
    %v1937 = vadd.f32 %v1406, %v1936
    %1938 = vmatprep.mubr.f32.mxu0 0.0
    %1939 = vmatmul.mubr.f32.gmra.mxu0 %v1260
    %v1940 = vpop.f32.mrf.mxu0
    %v1941 = vadd.f32 %v1402, %v1940
    %v1942 = vpop.f32.mrf.mxu0
    %v1943 = vadd.f32 %v1406, %v1942
    %1944 = vdwg.mxu0
    %1945 = vmatprep.subr.mxu0 %v1386
    %1946 = vmatpush1.msra.mxu0 %v1385
    %1947 = vmatprep.subr.mxu0 %v1378
    %1948 = vmatpush1.msra.mxu0 %v1377
    %1949 = vmatprep.subr.mxu0 %v1370
    %1950 = vmatpush1.msra.mxu0 %v1369
    %1951 = vmatprep.subr.mxu0 %v1362
    %1952 = vmatpush1.msra.mxu0 %v1361
    %1953 = vmatprep.subr.mxu0 %v1354
    %1954 = vmatpush1.msra.mxu0 %v1353
    %1955 = vmatprep.subr.mxu0 %v1346
    %1956 = vmatpush1.msra.mxu0 %v1345
    %1957 = vmatprep.subr.mxu0 %v1338
    %1958 = vmatpush1.msra.mxu0 %v1337
    %1959 = vmatprep.subr.mxu0 %v1330
    %1960 = vmatpush1.msra.mxu0 %v1329
    %1961 = vmatprep.subr.mxu0 %v1322
    %1962 = vmatpush1.msra.mxu0 %v1321
    %1963 = vmatprep.subr.mxu0 %v1314
    %1964 = vmatpush1.msra.mxu0 %v1313
    %1965 = vmatprep.subr.mxu0 %v1306
    %1966 = vmatpush1.msra.mxu0 %v1305
    %1967 = vmatprep.subr.mxu0 %v1298
    %1968 = vmatpush1.msra.mxu0 %v1297
    %1969 = vmatprep.subr.mxu0 %v1290
    %1970 = vmatpush1.msra.mxu0 %v1289
    %1971 = vmatprep.subr.mxu0 %v1282
    %1972 = vmatpush1.msra.mxu0 %v1281
    %1973 = vmatprep.subr.mxu0 %v1274
    %1974 = vmatpush1.msra.mxu0 %v1273
    %1975 = vmatprep.subr.mxu0 %v1266
    %1976 = vmatpush1.msra.mxu0 %v1265
    %1977 = vmatprep.subr.mxu0 0.0
    %1978 = vmatpush2.msra.mxu0 0.0
    %1979 = vmatprep.subr.mxu0 0.0
    %1980 = vmatpush2.msra.mxu0 0.0
    %1981 = vmatprep.subr.mxu0 0.0
    %1982 = vmatpush2.msra.mxu0 0.0
    %1983 = vmatprep.subr.mxu0 0.0
    %1984 = vmatpush2.msra.mxu0 0.0
    %1985 = vmatprep.subr.mxu0 0.0
    %1986 = vmatpush2.msra.mxu0 0.0
    %1987 = vmatprep.subr.mxu0 0.0
    %1988 = vmatpush2.msra.mxu0 0.0
    %1989 = vmatprep.subr.mxu0 0.0
    %1990 = vmatpush2.msra.mxu0 0.0
    %1991 = vmatprep.subr.mxu0 0.0
    %1992 = vmatpush2.msra.mxu0 0.0
    %1993 = vmatprep.subr.mxu0 0.0
    %1994 = vmatpush2.msra.mxu0 0.0
    %1995 = vmatprep.subr.mxu0 0.0
    %1996 = vmatpush2.msra.mxu0 0.0
    %1997 = vmatprep.subr.mxu0 0.0
    %1998 = vmatpush2.msra.mxu0 0.0
    %1999 = vmatprep.subr.mxu0 0.0
    %2000 = vmatpush2.msra.mxu0 0.0
    %2001 = vmatprep.subr.mxu0 0.0
    %2002 = vmatpush2.msra.mxu0 0.0
    %2003 = vmatprep.subr.mxu0 0.0
    %2004 = vmatpush2.msra.mxu0 0.0
    %2005 = vmatprep.subr.mxu0 0.0
    %2006 = vmatpush2.msra.mxu0 0.0
    %2007 = vmatprep.subr.mxu0 0.0
    %2008 = vmatpush2.msra.mxu0 0.0
    %2009 = vmatprep.mubr.f32.mxu0 0.0
    %2010 = vmatmul.mubr.f32.gmra.mxu0 %v1229
    %v2011 = vpop.f32.mrf.mxu0
    %v2012 = vadd.f32 %v1410, %v2011
    %v2013 = vpop.f32.mrf.mxu0
    %v2014 = vadd.f32 %v1414, %v2013
    %2015 = vmatprep.mubr.f32.mxu0 0.0
    %2016 = vmatmul.mubr.f32.gmra.mxu0 %v1230
    %v2017 = vpop.f32.mrf.mxu0
    %v2018 = vadd.f32 %v1410, %v2017
    %v2019 = vpop.f32.mrf.mxu0
    %v2020 = vadd.f32 %v1414, %v2019
    %2021 = vmatprep.mubr.f32.mxu0 0.0
    %2022 = vmatmul.mubr.f32.gmra.mxu0 %v1231
    %v2023 = vpop.f32.mrf.mxu0
    %v2024 = vadd.f32 %v1410, %v2023
    %v2025 = vpop.f32.mrf.mxu0
    %v2026 = vadd.f32 %v1414, %v2025
    %2027 = vmatprep.mubr.f32.mxu0 0.0
    %2028 = vmatmul.mubr.f32.gmra.mxu0 %v1232
    %v2029 = vpop.f32.mrf.mxu0
    %v2030 = vadd.f32 %v1410, %v2029
    %v2031 = vpop.f32.mrf.mxu0
    %v2032 = vadd.f32 %v1414, %v2031
    %2033 = vmatprep.mubr.f32.mxu0 0.0
    %2034 = vmatmul.mubr.f32.gmra.mxu0 %v1233
    %v2035 = vpop.f32.mrf.mxu0
    %v2036 = vadd.f32 %v1410, %v2035
    %v2037 = vpop.f32.mrf.mxu0
    %v2038 = vadd.f32 %v1414, %v2037
    %2039 = vmatprep.mubr.f32.mxu0 0.0
    %2040 = vmatmul.mubr.f32.gmra.mxu0 %v1234
    %v2041 = vpop.f32.mrf.mxu0
    %v2042 = vadd.f32 %v1410, %v2041
    %v2043 = vpop.f32.mrf.mxu0
    %v2044 = vadd.f32 %v1414, %v2043
    %2045 = vmatprep.mubr.f32.mxu0 0.0
    %2046 = vmatmul.mubr.f32.gmra.mxu0 %v1235
    %v2047 = vpop.f32.mrf.mxu0
    %v2048 = vadd.f32 %v1410, %v2047
    %v2049 = vpop.f32.mrf.mxu0
    %v2050 = vadd.f32 %v1414, %v2049
    %2051 = vmatprep.mubr.f32.mxu0 0.0
    %2052 = vmatmul.mubr.f32.gmra.mxu0 %v1236
    %v2053 = vpop.f32.mrf.mxu0
    %v2054 = vadd.f32 %v1410, %v2053
    %v2055 = vpop.f32.mrf.mxu0
    %v2056 = vadd.f32 %v1414, %v2055
    %2057 = vmatprep.mubr.f32.mxu0 0.0
    %2058 = vmatmul.mubr.f32.gmra.mxu0 %v1237
    %v2059 = vpop.f32.mrf.mxu0
    %v2060 = vadd.f32 %v1410, %v2059
    %v2061 = vpop.f32.mrf.mxu0
    %v2062 = vadd.f32 %v1414, %v2061
    %2063 = vmatprep.mubr.f32.mxu0 0.0
    %2064 = vmatmul.mubr.f32.gmra.mxu0 %v1238
    %v2065 = vpop.f32.mrf.mxu0
    %v2066 = vadd.f32 %v1410, %v2065
    %v2067 = vpop.f32.mrf.mxu0
    %v2068 = vadd.f32 %v1414, %v2067
    %2069 = vmatprep.mubr.f32.mxu0 0.0
    %2070 = vmatmul.mubr.f32.gmra.mxu0 %v1239
    %v2071 = vpop.f32.mrf.mxu0
    %v2072 = vadd.f32 %v1410, %v2071
    %v2073 = vpop.f32.mrf.mxu0
    %v2074 = vadd.f32 %v1414, %v2073
    %2075 = vmatprep.mubr.f32.mxu0 0.0
    %2076 = vmatmul.mubr.f32.gmra.mxu0 %v1240
    %v2077 = vpop.f32.mrf.mxu0
    %v2078 = vadd.f32 %v1410, %v2077
    %v2079 = vpop.f32.mrf.mxu0
    %v2080 = vadd.f32 %v1414, %v2079
    %2081 = vmatprep.mubr.f32.mxu0 0.0
    %2082 = vmatmul.mubr.f32.gmra.mxu0 %v1241
    %v2083 = vpop.f32.mrf.mxu0
    %v2084 = vadd.f32 %v1410, %v2083
    %v2085 = vpop.f32.mrf.mxu0
    %v2086 = vadd.f32 %v1414, %v2085
    %2087 = vmatprep.mubr.f32.mxu0 0.0
    %2088 = vmatmul.mubr.f32.gmra.mxu0 %v1242
    %v2089 = vpop.f32.mrf.mxu0
    %v2090 = vadd.f32 %v1410, %v2089
    %v2091 = vpop.f32.mrf.mxu0
    %v2092 = vadd.f32 %v1414, %v2091
    %2093 = vmatprep.mubr.f32.mxu0 0.0
    %2094 = vmatmul.mubr.f32.gmra.mxu0 %v1243
    %v2095 = vpop.f32.mrf.mxu0
    %v2096 = vadd.f32 %v1410, %v2095
    %v2097 = vpop.f32.mrf.mxu0
    %v2098 = vadd.f32 %v1414, %v2097
    %2099 = vmatprep.mubr.f32.mxu0 0.0
    %2100 = vmatmul.mubr.f32.gmra.mxu0 %v1244
    %v2101 = vpop.f32.mrf.mxu0
    %v2102 = vadd.f32 %v1410, %v2101
    %v2103 = vpop.f32.mrf.mxu0
    %v2104 = vadd.f32 %v1414, %v2103
    %2105 = vmatprep.mubr.f32.mxu0 0.0
    %2106 = vmatmul.mubr.f32.gmra.mxu0 %v1245
    %v2107 = vpop.f32.mrf.mxu0
    %v2108 = vadd.f32 %v1410, %v2107
    %v2109 = vpop.f32.mrf.mxu0
    %v2110 = vadd.f32 %v1414, %v2109
    %2111 = vmatprep.mubr.f32.mxu0 0.0
    %2112 = vmatmul.mubr.f32.gmra.mxu0 %v1246
    %v2113 = vpop.f32.mrf.mxu0
    %v2114 = vadd.f32 %v1410, %v2113
    %v2115 = vpop.f32.mrf.mxu0
    %v2116 = vadd.f32 %v1414, %v2115
    %2117 = vmatprep.mubr.f32.mxu0 0.0
    %2118 = vmatmul.mubr.f32.gmra.mxu0 %v1247
    %v2119 = vpop.f32.mrf.mxu0
    %v2120 = vadd.f32 %v1410, %v2119
    %v2121 = vpop.f32.mrf.mxu0
    %v2122 = vadd.f32 %v1414, %v2121
    %2123 = vmatprep.mubr.f32.mxu0 0.0
    %2124 = vmatmul.mubr.f32.gmra.mxu0 %v1248
    %v2125 = vpop.f32.mrf.mxu0
    %v2126 = vadd.f32 %v1410, %v2125
    %v2127 = vpop.f32.mrf.mxu0
    %v2128 = vadd.f32 %v1414, %v2127
    %2129 = vmatprep.mubr.f32.mxu0 0.0
    %2130 = vmatmul.mubr.f32.gmra.mxu0 %v1249
    %v2131 = vpop.f32.mrf.mxu0
    %v2132 = vadd.f32 %v1410, %v2131
    %v2133 = vpop.f32.mrf.mxu0
    %v2134 = vadd.f32 %v1414, %v2133
    %2135 = vmatprep.mubr.f32.mxu0 0.0
    %2136 = vmatmul.mubr.f32.gmra.mxu0 %v1250
    %v2137 = vpop.f32.mrf.mxu0
    %v2138 = vadd.f32 %v1410, %v2137
    %v2139 = vpop.f32.mrf.mxu0
    %v2140 = vadd.f32 %v1414, %v2139
    %2141 = vmatprep.mubr.f32.mxu0 0.0
    %2142 = vmatmul.mubr.f32.gmra.mxu0 %v1251
    %v2143 = vpop.f32.mrf.mxu0
    %v2144 = vadd.f32 %v1410, %v2143
    %v2145 = vpop.f32.mrf.mxu0
    %v2146 = vadd.f32 %v1414, %v2145
    %2147 = vmatprep.mubr.f32.mxu0 0.0
    %2148 = vmatmul.mubr.f32.gmra.mxu0 %v1252
    %v2149 = vpop.f32.mrf.mxu0
    %v2150 = vadd.f32 %v1410, %v2149
    %v2151 = vpop.f32.mrf.mxu0
    %v2152 = vadd.f32 %v1414, %v2151
    %2153 = vmatprep.mubr.f32.mxu0 0.0
    %2154 = vmatmul.mubr.f32.gmra.mxu0 %v1253
    %v2155 = vpop.f32.mrf.mxu0
    %v2156 = vadd.f32 %v1410, %v2155
    %v2157 = vpop.f32.mrf.mxu0
    %v2158 = vadd.f32 %v1414, %v2157
    %2159 = vmatprep.mubr.f32.mxu0 0.0
    %2160 = vmatmul.mubr.f32.gmra.mxu0 %v1254
    %v2161 = vpop.f32.mrf.mxu0
    %v2162 = vadd.f32 %v1410, %v2161
    %v2163 = vpop.f32.mrf.mxu0
    %v2164 = vadd.f32 %v1414, %v2163
    %2165 = vmatprep.mubr.f32.mxu0 0.0
    %2166 = vmatmul.mubr.f32.gmra.mxu0 %v1255
    %v2167 = vpop.f32.mrf.mxu0
    %v2168 = vadd.f32 %v1410, %v2167
    %v2169 = vpop.f32.mrf.mxu0
    %v2170 = vadd.f32 %v1414, %v2169
    %2171 = vmatprep.mubr.f32.mxu0 0.0
    %2172 = vmatmul.mubr.f32.gmra.mxu0 %v1256
    %v2173 = vpop.f32.mrf.mxu0
    %v2174 = vadd.f32 %v1410, %v2173
    %v2175 = vpop.f32.mrf.mxu0
    %v2176 = vadd.f32 %v1414, %v2175
    %2177 = vmatprep.mubr.f32.mxu0 0.0
    %2178 = vmatmul.mubr.f32.gmra.mxu0 %v1257
    %v2179 = vpop.f32.mrf.mxu0
    %v2180 = vadd.f32 %v1410, %v2179
    %v2181 = vpop.f32.mrf.mxu0
    %v2182 = vadd.f32 %v1414, %v2181
    %2183 = vmatprep.mubr.f32.mxu0 0.0
    %2184 = vmatmul.mubr.f32.gmra.mxu0 %v1258
    %v2185 = vpop.f32.mrf.mxu0
    %v2186 = vadd.f32 %v1410, %v2185
    %v2187 = vpop.f32.mrf.mxu0
    %v2188 = vadd.f32 %v1414, %v2187
    %2189 = vmatprep.mubr.f32.mxu0 0.0
    %2190 = vmatmul.mubr.f32.gmra.mxu0 %v1259
    %v2191 = vpop.f32.mrf.mxu0
    %v2192 = vadd.f32 %v1410, %v2191
    %v2193 = vpop.f32.mrf.mxu0
    %v2194 = vadd.f32 %v1414, %v2193
    %2195 = vmatprep.mubr.f32.mxu0 0.0
    %2196 = vmatmul.mubr.f32.gmra.mxu0 %v1260
    %v2197 = vpop.f32.mrf.mxu0
    %v2198 = vadd.f32 %v1410, %v2197
    %v2199 = vpop.f32.mrf.mxu0
    %v2200 = vadd.f32 %v1414, %v2199
    %2201 = vdwg.mxu0
    %2202 = vmatprep.subr.mxu0 %v1388
    %2203 = vmatpush1.msra.mxu0 %v1387
    %2204 = vmatprep.subr.mxu0 %v1380
    %2205 = vmatpush1.msra.mxu0 %v1379
    %2206 = vmatprep.subr.mxu0 %v1372
    %2207 = vmatpush1.msra.mxu0 %v1371
    %2208 = vmatprep.subr.mxu0 %v1364
    %2209 = vmatpush1.msra.mxu0 %v1363
    %2210 = vmatprep.subr.mxu0 %v1356
    %2211 = vmatpush1.msra.mxu0 %v1355
    %2212 = vmatprep.subr.mxu0 %v1348
    %2213 = vmatpush1.msra.mxu0 %v1347
    %2214 = vmatprep.subr.mxu0 %v1340
    %2215 = vmatpush1.msra.mxu0 %v1339
    %2216 = vmatprep.subr.mxu0 %v1332
    %2217 = vmatpush1.msra.mxu0 %v1331
    %2218 = vmatprep.subr.mxu0 %v1324
    %2219 = vmatpush1.msra.mxu0 %v1323
    %2220 = vmatprep.subr.mxu0 %v1316
    %2221 = vmatpush1.msra.mxu0 %v1315
    %2222 = vmatprep.subr.mxu0 %v1308
    %2223 = vmatpush1.msra.mxu0 %v1307
    %2224 = vmatprep.subr.mxu0 %v1300
    %2225 = vmatpush1.msra.mxu0 %v1299
    %2226 = vmatprep.subr.mxu0 %v1292
    %2227 = vmatpush1.msra.mxu0 %v1291
    %2228 = vmatprep.subr.mxu0 %v1284
    %2229 = vmatpush1.msra.mxu0 %v1283
    %2230 = vmatprep.subr.mxu0 %v1276
    %2231 = vmatpush1.msra.mxu0 %v1275
    %2232 = vmatprep.subr.mxu0 %v1268
    %2233 = vmatpush1.msra.mxu0 %v1267
    %2234 = vmatprep.subr.mxu0 0.0
    %2235 = vmatpush2.msra.mxu0 0.0
    %2236 = vmatprep.subr.mxu0 0.0
    %2237 = vmatpush2.msra.mxu0 0.0
    %2238 = vmatprep.subr.mxu0 0.0
    %2239 = vmatpush2.msra.mxu0 0.0
    %2240 = vmatprep.subr.mxu0 0.0
    %2241 = vmatpush2.msra.mxu0 0.0
    %2242 = vmatprep.subr.mxu0 0.0
    %2243 = vmatpush2.msra.mxu0 0.0
    %2244 = vmatprep.subr.mxu0 0.0
    %2245 = vmatpush2.msra.mxu0 0.0
    %2246 = vmatprep.subr.mxu0 0.0
    %2247 = vmatpush2.msra.mxu0 0.0
    %2248 = vmatprep.subr.mxu0 0.0
    %2249 = vmatpush2.msra.mxu0 0.0
    %2250 = vmatprep.subr.mxu0 0.0
    %2251 = vmatpush2.msra.mxu0 0.0
    %2252 = vmatprep.subr.mxu0 0.0
    %2253 = vmatpush2.msra.mxu0 0.0
    %2254 = vmatprep.subr.mxu0 0.0
    %2255 = vmatpush2.msra.mxu0 0.0
    %2256 = vmatprep.subr.mxu0 0.0
    %2257 = vmatpush2.msra.mxu0 0.0
    %2258 = vmatprep.subr.mxu0 0.0
    %2259 = vmatpush2.msra.mxu0 0.0
    %2260 = vmatprep.subr.mxu0 0.0
    %2261 = vmatpush2.msra.mxu0 0.0
    %2262 = vmatprep.subr.mxu0 0.0
    %2263 = vmatpush2.msra.mxu0 0.0
    %2264 = vmatprep.subr.mxu0 0.0
    %2265 = vmatpush2.msra.mxu0 0.0
    %2266 = vmatprep.mubr.f32.mxu0 0.0
    %2267 = vmatmul.mubr.f32.gmra.mxu0 %v1229
    %v2268 = vpop.f32.mrf.mxu0
    %v2269 = vadd.f32 %v1418, %v2268
    %v2270 = vpop.f32.mrf.mxu0
    %v2271 = vadd.f32 %v1422, %v2270
    %2272 = vmatprep.mubr.f32.mxu0 0.0
    %2273 = vmatmul.mubr.f32.gmra.mxu0 %v1230
    %v2274 = vpop.f32.mrf.mxu0
    %v2275 = vadd.f32 %v1418, %v2274
    %v2276 = vpop.f32.mrf.mxu0
    %v2277 = vadd.f32 %v1422, %v2276
    %2278 = vmatprep.mubr.f32.mxu0 0.0
    %2279 = vmatmul.mubr.f32.gmra.mxu0 %v1231
    %v2280 = vpop.f32.mrf.mxu0
    %v2281 = vadd.f32 %v1418, %v2280
    %v2282 = vpop.f32.mrf.mxu0
    %v2283 = vadd.f32 %v1422, %v2282
    %2284 = vmatprep.mubr.f32.mxu0 0.0
    %2285 = vmatmul.mubr.f32.gmra.mxu0 %v1232
    %v2286 = vpop.f32.mrf.mxu0
    %v2287 = vadd.f32 %v1418, %v2286
    %v2288 = vpop.f32.mrf.mxu0
    %v2289 = vadd.f32 %v1422, %v2288
    %2290 = vmatprep.mubr.f32.mxu0 0.0
    %2291 = vmatmul.mubr.f32.gmra.mxu0 %v1233
    %v2292 = vpop.f32.mrf.mxu0
    %v2293 = vadd.f32 %v1418, %v2292
    %v2294 = vpop.f32.mrf.mxu0
    %v2295 = vadd.f32 %v1422, %v2294
    %2296 = vmatprep.mubr.f32.mxu0 0.0
    %2297 = vmatmul.mubr.f32.gmra.mxu0 %v1234
    %v2298 = vpop.f32.mrf.mxu0
    %v2299 = vadd.f32 %v1418, %v2298
    %v2300 = vpop.f32.mrf.mxu0
    %v2301 = vadd.f32 %v1422, %v2300
    %2302 = vmatprep.mubr.f32.mxu0 0.0
    %2303 = vmatmul.mubr.f32.gmra.mxu0 %v1235
    %v2304 = vpop.f32.mrf.mxu0
    %v2305 = vadd.f32 %v1418, %v2304
    %v2306 = vpop.f32.mrf.mxu0
    %v2307 = vadd.f32 %v1422, %v2306
    %2308 = vmatprep.mubr.f32.mxu0 0.0
    %2309 = vmatmul.mubr.f32.gmra.mxu0 %v1236
    %v2310 = vpop.f32.mrf.mxu0
    %v2311 = vadd.f32 %v1418, %v2310
    %v2312 = vpop.f32.mrf.mxu0
    %v2313 = vadd.f32 %v1422, %v2312
    %2314 = vmatprep.mubr.f32.mxu0 0.0
    %2315 = vmatmul.mubr.f32.gmra.mxu0 %v1237
    %v2316 = vpop.f32.mrf.mxu0
    %v2317 = vadd.f32 %v1418, %v2316
    %v2318 = vpop.f32.mrf.mxu0
    %v2319 = vadd.f32 %v1422, %v2318
    %2320 = vmatprep.mubr.f32.mxu0 0.0
    %2321 = vmatmul.mubr.f32.gmra.mxu0 %v1238
    %v2322 = vpop.f32.mrf.mxu0
    %v2323 = vadd.f32 %v1418, %v2322
    %v2324 = vpop.f32.mrf.mxu0
    %v2325 = vadd.f32 %v1422, %v2324
    %2326 = vmatprep.mubr.f32.mxu0 0.0
    %2327 = vmatmul.mubr.f32.gmra.mxu0 %v1239
    %v2328 = vpop.f32.mrf.mxu0
    %v2329 = vadd.f32 %v1418, %v2328
    %v2330 = vpop.f32.mrf.mxu0
    %v2331 = vadd.f32 %v1422, %v2330
    %2332 = vmatprep.mubr.f32.mxu0 0.0
    %2333 = vmatmul.mubr.f32.gmra.mxu0 %v1240
    %v2334 = vpop.f32.mrf.mxu0
    %v2335 = vadd.f32 %v1418, %v2334
    %v2336 = vpop.f32.mrf.mxu0
    %v2337 = vadd.f32 %v1422, %v2336
    %2338 = vmatprep.mubr.f32.mxu0 0.0
    %2339 = vmatmul.mubr.f32.gmra.mxu0 %v1241
    %v2340 = vpop.f32.mrf.mxu0
    %v2341 = vadd.f32 %v1418, %v2340
    %v2342 = vpop.f32.mrf.mxu0
    %v2343 = vadd.f32 %v1422, %v2342
    %2344 = vmatprep.mubr.f32.mxu0 0.0
    %2345 = vmatmul.mubr.f32.gmra.mxu0 %v1242
    %v2346 = vpop.f32.mrf.mxu0
    %v2347 = vadd.f32 %v1418, %v2346
    %v2348 = vpop.f32.mrf.mxu0
    %v2349 = vadd.f32 %v1422, %v2348
    %2350 = vmatprep.mubr.f32.mxu0 0.0
    %2351 = vmatmul.mubr.f32.gmra.mxu0 %v1243
    %v2352 = vpop.f32.mrf.mxu0
    %v2353 = vadd.f32 %v1418, %v2352
    %v2354 = vpop.f32.mrf.mxu0
    %v2355 = vadd.f32 %v1422, %v2354
    %2356 = vmatprep.mubr.f32.mxu0 0.0
    %2357 = vmatmul.mubr.f32.gmra.mxu0 %v1244
    %v2358 = vpop.f32.mrf.mxu0
    %v2359 = vadd.f32 %v1418, %v2358
    %v2360 = vpop.f32.mrf.mxu0
    %v2361 = vadd.f32 %v1422, %v2360
    %2362 = vmatprep.mubr.f32.mxu0 0.0
    %2363 = vmatmul.mubr.f32.gmra.mxu0 %v1245
    %v2364 = vpop.f32.mrf.mxu0
    %v2365 = vadd.f32 %v1418, %v2364
    %v2366 = vpop.f32.mrf.mxu0
    %v2367 = vadd.f32 %v1422, %v2366
    %2368 = vmatprep.mubr.f32.mxu0 0.0
    %2369 = vmatmul.mubr.f32.gmra.mxu0 %v1246
    %v2370 = vpop.f32.mrf.mxu0
    %v2371 = vadd.f32 %v1418, %v2370
    %v2372 = vpop.f32.mrf.mxu0
    %v2373 = vadd.f32 %v1422, %v2372
    %2374 = vmatprep.mubr.f32.mxu0 0.0
    %2375 = vmatmul.mubr.f32.gmra.mxu0 %v1247
    %v2376 = vpop.f32.mrf.mxu0
    %v2377 = vadd.f32 %v1418, %v2376
    %v2378 = vpop.f32.mrf.mxu0
    %v2379 = vadd.f32 %v1422, %v2378
    %2380 = vmatprep.mubr.f32.mxu0 0.0
    %2381 = vmatmul.mubr.f32.gmra.mxu0 %v1248
    %v2382 = vpop.f32.mrf.mxu0
    %v2383 = vadd.f32 %v1418, %v2382
    %v2384 = vpop.f32.mrf.mxu0
    %v2385 = vadd.f32 %v1422, %v2384
    %2386 = vmatprep.mubr.f32.mxu0 0.0
    %2387 = vmatmul.mubr.f32.gmra.mxu0 %v1249
    %v2388 = vpop.f32.mrf.mxu0
    %v2389 = vadd.f32 %v1418, %v2388
    %v2390 = vpop.f32.mrf.mxu0
    %v2391 = vadd.f32 %v1422, %v2390
    %2392 = vmatprep.mubr.f32.mxu0 0.0
    %2393 = vmatmul.mubr.f32.gmra.mxu0 %v1250
    %v2394 = vpop.f32.mrf.mxu0
    %v2395 = vadd.f32 %v1418, %v2394
    %v2396 = vpop.f32.mrf.mxu0
    %v2397 = vadd.f32 %v1422, %v2396
    %2398 = vmatprep.mubr.f32.mxu0 0.0
    %2399 = vmatmul.mubr.f32.gmra.mxu0 %v1251
    %v2400 = vpop.f32.mrf.mxu0
    %v2401 = vadd.f32 %v1418, %v2400
    %v2402 = vpop.f32.mrf.mxu0
    %v2403 = vadd.f32 %v1422, %v2402
    %2404 = vmatprep.mubr.f32.mxu0 0.0
    %2405 = vmatmul.mubr.f32.gmra.mxu0 %v1252
    %v2406 = vpop.f32.mrf.mxu0
    %v2407 = vadd.f32 %v1418, %v2406
    %v2408 = vpop.f32.mrf.mxu0
    %v2409 = vadd.f32 %v1422, %v2408
    %2410 = vmatprep.mubr.f32.mxu0 0.0
    %2411 = vmatmul.mubr.f32.gmra.mxu0 %v1253
    %v2412 = vpop.f32.mrf.mxu0
    %v2413 = vadd.f32 %v1418, %v2412
    %v2414 = vpop.f32.mrf.mxu0
    %v2415 = vadd.f32 %v1422, %v2414
    %2416 = vmatprep.mubr.f32.mxu0 0.0
    %2417 = vmatmul.mubr.f32.gmra.mxu0 %v1254
    %v2418 = vpop.f32.mrf.mxu0
    %v2419 = vadd.f32 %v1418, %v2418
    %v2420 = vpop.f32.mrf.mxu0
    %v2421 = vadd.f32 %v1422, %v2420
    %2422 = vmatprep.mubr.f32.mxu0 0.0
    %2423 = vmatmul.mubr.f32.gmra.mxu0 %v1255
    %v2424 = vpop.f32.mrf.mxu0
    %v2425 = vadd.f32 %v1418, %v2424
    %v2426 = vpop.f32.mrf.mxu0
    %v2427 = vadd.f32 %v1422, %v2426
    %2428 = vmatprep.mubr.f32.mxu0 0.0
    %2429 = vmatmul.mubr.f32.gmra.mxu0 %v1256
    %v2430 = vpop.f32.mrf.mxu0
    %v2431 = vadd.f32 %v1418, %v2430
    %v2432 = vpop.f32.mrf.mxu0
    %v2433 = vadd.f32 %v1422, %v2432
    %2434 = vmatprep.mubr.f32.mxu0 0.0
    %2435 = vmatmul.mubr.f32.gmra.mxu0 %v1257
    %v2436 = vpop.f32.mrf.mxu0
    %v2437 = vadd.f32 %v1418, %v2436
    %v2438 = vpop.f32.mrf.mxu0
    %v2439 = vadd.f32 %v1422, %v2438
    %2440 = vmatprep.mubr.f32.mxu0 0.0
    %2441 = vmatmul.mubr.f32.gmra.mxu0 %v1258
    %v2442 = vpop.f32.mrf.mxu0
    %v2443 = vadd.f32 %v1418, %v2442
    %v2444 = vpop.f32.mrf.mxu0
    %v2445 = vadd.f32 %v1422, %v2444
    %2446 = vmatprep.mubr.f32.mxu0 0.0
    %2447 = vmatmul.mubr.f32.gmra.mxu0 %v1259
    %v2448 = vpop.f32.mrf.mxu0
    %v2449 = vadd.f32 %v1418, %v2448
    %v2450 = vpop.f32.mrf.mxu0
    %v2451 = vadd.f32 %v1422, %v2450
    %2452 = vmatprep.mubr.f32.mxu0 0.0
    %2453 = vmatmul.mubr.f32.gmra.mxu0 %v1260
    %v2454 = vpop.f32.mrf.mxu0
    %v2455 = vadd.f32 %v1418, %v2454
    %v2456 = vpop.f32.mrf.mxu0
    %v2457 = vadd.f32 %v1422, %v2456
    %2458 = vdwg.mxu0
    %v2459 = vadd.f32 %v1498, %v1504
    %v2460 = vadd.f32 %v2459, %v1510
    %v2461 = vadd.f32 %v2460, %v1516
    %v2462 = vrot.slane %v2461, 4
    %v2463 = vadd.f32 %v2461, %v2462
    %v2464 = vrot.slane %v2463, 2
    %v2465 = vadd.f32 %v2463, %v2464
    %v2466 = vrot.slane %v2465, 1
    %v2467 = vadd.f32 %v2465, %v2466
    %v2468 = vadd.f32 %v1500, %v1506
    %v2469 = vadd.f32 %v2468, %v1512
    %v2470 = vadd.f32 %v2469, %v1518
    %v2471 = vrot.slane %v2470, 4
    %v2472 = vadd.f32 %v2470, %v2471
    %v2473 = vrot.slane %v2472, 2
    %v2474 = vadd.f32 %v2472, %v2473
    %v2475 = vrot.slane %v2474, 1
    %v2476 = vadd.f32 %v2474, %v2475
    %v2477 = vadd.f32 %v1755, %v1761
    %v2478 = vadd.f32 %v2477, %v1767
    %v2479 = vadd.f32 %v2478, %v1773
    %v2480 = vrot.slane %v2479, 4
    %v2481 = vadd.f32 %v2479, %v2480
    %v2482 = vrot.slane %v2481, 2
    %v2483 = vadd.f32 %v2481, %v2482
    %v2484 = vrot.slane %v2483, 1
    %v2485 = vadd.f32 %v2483, %v2484
    %v2486 = vadd.f32 %v1757, %v1763
    %v2487 = vadd.f32 %v2486, %v1769
    %v2488 = vadd.f32 %v2487, %v1775
    %v2489 = vrot.slane %v2488, 4
    %v2490 = vadd.f32 %v2488, %v2489
    %v2491 = vrot.slane %v2490, 2
    %v2492 = vadd.f32 %v2490, %v2491
    %v2493 = vrot.slane %v2492, 1
    %v2494 = vadd.f32 %v2492, %v2493
    %v2495 = vadd.f32 %v2012, %v2018
    %v2496 = vadd.f32 %v2495, %v2024
    %v2497 = vadd.f32 %v2496, %v2030
    %v2498 = vrot.slane %v2497, 4
    %v2499 = vadd.f32 %v2497, %v2498
    %v2500 = vrot.slane %v2499, 2
    %v2501 = vadd.f32 %v2499, %v2500
    %v2502 = vrot.slane %v2501, 1
    %v2503 = vadd.f32 %v2501, %v2502
    %v2504 = vadd.f32 %v2014, %v2020
    %v2505 = vadd.f32 %v2504, %v2026
    %v2506 = vadd.f32 %v2505, %v2032
    %v2507 = vrot.slane %v2506, 4
    %v2508 = vadd.f32 %v2506, %v2507
    %v2509 = vrot.slane %v2508, 2
    %v2510 = vadd.f32 %v2508, %v2509
    %v2511 = vrot.slane %v2510, 1
    %v2512 = vadd.f32 %v2510, %v2511
    %v2513 = vadd.f32 %v2269, %v2275
    %v2514 = vadd.f32 %v2513, %v2281
    %v2515 = vadd.f32 %v2514, %v2287
    %v2516 = vrot.slane %v2515, 4
    %v2517 = vadd.f32 %v2515, %v2516
    %v2518 = vrot.slane %v2517, 2
    %v2519 = vadd.f32 %v2517, %v2518
    %v2520 = vrot.slane %v2519, 1
    %v2521 = vadd.f32 %v2519, %v2520
    %v2522 = vadd.f32 %v2271, %v2277
    %v2523 = vadd.f32 %v2522, %v2283
    %v2524 = vadd.f32 %v2523, %v2289
    %v2525 = vrot.slane %v2524, 4
    %v2526 = vadd.f32 %v2524, %v2525
    %v2527 = vrot.slane %v2526, 2
    %v2528 = vadd.f32 %v2526, %v2527
    %v2529 = vrot.slane %v2528, 1
    %v2530 = vadd.f32 %v2528, %v2529
    %v2531 = vadd.f32 %v1522, %v1528
    %v2532 = vadd.f32 %v2531, %v1534
    %v2533 = vadd.f32 %v2532, %v1540
    %v2534 = vrot.slane %v2533, 4
    %v2535 = vadd.f32 %v2533, %v2534
    %v2536 = vrot.slane %v2535, 2
    %v2537 = vadd.f32 %v2535, %v2536
    %v2538 = vrot.slane %v2537, 1
    %v2539 = vadd.f32 %v2537, %v2538
    %v2540 = vadd.f32 %v1524, %v1530
    %v2541 = vadd.f32 %v2540, %v1536
    %v2542 = vadd.f32 %v2541, %v1542
    %v2543 = vrot.slane %v2542, 4
    %v2544 = vadd.f32 %v2542, %v2543
    %v2545 = vrot.slane %v2544, 2
    %v2546 = vadd.f32 %v2544, %v2545
    %v2547 = vrot.slane %v2546, 1
    %v2548 = vadd.f32 %v2546, %v2547
    %v2549 = vadd.f32 %v1779, %v1785
    %v2550 = vadd.f32 %v2549, %v1791
    %v2551 = vadd.f32 %v2550, %v1797
    %v2552 = vrot.slane %v2551, 4
    %v2553 = vadd.f32 %v2551, %v2552
    %v2554 = vrot.slane %v2553, 2
    %v2555 = vadd.f32 %v2553, %v2554
    %v2556 = vrot.slane %v2555, 1
    %v2557 = vadd.f32 %v2555, %v2556
    %v2558 = vadd.f32 %v1781, %v1787
    %v2559 = vadd.f32 %v2558, %v1793
    %v2560 = vadd.f32 %v2559, %v1799
    %v2561 = vrot.slane %v2560, 4
    %v2562 = vadd.f32 %v2560, %v2561
    %v2563 = vrot.slane %v2562, 2
    %v2564 = vadd.f32 %v2562, %v2563
    %v2565 = vrot.slane %v2564, 1
    %v2566 = vadd.f32 %v2564, %v2565
    %v2567 = vadd.f32 %v2036, %v2042
    %v2568 = vadd.f32 %v2567, %v2048
    %v2569 = vadd.f32 %v2568, %v2054
    %v2570 = vrot.slane %v2569, 4
    %v2571 = vadd.f32 %v2569, %v2570
    %v2572 = vrot.slane %v2571, 2
    %v2573 = vadd.f32 %v2571, %v2572
    %v2574 = vrot.slane %v2573, 1
    %v2575 = vadd.f32 %v2573, %v2574
    %v2576 = vadd.f32 %v2038, %v2044
    %v2577 = vadd.f32 %v2576, %v2050
    %v2578 = vadd.f32 %v2577, %v2056
    %v2579 = vrot.slane %v2578, 4
    %v2580 = vadd.f32 %v2578, %v2579
    %v2581 = vrot.slane %v2580, 2
    %v2582 = vadd.f32 %v2580, %v2581
    %v2583 = vrot.slane %v2582, 1
    %v2584 = vadd.f32 %v2582, %v2583
    %v2585 = vadd.f32 %v2293, %v2299
    %v2586 = vadd.f32 %v2585, %v2305
    %v2587 = vadd.f32 %v2586, %v2311
    %v2588 = vrot.slane %v2587, 4
    %v2589 = vadd.f32 %v2587, %v2588
    %v2590 = vrot.slane %v2589, 2
    %v2591 = vadd.f32 %v2589, %v2590
    %v2592 = vrot.slane %v2591, 1
    %v2593 = vadd.f32 %v2591, %v2592
    %v2594 = vadd.f32 %v2295, %v2301
    %v2595 = vadd.f32 %v2594, %v2307
    %v2596 = vadd.f32 %v2595, %v2313
    %v2597 = vrot.slane %v2596, 4
    %v2598 = vadd.f32 %v2596, %v2597
    %v2599 = vrot.slane %v2598, 2
    %v2600 = vadd.f32 %v2598, %v2599
    %v2601 = vrot.slane %v2600, 1
    %v2602 = vadd.f32 %v2600, %v2601
    %v2603 = vadd.f32 %v1546, %v1552
    %v2604 = vadd.f32 %v2603, %v1558
    %v2605 = vadd.f32 %v2604, %v1564
    %v2606 = vrot.slane %v2605, 4
    %v2607 = vadd.f32 %v2605, %v2606
    %v2608 = vrot.slane %v2607, 2
    %v2609 = vadd.f32 %v2607, %v2608
    %v2610 = vrot.slane %v2609, 1
    %v2611 = vadd.f32 %v2609, %v2610
    %v2612 = vadd.f32 %v1548, %v1554
    %v2613 = vadd.f32 %v2612, %v1560
    %v2614 = vadd.f32 %v2613, %v1566
    %v2615 = vrot.slane %v2614, 4
    %v2616 = vadd.f32 %v2614, %v2615
    %v2617 = vrot.slane %v2616, 2
    %v2618 = vadd.f32 %v2616, %v2617
    %v2619 = vrot.slane %v2618, 1
    %v2620 = vadd.f32 %v2618, %v2619
    %v2621 = vadd.f32 %v1803, %v1809
    %v2622 = vadd.f32 %v2621, %v1815
    %v2623 = vadd.f32 %v2622, %v1821
    %v2624 = vrot.slane %v2623, 4
    %v2625 = vadd.f32 %v2623, %v2624
    %v2626 = vrot.slane %v2625, 2
    %v2627 = vadd.f32 %v2625, %v2626
    %v2628 = vrot.slane %v2627, 1
    %v2629 = vadd.f32 %v2627, %v2628
    %v2630 = vadd.f32 %v1805, %v1811
    %v2631 = vadd.f32 %v2630, %v1817
    %v2632 = vadd.f32 %v2631, %v1823
    %v2633 = vrot.slane %v2632, 4
    %v2634 = vadd.f32 %v2632, %v2633
    %v2635 = vrot.slane %v2634, 2
    %v2636 = vadd.f32 %v2634, %v2635
    %v2637 = vrot.slane %v2636, 1
    %v2638 = vadd.f32 %v2636, %v2637
    %v2639 = vadd.f32 %v2060, %v2066
    %v2640 = vadd.f32 %v2639, %v2072
    %v2641 = vadd.f32 %v2640, %v2078
    %v2642 = vrot.slane %v2641, 4
    %v2643 = vadd.f32 %v2641, %v2642
    %v2644 = vrot.slane %v2643, 2
    %v2645 = vadd.f32 %v2643, %v2644
    %v2646 = vrot.slane %v2645, 1
    %v2647 = vadd.f32 %v2645, %v2646
    %v2648 = vadd.f32 %v2062, %v2068
    %v2649 = vadd.f32 %v2648, %v2074
    %v2650 = vadd.f32 %v2649, %v2080
    %v2651 = vrot.slane %v2650, 4
    %v2652 = vadd.f32 %v2650, %v2651
    %v2653 = vrot.slane %v2652, 2
    %v2654 = vadd.f32 %v2652, %v2653
    %v2655 = vrot.slane %v2654, 1
    %v2656 = vadd.f32 %v2654, %v2655
    %v2657 = vadd.f32 %v2317, %v2323
    %v2658 = vadd.f32 %v2657, %v2329
    %v2659 = vadd.f32 %v2658, %v2335
    %v2660 = vrot.slane %v2659, 4
    %v2661 = vadd.f32 %v2659, %v2660
    %v2662 = vrot.slane %v2661, 2
    %v2663 = vadd.f32 %v2661, %v2662
    %v2664 = vrot.slane %v2663, 1
    %v2665 = vadd.f32 %v2663, %v2664
    %v2666 = vadd.f32 %v2319, %v2325
    %v2667 = vadd.f32 %v2666, %v2331
    %v2668 = vadd.f32 %v2667, %v2337
    %v2669 = vrot.slane %v2668, 4
    %v2670 = vadd.f32 %v2668, %v2669
    %v2671 = vrot.slane %v2670, 2
    %v2672 = vadd.f32 %v2670, %v2671
    %v2673 = vrot.slane %v2672, 1
    %v2674 = vadd.f32 %v2672, %v2673
    %v2675 = vadd.f32 %v1570, %v1576
    %v2676 = vadd.f32 %v2675, %v1582
    %v2677 = vadd.f32 %v2676, %v1588
    %v2678 = vrot.slane %v2677, 4
    %v2679 = vadd.f32 %v2677, %v2678
    %v2680 = vrot.slane %v2679, 2
    %v2681 = vadd.f32 %v2679, %v2680
    %v2682 = vrot.slane %v2681, 1
    %v2683 = vadd.f32 %v2681, %v2682
    %v2684 = vadd.f32 %v1572, %v1578
    %v2685 = vadd.f32 %v2684, %v1584
    %v2686 = vadd.f32 %v2685, %v1590
    %v2687 = vrot.slane %v2686, 4
    %v2688 = vadd.f32 %v2686, %v2687
    %v2689 = vrot.slane %v2688, 2
    %v2690 = vadd.f32 %v2688, %v2689
    %v2691 = vrot.slane %v2690, 1
    %v2692 = vadd.f32 %v2690, %v2691
    %v2693 = vadd.f32 %v1827, %v1833
    %v2694 = vadd.f32 %v2693, %v1839
    %v2695 = vadd.f32 %v2694, %v1845
    %v2696 = vrot.slane %v2695, 4
    %v2697 = vadd.f32 %v2695, %v2696
    %v2698 = vrot.slane %v2697, 2
    %v2699 = vadd.f32 %v2697, %v2698
    %v2700 = vrot.slane %v2699, 1
    %v2701 = vadd.f32 %v2699, %v2700
    %v2702 = vadd.f32 %v1829, %v1835
    %v2703 = vadd.f32 %v2702, %v1841
    %v2704 = vadd.f32 %v2703, %v1847
    %v2705 = vrot.slane %v2704, 4
    %v2706 = vadd.f32 %v2704, %v2705
    %v2707 = vrot.slane %v2706, 2
    %v2708 = vadd.f32 %v2706, %v2707
    %v2709 = vrot.slane %v2708, 1
    %v2710 = vadd.f32 %v2708, %v2709
    %v2711 = vadd.f32 %v2084, %v2090
    %v2712 = vadd.f32 %v2711, %v2096
    %v2713 = vadd.f32 %v2712, %v2102
    %v2714 = vrot.slane %v2713, 4
    %v2715 = vadd.f32 %v2713, %v2714
    %v2716 = vrot.slane %v2715, 2
    %v2717 = vadd.f32 %v2715, %v2716
    %v2718 = vrot.slane %v2717, 1
    %v2719 = vadd.f32 %v2717, %v2718
    %v2720 = vadd.f32 %v2086, %v2092
    %v2721 = vadd.f32 %v2720, %v2098
    %v2722 = vadd.f32 %v2721, %v2104
    %v2723 = vrot.slane %v2722, 4
    %v2724 = vadd.f32 %v2722, %v2723
    %v2725 = vrot.slane %v2724, 2
    %v2726 = vadd.f32 %v2724, %v2725
    %v2727 = vrot.slane %v2726, 1
    %v2728 = vadd.f32 %v2726, %v2727
    %v2729 = vadd.f32 %v2341, %v2347
    %v2730 = vadd.f32 %v2729, %v2353
    %v2731 = vadd.f32 %v2730, %v2359
    %v2732 = vrot.slane %v2731, 4
    %v2733 = vadd.f32 %v2731, %v2732
    %v2734 = vrot.slane %v2733, 2
    %v2735 = vadd.f32 %v2733, %v2734
    %v2736 = vrot.slane %v2735, 1
    %v2737 = vadd.f32 %v2735, %v2736
    %v2738 = vadd.f32 %v2343, %v2349
    %v2739 = vadd.f32 %v2738, %v2355
    %v2740 = vadd.f32 %v2739, %v2361
    %v2741 = vrot.slane %v2740, 4
    %v2742 = vadd.f32 %v2740, %v2741
    %v2743 = vrot.slane %v2742, 2
    %v2744 = vadd.f32 %v2742, %v2743
    %v2745 = vrot.slane %v2744, 1
    %v2746 = vadd.f32 %v2744, %v2745
    %v2747 = vadd.f32 %v1594, %v1600
    %v2748 = vadd.f32 %v2747, %v1606
    %v2749 = vadd.f32 %v2748, %v1612
    %v2750 = vrot.slane %v2749, 4
    %v2751 = vadd.f32 %v2749, %v2750
    %v2752 = vrot.slane %v2751, 2
    %v2753 = vadd.f32 %v2751, %v2752
    %v2754 = vrot.slane %v2753, 1
    %v2755 = vadd.f32 %v2753, %v2754
    %v2756 = vadd.f32 %v1596, %v1602
    %v2757 = vadd.f32 %v2756, %v1608
    %v2758 = vadd.f32 %v2757, %v1614
    %v2759 = vrot.slane %v2758, 4
    %v2760 = vadd.f32 %v2758, %v2759
    %v2761 = vrot.slane %v2760, 2
    %v2762 = vadd.f32 %v2760, %v2761
    %v2763 = vrot.slane %v2762, 1
    %v2764 = vadd.f32 %v2762, %v2763
    %v2765 = vadd.f32 %v1851, %v1857
    %v2766 = vadd.f32 %v2765, %v1863
    %v2767 = vadd.f32 %v2766, %v1869
    %v2768 = vrot.slane %v2767, 4
    %v2769 = vadd.f32 %v2767, %v2768
    %v2770 = vrot.slane %v2769, 2
    %v2771 = vadd.f32 %v2769, %v2770
    %v2772 = vrot.slane %v2771, 1
    %v2773 = vadd.f32 %v2771, %v2772
    %v2774 = vadd.f32 %v1853, %v1859
    %v2775 = vadd.f32 %v2774, %v1865
    %v2776 = vadd.f32 %v2775, %v1871
    %v2777 = vrot.slane %v2776, 4
    %v2778 = vadd.f32 %v2776, %v2777
    %v2779 = vrot.slane %v2778, 2
    %v2780 = vadd.f32 %v2778, %v2779
    %v2781 = vrot.slane %v2780, 1
    %v2782 = vadd.f32 %v2780, %v2781
    %v2783 = vadd.f32 %v2108, %v2114
    %v2784 = vadd.f32 %v2783, %v2120
    %v2785 = vadd.f32 %v2784, %v2126
    %v2786 = vrot.slane %v2785, 4
    %v2787 = vadd.f32 %v2785, %v2786
    %v2788 = vrot.slane %v2787, 2
    %v2789 = vadd.f32 %v2787, %v2788
    %v2790 = vrot.slane %v2789, 1
    %v2791 = vadd.f32 %v2789, %v2790
    %v2792 = vadd.f32 %v2110, %v2116
    %v2793 = vadd.f32 %v2792, %v2122
    %v2794 = vadd.f32 %v2793, %v2128
    %v2795 = vrot.slane %v2794, 4
    %v2796 = vadd.f32 %v2794, %v2795
    %v2797 = vrot.slane %v2796, 2
    %v2798 = vadd.f32 %v2796, %v2797
    %v2799 = vrot.slane %v2798, 1
    %v2800 = vadd.f32 %v2798, %v2799
    %v2801 = vadd.f32 %v2365, %v2371
    %v2802 = vadd.f32 %v2801, %v2377
    %v2803 = vadd.f32 %v2802, %v2383
    %v2804 = vrot.slane %v2803, 4
    %v2805 = vadd.f32 %v2803, %v2804
    %v2806 = vrot.slane %v2805, 2
    %v2807 = vadd.f32 %v2805, %v2806
    %v2808 = vrot.slane %v2807, 1
    %v2809 = vadd.f32 %v2807, %v2808
    %v2810 = vadd.f32 %v2367, %v2373
    %v2811 = vadd.f32 %v2810, %v2379
    %v2812 = vadd.f32 %v2811, %v2385
    %v2813 = vrot.slane %v2812, 4
    %v2814 = vadd.f32 %v2812, %v2813
    %v2815 = vrot.slane %v2814, 2
    %v2816 = vadd.f32 %v2814, %v2815
    %v2817 = vrot.slane %v2816, 1
    %v2818 = vadd.f32 %v2816, %v2817
    %v2819 = vadd.f32 %v1618, %v1624
    %v2820 = vadd.f32 %v2819, %v1630
    %v2821 = vadd.f32 %v2820, %v1636
    %v2822 = vrot.slane %v2821, 4
    %v2823 = vadd.f32 %v2821, %v2822
    %v2824 = vrot.slane %v2823, 2
    %v2825 = vadd.f32 %v2823, %v2824
    %v2826 = vrot.slane %v2825, 1
    %v2827 = vadd.f32 %v2825, %v2826
    %v2828 = vadd.f32 %v1620, %v1626
    %v2829 = vadd.f32 %v2828, %v1632
    %v2830 = vadd.f32 %v2829, %v1638
    %v2831 = vrot.slane %v2830, 4
    %v2832 = vadd.f32 %v2830, %v2831
    %v2833 = vrot.slane %v2832, 2
    %v2834 = vadd.f32 %v2832, %v2833
    %v2835 = vrot.slane %v2834, 1
    %v2836 = vadd.f32 %v2834, %v2835
    %v2837 = vadd.f32 %v1875, %v1881
    %v2838 = vadd.f32 %v2837, %v1887
    %v2839 = vadd.f32 %v2838, %v1893
    %v2840 = vrot.slane %v2839, 4
    %v2841 = vadd.f32 %v2839, %v2840
    %v2842 = vrot.slane %v2841, 2
    %v2843 = vadd.f32 %v2841, %v2842
    %v2844 = vrot.slane %v2843, 1
    %v2845 = vadd.f32 %v2843, %v2844
    %v2846 = vadd.f32 %v1877, %v1883
    %v2847 = vadd.f32 %v2846, %v1889
    %v2848 = vadd.f32 %v2847, %v1895
    %v2849 = vrot.slane %v2848, 4
    %v2850 = vadd.f32 %v2848, %v2849
    %v2851 = vrot.slane %v2850, 2
    %v2852 = vadd.f32 %v2850, %v2851
    %v2853 = vrot.slane %v2852, 1
    %v2854 = vadd.f32 %v2852, %v2853
    %v2855 = vadd.f32 %v2132, %v2138
    %v2856 = vadd.f32 %v2855, %v2144
    %v2857 = vadd.f32 %v2856, %v2150
    %v2858 = vrot.slane %v2857, 4
    %v2859 = vadd.f32 %v2857, %v2858
    %v2860 = vrot.slane %v2859, 2
    %v2861 = vadd.f32 %v2859, %v2860
    %v2862 = vrot.slane %v2861, 1
    %v2863 = vadd.f32 %v2861, %v2862
    %v2864 = vadd.f32 %v2134, %v2140
    %v2865 = vadd.f32 %v2864, %v2146
    %v2866 = vadd.f32 %v2865, %v2152
    %v2867 = vrot.slane %v2866, 4
    %v2868 = vadd.f32 %v2866, %v2867
    %v2869 = vrot.slane %v2868, 2
    %v2870 = vadd.f32 %v2868, %v2869
    %v2871 = vrot.slane %v2870, 1
    %v2872 = vadd.f32 %v2870, %v2871
    %v2873 = vadd.f32 %v2389, %v2395
    %v2874 = vadd.f32 %v2873, %v2401
    %v2875 = vadd.f32 %v2874, %v2407
    %v2876 = vrot.slane %v2875, 4
    %v2877 = vadd.f32 %v2875, %v2876
    %v2878 = vrot.slane %v2877, 2
    %v2879 = vadd.f32 %v2877, %v2878
    %v2880 = vrot.slane %v2879, 1
    %v2881 = vadd.f32 %v2879, %v2880
    %v2882 = vadd.f32 %v2391, %v2397
    %v2883 = vadd.f32 %v2882, %v2403
    %v2884 = vadd.f32 %v2883, %v2409
    %v2885 = vrot.slane %v2884, 4
    %v2886 = vadd.f32 %v2884, %v2885
    %v2887 = vrot.slane %v2886, 2
    %v2888 = vadd.f32 %v2886, %v2887
    %v2889 = vrot.slane %v2888, 1
    %v2890 = vadd.f32 %v2888, %v2889
    %v2891 = vadd.f32 %v1642, %v1648
    %v2892 = vadd.f32 %v2891, %v1654
    %v2893 = vadd.f32 %v2892, %v1660
    %v2894 = vrot.slane %v2893, 4
    %v2895 = vadd.f32 %v2893, %v2894
    %v2896 = vrot.slane %v2895, 2
    %v2897 = vadd.f32 %v2895, %v2896
    %v2898 = vrot.slane %v2897, 1
    %v2899 = vadd.f32 %v2897, %v2898
    %v2900 = vadd.f32 %v1644, %v1650
    %v2901 = vadd.f32 %v2900, %v1656
    %v2902 = vadd.f32 %v2901, %v1662
    %v2903 = vrot.slane %v2902, 4
    %v2904 = vadd.f32 %v2902, %v2903
    %v2905 = vrot.slane %v2904, 2
    %v2906 = vadd.f32 %v2904, %v2905
    %v2907 = vrot.slane %v2906, 1
    %v2908 = vadd.f32 %v2906, %v2907
    %v2909 = vadd.f32 %v1899, %v1905
    %v2910 = vadd.f32 %v2909, %v1911
    %v2911 = vadd.f32 %v2910, %v1917
    %v2912 = vrot.slane %v2911, 4
    %v2913 = vadd.f32 %v2911, %v2912
    %v2914 = vrot.slane %v2913, 2
    %v2915 = vadd.f32 %v2913, %v2914
    %v2916 = vrot.slane %v2915, 1
    %v2917 = vadd.f32 %v2915, %v2916
    %v2918 = vadd.f32 %v1901, %v1907
    %v2919 = vadd.f32 %v2918, %v1913
    %v2920 = vadd.f32 %v2919, %v1919
    %v2921 = vrot.slane %v2920, 4
    %v2922 = vadd.f32 %v2920, %v2921
    %v2923 = vrot.slane %v2922, 2
    %v2924 = vadd.f32 %v2922, %v2923
    %v2925 = vrot.slane %v2924, 1
    %v2926 = vadd.f32 %v2924, %v2925
    %v2927 = vadd.f32 %v2156, %v2162
    %v2928 = vadd.f32 %v2927, %v2168
    %v2929 = vadd.f32 %v2928, %v2174
    %v2930 = vrot.slane %v2929, 4
    %v2931 = vadd.f32 %v2929, %v2930
    %v2932 = vrot.slane %v2931, 2
    %v2933 = vadd.f32 %v2931, %v2932
    %v2934 = vrot.slane %v2933, 1
    %v2935 = vadd.f32 %v2933, %v2934
    %v2936 = vadd.f32 %v2158, %v2164
    %v2937 = vadd.f32 %v2936, %v2170
    %v2938 = vadd.f32 %v2937, %v2176
    %v2939 = vrot.slane %v2938, 4
    %v2940 = vadd.f32 %v2938, %v2939
    %v2941 = vrot.slane %v2940, 2
    %v2942 = vadd.f32 %v2940, %v2941
    %v2943 = vrot.slane %v2942, 1
    %v2944 = vadd.f32 %v2942, %v2943
    %v2945 = vadd.f32 %v2413, %v2419
    %v2946 = vadd.f32 %v2945, %v2425
    %v2947 = vadd.f32 %v2946, %v2431
    %v2948 = vrot.slane %v2947, 4
    %v2949 = vadd.f32 %v2947, %v2948
    %v2950 = vrot.slane %v2949, 2
    %v2951 = vadd.f32 %v2949, %v2950
    %v2952 = vrot.slane %v2951, 1
    %v2953 = vadd.f32 %v2951, %v2952
    %v2954 = vadd.f32 %v2415, %v2421
    %v2955 = vadd.f32 %v2954, %v2427
    %v2956 = vadd.f32 %v2955, %v2433
    %v2957 = vrot.slane %v2956, 4
    %v2958 = vadd.f32 %v2956, %v2957
    %v2959 = vrot.slane %v2958, 2
    %v2960 = vadd.f32 %v2958, %v2959
    %v2961 = vrot.slane %v2960, 1
    %v2962 = vadd.f32 %v2960, %v2961
    %v2963 = vadd.f32 %v1666, %v1672
    %v2964 = vadd.f32 %v2963, %v1678
    %v2965 = vadd.f32 %v2964, %v1684
    %v2966 = vrot.slane %v2965, 4
    %v2967 = vadd.f32 %v2965, %v2966
    %v2968 = vrot.slane %v2967, 2
    %v2969 = vadd.f32 %v2967, %v2968
    %v2970 = vrot.slane %v2969, 1
    %v2971 = vadd.f32 %v2969, %v2970
    %v2972 = vadd.f32 %v1668, %v1674
    %v2973 = vadd.f32 %v2972, %v1680
    %v2974 = vadd.f32 %v2973, %v1686
    %v2975 = vrot.slane %v2974, 4
    %v2976 = vadd.f32 %v2974, %v2975
    %v2977 = vrot.slane %v2976, 2
    %v2978 = vadd.f32 %v2976, %v2977
    %v2979 = vrot.slane %v2978, 1
    %v2980 = vadd.f32 %v2978, %v2979
    %v2981 = vadd.f32 %v1923, %v1929
    %v2982 = vadd.f32 %v2981, %v1935
    %v2983 = vadd.f32 %v2982, %v1941
    %v2984 = vrot.slane %v2983, 4
    %v2985 = vadd.f32 %v2983, %v2984
    %v2986 = vrot.slane %v2985, 2
    %v2987 = vadd.f32 %v2985, %v2986
    %v2988 = vrot.slane %v2987, 1
    %v2989 = vadd.f32 %v2987, %v2988
    %v2990 = vadd.f32 %v1925, %v1931
    %v2991 = vadd.f32 %v2990, %v1937
    %v2992 = vadd.f32 %v2991, %v1943
    %v2993 = vrot.slane %v2992, 4
    %v2994 = vadd.f32 %v2992, %v2993
    %v2995 = vrot.slane %v2994, 2
    %v2996 = vadd.f32 %v2994, %v2995
    %v2997 = vrot.slane %v2996, 1
    %v2998 = vadd.f32 %v2996, %v2997
    %v2999 = vadd.f32 %v2180, %v2186
    %v3000 = vadd.f32 %v2999, %v2192
    %v3001 = vadd.f32 %v3000, %v2198
    %v3002 = vrot.slane %v3001, 4
    %v3003 = vadd.f32 %v3001, %v3002
    %v3004 = vrot.slane %v3003, 2
    %v3005 = vadd.f32 %v3003, %v3004
    %v3006 = vrot.slane %v3005, 1
    %v3007 = vadd.f32 %v3005, %v3006
    %v3008 = vadd.f32 %v2182, %v2188
    %v3009 = vadd.f32 %v3008, %v2194
    %v3010 = vadd.f32 %v3009, %v2200
    %v3011 = vrot.slane %v3010, 4
    %v3012 = vadd.f32 %v3010, %v3011
    %v3013 = vrot.slane %v3012, 2
    %v3014 = vadd.f32 %v3012, %v3013
    %v3015 = vrot.slane %v3014, 1
    %v3016 = vadd.f32 %v3014, %v3015
    %v3017 = vadd.f32 %v2437, %v2443
    %v3018 = vadd.f32 %v3017, %v2449
    %v3019 = vadd.f32 %v3018, %v2455
    %v3020 = vrot.slane %v3019, 4
    %v3021 = vadd.f32 %v3019, %v3020
    %v3022 = vrot.slane %v3021, 2
    %v3023 = vadd.f32 %v3021, %v3022
    %v3024 = vrot.slane %v3023, 1
    %v3025 = vadd.f32 %v3023, %v3024
    %v3026 = vadd.f32 %v2439, %v2445
    %v3027 = vadd.f32 %v3026, %v2451
    %v3028 = vadd.f32 %v3027, %v2457
    %v3029 = vrot.slane %v3028, 4
    %v3030 = vadd.f32 %v3028, %v3029
    %v3031 = vrot.slane %v3030, 2
    %v3032 = vadd.f32 %v3030, %v3031
    %v3033 = vrot.slane %v3032, 1
    %v3034 = vadd.f32 %v3032, %v3033
    %v3035 = vmul.f32 %v2467, %v476
    %v3036 = vmul.f32 %v2476, %v476
    %v3037 = vmul.f32 %v2485, %v476
    %v3038 = vmul.f32 %v2494, %v476
    %v3039 = vmul.f32 %v2503, %v476
    %v3040 = vmul.f32 %v2512, %v476
    %v3041 = vmul.f32 %v2521, %v476
    %v3042 = vmul.f32 %v2530, %v476
    %v3043 = vmul.f32 %v2539, %v476
    %v3044 = vmul.f32 %v2548, %v476
    %v3045 = vmul.f32 %v2557, %v476
    %v3046 = vmul.f32 %v2566, %v476
    %v3047 = vmul.f32 %v2575, %v476
    %v3048 = vmul.f32 %v2584, %v476
    %v3049 = vmul.f32 %v2593, %v476
    %v3050 = vmul.f32 %v2602, %v476
    %v3051 = vmul.f32 %v2611, %v476
    %v3052 = vmul.f32 %v2620, %v476
    %v3053 = vmul.f32 %v2629, %v476
    %v3054 = vmul.f32 %v2638, %v476
    %v3055 = vmul.f32 %v2647, %v476
    %v3056 = vmul.f32 %v2656, %v476
    %v3057 = vmul.f32 %v2665, %v476
    %v3058 = vmul.f32 %v2674, %v476
    %v3059 = vmul.f32 %v2683, %v476
    %v3060 = vmul.f32 %v2692, %v476
    %v3061 = vmul.f32 %v2701, %v476
    %v3062 = vmul.f32 %v2710, %v476
    %v3063 = vmul.f32 %v2719, %v476
    %v3064 = vmul.f32 %v2728, %v476
    %v3065 = vmul.f32 %v2737, %v476
    %v3066 = vmul.f32 %v2746, %v476
    %v3067 = vmul.f32 %v2755, %v476
    %v3068 = vmul.f32 %v2764, %v476
    %v3069 = vmul.f32 %v2773, %v476
    %v3070 = vmul.f32 %v2782, %v476
    %v3071 = vmul.f32 %v2791, %v476
    %v3072 = vmul.f32 %v2800, %v476
    %v3073 = vmul.f32 %v2809, %v476
    %v3074 = vmul.f32 %v2818, %v476
    %v3075 = vmul.f32 %v2827, %v476
    %v3076 = vmul.f32 %v2836, %v476
    %v3077 = vmul.f32 %v2845, %v476
    %v3078 = vmul.f32 %v2854, %v476
    %v3079 = vmul.f32 %v2863, %v476
    %v3080 = vmul.f32 %v2872, %v476
    %v3081 = vmul.f32 %v2881, %v476
    %v3082 = vmul.f32 %v2890, %v476
    %v3083 = vmul.f32 %v2899, %v476
    %v3084 = vmul.f32 %v2908, %v476
    %v3085 = vmul.f32 %v2917, %v476
    %v3086 = vmul.f32 %v2926, %v476
    %v3087 = vmul.f32 %v2935, %v476
    %v3088 = vmul.f32 %v2944, %v476
    %v3089 = vmul.f32 %v2953, %v476
    %v3090 = vmul.f32 %v2962, %v476
    %v3091 = vmul.f32 %v2971, %v476
    %v3092 = vmul.f32 %v2980, %v476
    %v3093 = vmul.f32 %v2989, %v476
    %v3094 = vmul.f32 %v2998, %v476
    %v3095 = vmul.f32 %v3007, %v476
    %v3096 = vmul.f32 %v3016, %v476
    %v3097 = vmul.f32 %v3025, %v476
    %v3098 = vmul.f32 %v3034, %v476
    %v3099 = vmul.f32 %v1498, %v1498
    %v3100 = vmul.f32 %v1500, %v1500
    %v3101 = vmul.f32 %v1755, %v1755
    %v3102 = vmul.f32 %v1757, %v1757
    %v3103 = vmul.f32 %v2012, %v2012
    %v3104 = vmul.f32 %v2014, %v2014
    %v3105 = vmul.f32 %v2269, %v2269
    %v3106 = vmul.f32 %v2271, %v2271
    %v3107 = vmul.f32 %v1504, %v1504
    %v3108 = vmul.f32 %v1506, %v1506
    %v3109 = vmul.f32 %v1761, %v1761
    %v3110 = vmul.f32 %v1763, %v1763
    %v3111 = vmul.f32 %v2018, %v2018
    %v3112 = vmul.f32 %v2020, %v2020
    %v3113 = vmul.f32 %v2275, %v2275
    %v3114 = vmul.f32 %v2277, %v2277
    %v3115 = vmul.f32 %v1510, %v1510
    %v3116 = vmul.f32 %v1512, %v1512
    %v3117 = vmul.f32 %v1767, %v1767
    %v3118 = vmul.f32 %v1769, %v1769
    %v3119 = vmul.f32 %v2024, %v2024
    %v3120 = vmul.f32 %v2026, %v2026
    %v3121 = vmul.f32 %v2281, %v2281
    %v3122 = vmul.f32 %v2283, %v2283
    %v3123 = vmul.f32 %v1516, %v1516
    %v3124 = vmul.f32 %v1518, %v1518
    %v3125 = vmul.f32 %v1773, %v1773
    %v3126 = vmul.f32 %v1775, %v1775
    %v3127 = vmul.f32 %v2030, %v2030
    %v3128 = vmul.f32 %v2032, %v2032
    %v3129 = vmul.f32 %v2287, %v2287
    %v3130 = vmul.f32 %v2289, %v2289
    %v3131 = vmul.f32 %v1522, %v1522
    %v3132 = vmul.f32 %v1524, %v1524
    %v3133 = vmul.f32 %v1779, %v1779
    %v3134 = vmul.f32 %v1781, %v1781
    %v3135 = vmul.f32 %v2036, %v2036
    %v3136 = vmul.f32 %v2038, %v2038
    %v3137 = vmul.f32 %v2293, %v2293
    %v3138 = vmul.f32 %v2295, %v2295
    %v3139 = vmul.f32 %v1528, %v1528
    %v3140 = vmul.f32 %v1530, %v1530
    %v3141 = vmul.f32 %v1785, %v1785
    %v3142 = vmul.f32 %v1787, %v1787
    %v3143 = vmul.f32 %v2042, %v2042
    %v3144 = vmul.f32 %v2044, %v2044
    %v3145 = vmul.f32 %v2299, %v2299
    %v3146 = vmul.f32 %v2301, %v2301
    %v3147 = vmul.f32 %v1534, %v1534
    %v3148 = vmul.f32 %v1536, %v1536
    %v3149 = vmul.f32 %v1791, %v1791
    %v3150 = vmul.f32 %v1793, %v1793
    %v3151 = vmul.f32 %v2048, %v2048
    %v3152 = vmul.f32 %v2050, %v2050
    %v3153 = vmul.f32 %v2305, %v2305
    %v3154 = vmul.f32 %v2307, %v2307
    %v3155 = vmul.f32 %v1540, %v1540
    %v3156 = vmul.f32 %v1542, %v1542
    %v3157 = vmul.f32 %v1797, %v1797
    %v3158 = vmul.f32 %v1799, %v1799
    %v3159 = vmul.f32 %v2054, %v2054
    %v3160 = vmul.f32 %v2056, %v2056
    %v3161 = vmul.f32 %v2311, %v2311
    %v3162 = vmul.f32 %v2313, %v2313
    %v3163 = vmul.f32 %v1546, %v1546
    %v3164 = vmul.f32 %v1548, %v1548
    %v3165 = vmul.f32 %v1803, %v1803
    %v3166 = vmul.f32 %v1805, %v1805
    %v3167 = vmul.f32 %v2060, %v2060
    %v3168 = vmul.f32 %v2062, %v2062
    %v3169 = vmul.f32 %v2317, %v2317
    %v3170 = vmul.f32 %v2319, %v2319
    %v3171 = vmul.f32 %v1552, %v1552
    %v3172 = vmul.f32 %v1554, %v1554
    %v3173 = vmul.f32 %v1809, %v1809
    %v3174 = vmul.f32 %v1811, %v1811
    %v3175 = vmul.f32 %v2066, %v2066
    %v3176 = vmul.f32 %v2068, %v2068
    %v3177 = vmul.f32 %v2323, %v2323
    %v3178 = vmul.f32 %v2325, %v2325
    %v3179 = vmul.f32 %v1558, %v1558
    %v3180 = vmul.f32 %v1560, %v1560
    %v3181 = vmul.f32 %v1815, %v1815
    %v3182 = vmul.f32 %v1817, %v1817
    %v3183 = vmul.f32 %v2072, %v2072
    %v3184 = vmul.f32 %v2074, %v2074
    %v3185 = vmul.f32 %v2329, %v2329
    %v3186 = vmul.f32 %v2331, %v2331
    %v3187 = vmul.f32 %v1564, %v1564
    %v3188 = vmul.f32 %v1566, %v1566
    %v3189 = vmul.f32 %v1821, %v1821
    %v3190 = vmul.f32 %v1823, %v1823
    %v3191 = vmul.f32 %v2078, %v2078
    %v3192 = vmul.f32 %v2080, %v2080
    %v3193 = vmul.f32 %v2335, %v2335
    %v3194 = vmul.f32 %v2337, %v2337
    %v3195 = vmul.f32 %v1570, %v1570
    %v3196 = vmul.f32 %v1572, %v1572
    %v3197 = vmul.f32 %v1827, %v1827
    %v3198 = vmul.f32 %v1829, %v1829
    %v3199 = vmul.f32 %v2084, %v2084
    %v3200 = vmul.f32 %v2086, %v2086
    %v3201 = vmul.f32 %v2341, %v2341
    %v3202 = vmul.f32 %v2343, %v2343
    %v3203 = vmul.f32 %v1576, %v1576
    %v3204 = vmul.f32 %v1578, %v1578
    %v3205 = vmul.f32 %v1833, %v1833
    %v3206 = vmul.f32 %v1835, %v1835
    %v3207 = vmul.f32 %v2090, %v2090
    %v3208 = vmul.f32 %v2092, %v2092
    %v3209 = vmul.f32 %v2347, %v2347
    %v3210 = vmul.f32 %v2349, %v2349
    %v3211 = vmul.f32 %v1582, %v1582
    %v3212 = vmul.f32 %v1584, %v1584
    %v3213 = vmul.f32 %v1839, %v1839
    %v3214 = vmul.f32 %v1841, %v1841
    %v3215 = vmul.f32 %v2096, %v2096
    %v3216 = vmul.f32 %v2098, %v2098
    %v3217 = vmul.f32 %v2353, %v2353
    %v3218 = vmul.f32 %v2355, %v2355
    %v3219 = vmul.f32 %v1588, %v1588
    %v3220 = vmul.f32 %v1590, %v1590
    %v3221 = vmul.f32 %v1845, %v1845
    %v3222 = vmul.f32 %v1847, %v1847
    %v3223 = vmul.f32 %v2102, %v2102
    %v3224 = vmul.f32 %v2104, %v2104
    %v3225 = vmul.f32 %v2359, %v2359
    %v3226 = vmul.f32 %v2361, %v2361
    %v3227 = vmul.f32 %v1594, %v1594
    %v3228 = vmul.f32 %v1596, %v1596
    %v3229 = vmul.f32 %v1851, %v1851
    %v3230 = vmul.f32 %v1853, %v1853
    %v3231 = vmul.f32 %v2108, %v2108
    %v3232 = vmul.f32 %v2110, %v2110
    %v3233 = vmul.f32 %v2365, %v2365
    %v3234 = vmul.f32 %v2367, %v2367
    %v3235 = vmul.f32 %v1600, %v1600
    %v3236 = vmul.f32 %v1602, %v1602
    %v3237 = vmul.f32 %v1857, %v1857
    %v3238 = vmul.f32 %v1859, %v1859
    %v3239 = vmul.f32 %v2114, %v2114
    %v3240 = vmul.f32 %v2116, %v2116
    %v3241 = vmul.f32 %v2371, %v2371
    %v3242 = vmul.f32 %v2373, %v2373
    %v3243 = vmul.f32 %v1606, %v1606
    %v3244 = vmul.f32 %v1608, %v1608
    %v3245 = vmul.f32 %v1863, %v1863
    %v3246 = vmul.f32 %v1865, %v1865
    %v3247 = vmul.f32 %v2120, %v2120
    %v3248 = vmul.f32 %v2122, %v2122
    %v3249 = vmul.f32 %v2377, %v2377
    %v3250 = vmul.f32 %v2379, %v2379
    %v3251 = vmul.f32 %v1612, %v1612
    %v3252 = vmul.f32 %v1614, %v1614
    %v3253 = vmul.f32 %v1869, %v1869
    %v3254 = vmul.f32 %v1871, %v1871
    %v3255 = vmul.f32 %v2126, %v2126
    %v3256 = vmul.f32 %v2128, %v2128
    %v3257 = vmul.f32 %v2383, %v2383
    %v3258 = vmul.f32 %v2385, %v2385
    %v3259 = vmul.f32 %v1618, %v1618
    %v3260 = vmul.f32 %v1620, %v1620
    %v3261 = vmul.f32 %v1875, %v1875
    %v3262 = vmul.f32 %v1877, %v1877
    %v3263 = vmul.f32 %v2132, %v2132
    %v3264 = vmul.f32 %v2134, %v2134
    %v3265 = vmul.f32 %v2389, %v2389
    %v3266 = vmul.f32 %v2391, %v2391
    %v3267 = vmul.f32 %v1624, %v1624
    %v3268 = vmul.f32 %v1626, %v1626
    %v3269 = vmul.f32 %v1881, %v1881
    %v3270 = vmul.f32 %v1883, %v1883
    %v3271 = vmul.f32 %v2138, %v2138
    %v3272 = vmul.f32 %v2140, %v2140
    %v3273 = vmul.f32 %v2395, %v2395
    %v3274 = vmul.f32 %v2397, %v2397
    %v3275 = vmul.f32 %v1630, %v1630
    %v3276 = vmul.f32 %v1632, %v1632
    %v3277 = vmul.f32 %v1887, %v1887
    %v3278 = vmul.f32 %v1889, %v1889
    %v3279 = vmul.f32 %v2144, %v2144
    %v3280 = vmul.f32 %v2146, %v2146
    %v3281 = vmul.f32 %v2401, %v2401
    %v3282 = vmul.f32 %v2403, %v2403
    %v3283 = vmul.f32 %v1636, %v1636
    %v3284 = vmul.f32 %v1638, %v1638
    %v3285 = vmul.f32 %v1893, %v1893
    %v3286 = vmul.f32 %v1895, %v1895
    %v3287 = vmul.f32 %v2150, %v2150
    %v3288 = vmul.f32 %v2152, %v2152
    %v3289 = vmul.f32 %v2407, %v2407
    %v3290 = vmul.f32 %v2409, %v2409
    %v3291 = vmul.f32 %v1642, %v1642
    %v3292 = vmul.f32 %v1644, %v1644
    %v3293 = vmul.f32 %v1899, %v1899
    %v3294 = vmul.f32 %v1901, %v1901
    %v3295 = vmul.f32 %v2156, %v2156
    %v3296 = vmul.f32 %v2158, %v2158
    %v3297 = vmul.f32 %v2413, %v2413
    %v3298 = vmul.f32 %v2415, %v2415
    %v3299 = vmul.f32 %v1648, %v1648
    %v3300 = vmul.f32 %v1650, %v1650
    %v3301 = vmul.f32 %v1905, %v1905
    %v3302 = vmul.f32 %v1907, %v1907
    %v3303 = vmul.f32 %v2162, %v2162
    %v3304 = vmul.f32 %v2164, %v2164
    %v3305 = vmul.f32 %v2419, %v2419
    %v3306 = vmul.f32 %v2421, %v2421
    %v3307 = vmul.f32 %v1654, %v1654
    %v3308 = vmul.f32 %v1656, %v1656
    %v3309 = vmul.f32 %v1911, %v1911
    %v3310 = vmul.f32 %v1913, %v1913
    %v3311 = vmul.f32 %v2168, %v2168
    %v3312 = vmul.f32 %v2170, %v2170
    %v3313 = vmul.f32 %v2425, %v2425
    %v3314 = vmul.f32 %v2427, %v2427
    %v3315 = vmul.f32 %v1660, %v1660
    %v3316 = vmul.f32 %v1662, %v1662
    %v3317 = vmul.f32 %v1917, %v1917
    %v3318 = vmul.f32 %v1919, %v1919
    %v3319 = vmul.f32 %v2174, %v2174
    %v3320 = vmul.f32 %v2176, %v2176
    %v3321 = vmul.f32 %v2431, %v2431
    %v3322 = vmul.f32 %v2433, %v2433
    %v3323 = vmul.f32 %v1666, %v1666
    %v3324 = vmul.f32 %v1668, %v1668
    %v3325 = vmul.f32 %v1923, %v1923
    %v3326 = vmul.f32 %v1925, %v1925
    %v3327 = vmul.f32 %v2180, %v2180
    %v3328 = vmul.f32 %v2182, %v2182
    %v3329 = vmul.f32 %v2437, %v2437
    %v3330 = vmul.f32 %v2439, %v2439
    %v3331 = vmul.f32 %v1672, %v1672
    %v3332 = vmul.f32 %v1674, %v1674
    %v3333 = vmul.f32 %v1929, %v1929
    %v3334 = vmul.f32 %v1931, %v1931
    %v3335 = vmul.f32 %v2186, %v2186
    %v3336 = vmul.f32 %v2188, %v2188
    %v3337 = vmul.f32 %v2443, %v2443
    %v3338 = vmul.f32 %v2445, %v2445
    %v3339 = vmul.f32 %v1678, %v1678
    %v3340 = vmul.f32 %v1680, %v1680
    %v3341 = vmul.f32 %v1935, %v1935
    %v3342 = vmul.f32 %v1937, %v1937
    %v3343 = vmul.f32 %v2192, %v2192
    %v3344 = vmul.f32 %v2194, %v2194
    %v3345 = vmul.f32 %v2449, %v2449
    %v3346 = vmul.f32 %v2451, %v2451
    %v3347 = vmul.f32 %v1684, %v1684
    %v3348 = vmul.f32 %v1686, %v1686
    %v3349 = vmul.f32 %v1941, %v1941
    %v3350 = vmul.f32 %v1943, %v1943
    %v3351 = vmul.f32 %v2198, %v2198
    %v3352 = vmul.f32 %v2200, %v2200
    %v3353 = vmul.f32 %v2455, %v2455
    %v3354 = vmul.f32 %v2457, %v2457
    %v3355 = vadd.f32 %v3099, %v3107
    %v3356 = vadd.f32 %v3355, %v3115
    %v3357 = vadd.f32 %v3356, %v3123
    %v3358 = vrot.slane %v3357, 4
    %v3359 = vadd.f32 %v3357, %v3358
    %v3360 = vrot.slane %v3359, 2
    %v3361 = vadd.f32 %v3359, %v3360
    %v3362 = vrot.slane %v3361, 1
    %v3363 = vadd.f32 %v3361, %v3362
    %v3364 = vadd.f32 %v3100, %v3108
    %v3365 = vadd.f32 %v3364, %v3116
    %v3366 = vadd.f32 %v3365, %v3124
    %v3367 = vrot.slane %v3366, 4
    %v3368 = vadd.f32 %v3366, %v3367
    %v3369 = vrot.slane %v3368, 2
    %v3370 = vadd.f32 %v3368, %v3369
    %v3371 = vrot.slane %v3370, 1
    %v3372 = vadd.f32 %v3370, %v3371
    %v3373 = vadd.f32 %v3101, %v3109
    %v3374 = vadd.f32 %v3373, %v3117
    %v3375 = vadd.f32 %v3374, %v3125
    %v3376 = vrot.slane %v3375, 4
    %v3377 = vadd.f32 %v3375, %v3376
    %v3378 = vrot.slane %v3377, 2
    %v3379 = vadd.f32 %v3377, %v3378
    %v3380 = vrot.slane %v3379, 1
    %v3381 = vadd.f32 %v3379, %v3380
    %v3382 = vadd.f32 %v3102, %v3110
    %v3383 = vadd.f32 %v3382, %v3118
    %v3384 = vadd.f32 %v3383, %v3126
    %v3385 = vrot.slane %v3384, 4
    %v3386 = vadd.f32 %v3384, %v3385
    %v3387 = vrot.slane %v3386, 2
    %v3388 = vadd.f32 %v3386, %v3387
    %v3389 = vrot.slane %v3388, 1
    %v3390 = vadd.f32 %v3388, %v3389
    %v3391 = vadd.f32 %v3103, %v3111
    %v3392 = vadd.f32 %v3391, %v3119
    %v3393 = vadd.f32 %v3392, %v3127
    %v3394 = vrot.slane %v3393, 4
    %v3395 = vadd.f32 %v3393, %v3394
    %v3396 = vrot.slane %v3395, 2
    %v3397 = vadd.f32 %v3395, %v3396
    %v3398 = vrot.slane %v3397, 1
    %v3399 = vadd.f32 %v3397, %v3398
    %v3400 = vadd.f32 %v3104, %v3112
    %v3401 = vadd.f32 %v3400, %v3120
    %v3402 = vadd.f32 %v3401, %v3128
    %v3403 = vrot.slane %v3402, 4
    %v3404 = vadd.f32 %v3402, %v3403
    %v3405 = vrot.slane %v3404, 2
    %v3406 = vadd.f32 %v3404, %v3405
    %v3407 = vrot.slane %v3406, 1
    %v3408 = vadd.f32 %v3406, %v3407
    %v3409 = vadd.f32 %v3105, %v3113
    %v3410 = vadd.f32 %v3409, %v3121
    %v3411 = vadd.f32 %v3410, %v3129
    %v3412 = vrot.slane %v3411, 4
    %v3413 = vadd.f32 %v3411, %v3412
    %v3414 = vrot.slane %v3413, 2
    %v3415 = vadd.f32 %v3413, %v3414
    %v3416 = vrot.slane %v3415, 1
    %v3417 = vadd.f32 %v3415, %v3416
    %v3418 = vadd.f32 %v3106, %v3114
    %v3419 = vadd.f32 %v3418, %v3122
    %v3420 = vadd.f32 %v3419, %v3130
    %v3421 = vrot.slane %v3420, 4
    %v3422 = vadd.f32 %v3420, %v3421
    %v3423 = vrot.slane %v3422, 2
    %v3424 = vadd.f32 %v3422, %v3423
    %v3425 = vrot.slane %v3424, 1
    %v3426 = vadd.f32 %v3424, %v3425
    %v3427 = vadd.f32 %v3131, %v3139
    %v3428 = vadd.f32 %v3427, %v3147
    %v3429 = vadd.f32 %v3428, %v3155
    %v3430 = vrot.slane %v3429, 4
    %v3431 = vadd.f32 %v3429, %v3430
    %v3432 = vrot.slane %v3431, 2
    %v3433 = vadd.f32 %v3431, %v3432
    %v3434 = vrot.slane %v3433, 1
    %v3435 = vadd.f32 %v3433, %v3434
    %v3436 = vadd.f32 %v3132, %v3140
    %v3437 = vadd.f32 %v3436, %v3148
    %v3438 = vadd.f32 %v3437, %v3156
    %v3439 = vrot.slane %v3438, 4
    %v3440 = vadd.f32 %v3438, %v3439
    %v3441 = vrot.slane %v3440, 2
    %v3442 = vadd.f32 %v3440, %v3441
    %v3443 = vrot.slane %v3442, 1
    %v3444 = vadd.f32 %v3442, %v3443
    %v3445 = vadd.f32 %v3133, %v3141
    %v3446 = vadd.f32 %v3445, %v3149
    %v3447 = vadd.f32 %v3446, %v3157
    %v3448 = vrot.slane %v3447, 4
    %v3449 = vadd.f32 %v3447, %v3448
    %v3450 = vrot.slane %v3449, 2
    %v3451 = vadd.f32 %v3449, %v3450
    %v3452 = vrot.slane %v3451, 1
    %v3453 = vadd.f32 %v3451, %v3452
    %v3454 = vadd.f32 %v3134, %v3142
    %v3455 = vadd.f32 %v3454, %v3150
    %v3456 = vadd.f32 %v3455, %v3158
    %v3457 = vrot.slane %v3456, 4
    %v3458 = vadd.f32 %v3456, %v3457
    %v3459 = vrot.slane %v3458, 2
    %v3460 = vadd.f32 %v3458, %v3459
    %v3461 = vrot.slane %v3460, 1
    %v3462 = vadd.f32 %v3460, %v3461
    %v3463 = vadd.f32 %v3135, %v3143
    %v3464 = vadd.f32 %v3463, %v3151
    %v3465 = vadd.f32 %v3464, %v3159
    %v3466 = vrot.slane %v3465, 4
    %v3467 = vadd.f32 %v3465, %v3466
    %v3468 = vrot.slane %v3467, 2
    %v3469 = vadd.f32 %v3467, %v3468
    %v3470 = vrot.slane %v3469, 1
    %v3471 = vadd.f32 %v3469, %v3470
    %v3472 = vadd.f32 %v3136, %v3144
    %v3473 = vadd.f32 %v3472, %v3152
    %v3474 = vadd.f32 %v3473, %v3160
    %v3475 = vrot.slane %v3474, 4
    %v3476 = vadd.f32 %v3474, %v3475
    %v3477 = vrot.slane %v3476, 2
    %v3478 = vadd.f32 %v3476, %v3477
    %v3479 = vrot.slane %v3478, 1
    %v3480 = vadd.f32 %v3478, %v3479
    %v3481 = vadd.f32 %v3137, %v3145
    %v3482 = vadd.f32 %v3481, %v3153
    %v3483 = vadd.f32 %v3482, %v3161
    %v3484 = vrot.slane %v3483, 4
    %v3485 = vadd.f32 %v3483, %v3484
    %v3486 = vrot.slane %v3485, 2
    %v3487 = vadd.f32 %v3485, %v3486
    %v3488 = vrot.slane %v3487, 1
    %v3489 = vadd.f32 %v3487, %v3488
    %v3490 = vadd.f32 %v3138, %v3146
    %v3491 = vadd.f32 %v3490, %v3154
    %v3492 = vadd.f32 %v3491, %v3162
    %v3493 = vrot.slane %v3492, 4
    %v3494 = vadd.f32 %v3492, %v3493
    %v3495 = vrot.slane %v3494, 2
    %v3496 = vadd.f32 %v3494, %v3495
    %v3497 = vrot.slane %v3496, 1
    %v3498 = vadd.f32 %v3496, %v3497
    %v3499 = vadd.f32 %v3163, %v3171
    %v3500 = vadd.f32 %v3499, %v3179
    %v3501 = vadd.f32 %v3500, %v3187
    %v3502 = vrot.slane %v3501, 4
    %v3503 = vadd.f32 %v3501, %v3502
    %v3504 = vrot.slane %v3503, 2
    %v3505 = vadd.f32 %v3503, %v3504
    %v3506 = vrot.slane %v3505, 1
    %v3507 = vadd.f32 %v3505, %v3506
    %v3508 = vadd.f32 %v3164, %v3172
    %v3509 = vadd.f32 %v3508, %v3180
    %v3510 = vadd.f32 %v3509, %v3188
    %v3511 = vrot.slane %v3510, 4
    %v3512 = vadd.f32 %v3510, %v3511
    %v3513 = vrot.slane %v3512, 2
    %v3514 = vadd.f32 %v3512, %v3513
    %v3515 = vrot.slane %v3514, 1
    %v3516 = vadd.f32 %v3514, %v3515
    %v3517 = vadd.f32 %v3165, %v3173
    %v3518 = vadd.f32 %v3517, %v3181
    %v3519 = vadd.f32 %v3518, %v3189
    %v3520 = vrot.slane %v3519, 4
    %v3521 = vadd.f32 %v3519, %v3520
    %v3522 = vrot.slane %v3521, 2
    %v3523 = vadd.f32 %v3521, %v3522
    %v3524 = vrot.slane %v3523, 1
    %v3525 = vadd.f32 %v3523, %v3524
    %v3526 = vadd.f32 %v3166, %v3174
    %v3527 = vadd.f32 %v3526, %v3182
    %v3528 = vadd.f32 %v3527, %v3190
    %v3529 = vrot.slane %v3528, 4
    %v3530 = vadd.f32 %v3528, %v3529
    %v3531 = vrot.slane %v3530, 2
    %v3532 = vadd.f32 %v3530, %v3531
    %v3533 = vrot.slane %v3532, 1
    %v3534 = vadd.f32 %v3532, %v3533
    %v3535 = vadd.f32 %v3167, %v3175
    %v3536 = vadd.f32 %v3535, %v3183
    %v3537 = vadd.f32 %v3536, %v3191
    %v3538 = vrot.slane %v3537, 4
    %v3539 = vadd.f32 %v3537, %v3538
    %v3540 = vrot.slane %v3539, 2
    %v3541 = vadd.f32 %v3539, %v3540
    %v3542 = vrot.slane %v3541, 1
    %v3543 = vadd.f32 %v3541, %v3542
    %v3544 = vadd.f32 %v3168, %v3176
    %v3545 = vadd.f32 %v3544, %v3184
    %v3546 = vadd.f32 %v3545, %v3192
    %v3547 = vrot.slane %v3546, 4
    %v3548 = vadd.f32 %v3546, %v3547
    %v3549 = vrot.slane %v3548, 2
    %v3550 = vadd.f32 %v3548, %v3549
    %v3551 = vrot.slane %v3550, 1
    %v3552 = vadd.f32 %v3550, %v3551
    %v3553 = vadd.f32 %v3169, %v3177
    %v3554 = vadd.f32 %v3553, %v3185
    %v3555 = vadd.f32 %v3554, %v3193
    %v3556 = vrot.slane %v3555, 4
    %v3557 = vadd.f32 %v3555, %v3556
    %v3558 = vrot.slane %v3557, 2
    %v3559 = vadd.f32 %v3557, %v3558
    %v3560 = vrot.slane %v3559, 1
    %v3561 = vadd.f32 %v3559, %v3560
    %v3562 = vadd.f32 %v3170, %v3178
    %v3563 = vadd.f32 %v3562, %v3186
    %v3564 = vadd.f32 %v3563, %v3194
    %v3565 = vrot.slane %v3564, 4
    %v3566 = vadd.f32 %v3564, %v3565
    %v3567 = vrot.slane %v3566, 2
    %v3568 = vadd.f32 %v3566, %v3567
    %v3569 = vrot.slane %v3568, 1
    %v3570 = vadd.f32 %v3568, %v3569
    %v3571 = vadd.f32 %v3195, %v3203
    %v3572 = vadd.f32 %v3571, %v3211
    %v3573 = vadd.f32 %v3572, %v3219
    %v3574 = vrot.slane %v3573, 4
    %v3575 = vadd.f32 %v3573, %v3574
    %v3576 = vrot.slane %v3575, 2
    %v3577 = vadd.f32 %v3575, %v3576
    %v3578 = vrot.slane %v3577, 1
    %v3579 = vadd.f32 %v3577, %v3578
    %v3580 = vadd.f32 %v3196, %v3204
    %v3581 = vadd.f32 %v3580, %v3212
    %v3582 = vadd.f32 %v3581, %v3220
    %v3583 = vrot.slane %v3582, 4
    %v3584 = vadd.f32 %v3582, %v3583
    %v3585 = vrot.slane %v3584, 2
    %v3586 = vadd.f32 %v3584, %v3585
    %v3587 = vrot.slane %v3586, 1
    %v3588 = vadd.f32 %v3586, %v3587
    %v3589 = vadd.f32 %v3197, %v3205
    %v3590 = vadd.f32 %v3589, %v3213
    %v3591 = vadd.f32 %v3590, %v3221
    %v3592 = vrot.slane %v3591, 4
    %v3593 = vadd.f32 %v3591, %v3592
    %v3594 = vrot.slane %v3593, 2
    %v3595 = vadd.f32 %v3593, %v3594
    %v3596 = vrot.slane %v3595, 1
    %v3597 = vadd.f32 %v3595, %v3596
    %v3598 = vadd.f32 %v3198, %v3206
    %v3599 = vadd.f32 %v3598, %v3214
    %v3600 = vadd.f32 %v3599, %v3222
    %v3601 = vrot.slane %v3600, 4
    %v3602 = vadd.f32 %v3600, %v3601
    %v3603 = vrot.slane %v3602, 2
    %v3604 = vadd.f32 %v3602, %v3603
    %v3605 = vrot.slane %v3604, 1
    %v3606 = vadd.f32 %v3604, %v3605
    %v3607 = vadd.f32 %v3199, %v3207
    %v3608 = vadd.f32 %v3607, %v3215
    %v3609 = vadd.f32 %v3608, %v3223
    %v3610 = vrot.slane %v3609, 4
    %v3611 = vadd.f32 %v3609, %v3610
    %v3612 = vrot.slane %v3611, 2
    %v3613 = vadd.f32 %v3611, %v3612
    %v3614 = vrot.slane %v3613, 1
    %v3615 = vadd.f32 %v3613, %v3614
    %v3616 = vadd.f32 %v3200, %v3208
    %v3617 = vadd.f32 %v3616, %v3216
    %v3618 = vadd.f32 %v3617, %v3224
    %v3619 = vrot.slane %v3618, 4
    %v3620 = vadd.f32 %v3618, %v3619
    %v3621 = vrot.slane %v3620, 2
    %v3622 = vadd.f32 %v3620, %v3621
    %v3623 = vrot.slane %v3622, 1
    %v3624 = vadd.f32 %v3622, %v3623
    %v3625 = vadd.f32 %v3201, %v3209
    %v3626 = vadd.f32 %v3625, %v3217
    %v3627 = vadd.f32 %v3626, %v3225
    %v3628 = vrot.slane %v3627, 4
    %v3629 = vadd.f32 %v3627, %v3628
    %v3630 = vrot.slane %v3629, 2
    %v3631 = vadd.f32 %v3629, %v3630
    %v3632 = vrot.slane %v3631, 1
    %v3633 = vadd.f32 %v3631, %v3632
    %v3634 = vadd.f32 %v3202, %v3210
    %v3635 = vadd.f32 %v3634, %v3218
    %v3636 = vadd.f32 %v3635, %v3226
    %v3637 = vrot.slane %v3636, 4
    %v3638 = vadd.f32 %v3636, %v3637
    %v3639 = vrot.slane %v3638, 2
    %v3640 = vadd.f32 %v3638, %v3639
    %v3641 = vrot.slane %v3640, 1
    %v3642 = vadd.f32 %v3640, %v3641
    %v3643 = vadd.f32 %v3227, %v3235
    %v3644 = vadd.f32 %v3643, %v3243
    %v3645 = vadd.f32 %v3644, %v3251
    %v3646 = vrot.slane %v3645, 4
    %v3647 = vadd.f32 %v3645, %v3646
    %v3648 = vrot.slane %v3647, 2
    %v3649 = vadd.f32 %v3647, %v3648
    %v3650 = vrot.slane %v3649, 1
    %v3651 = vadd.f32 %v3649, %v3650
    %v3652 = vadd.f32 %v3228, %v3236
    %v3653 = vadd.f32 %v3652, %v3244
    %v3654 = vadd.f32 %v3653, %v3252
    %v3655 = vrot.slane %v3654, 4
    %v3656 = vadd.f32 %v3654, %v3655
    %v3657 = vrot.slane %v3656, 2
    %v3658 = vadd.f32 %v3656, %v3657
    %v3659 = vrot.slane %v3658, 1
    %v3660 = vadd.f32 %v3658, %v3659
    %v3661 = vadd.f32 %v3229, %v3237
    %v3662 = vadd.f32 %v3661, %v3245
    %v3663 = vadd.f32 %v3662, %v3253
    %v3664 = vrot.slane %v3663, 4
    %v3665 = vadd.f32 %v3663, %v3664
    %v3666 = vrot.slane %v3665, 2
    %v3667 = vadd.f32 %v3665, %v3666
    %v3668 = vrot.slane %v3667, 1
    %v3669 = vadd.f32 %v3667, %v3668
    %v3670 = vadd.f32 %v3230, %v3238
    %v3671 = vadd.f32 %v3670, %v3246
    %v3672 = vadd.f32 %v3671, %v3254
    %v3673 = vrot.slane %v3672, 4
    %v3674 = vadd.f32 %v3672, %v3673
    %v3675 = vrot.slane %v3674, 2
    %v3676 = vadd.f32 %v3674, %v3675
    %v3677 = vrot.slane %v3676, 1
    %v3678 = vadd.f32 %v3676, %v3677
    %v3679 = vadd.f32 %v3231, %v3239
    %v3680 = vadd.f32 %v3679, %v3247
    %v3681 = vadd.f32 %v3680, %v3255
    %v3682 = vrot.slane %v3681, 4
    %v3683 = vadd.f32 %v3681, %v3682
    %v3684 = vrot.slane %v3683, 2
    %v3685 = vadd.f32 %v3683, %v3684
    %v3686 = vrot.slane %v3685, 1
    %v3687 = vadd.f32 %v3685, %v3686
    %v3688 = vadd.f32 %v3232, %v3240
    %v3689 = vadd.f32 %v3688, %v3248
    %v3690 = vadd.f32 %v3689, %v3256
    %v3691 = vrot.slane %v3690, 4
    %v3692 = vadd.f32 %v3690, %v3691
    %v3693 = vrot.slane %v3692, 2
    %v3694 = vadd.f32 %v3692, %v3693
    %v3695 = vrot.slane %v3694, 1
    %v3696 = vadd.f32 %v3694, %v3695
    %v3697 = vadd.f32 %v3233, %v3241
    %v3698 = vadd.f32 %v3697, %v3249
    %v3699 = vadd.f32 %v3698, %v3257
    %v3700 = vrot.slane %v3699, 4
    %v3701 = vadd.f32 %v3699, %v3700
    %v3702 = vrot.slane %v3701, 2
    %v3703 = vadd.f32 %v3701, %v3702
    %v3704 = vrot.slane %v3703, 1
    %v3705 = vadd.f32 %v3703, %v3704
    %v3706 = vadd.f32 %v3234, %v3242
    %v3707 = vadd.f32 %v3706, %v3250
    %v3708 = vadd.f32 %v3707, %v3258
    %v3709 = vrot.slane %v3708, 4
    %v3710 = vadd.f32 %v3708, %v3709
    %v3711 = vrot.slane %v3710, 2
    %v3712 = vadd.f32 %v3710, %v3711
    %v3713 = vrot.slane %v3712, 1
    %v3714 = vadd.f32 %v3712, %v3713
    %v3715 = vadd.f32 %v3259, %v3267
    %v3716 = vadd.f32 %v3715, %v3275
    %v3717 = vadd.f32 %v3716, %v3283
    %v3718 = vrot.slane %v3717, 4
    %v3719 = vadd.f32 %v3717, %v3718
    %v3720 = vrot.slane %v3719, 2
    %v3721 = vadd.f32 %v3719, %v3720
    %v3722 = vrot.slane %v3721, 1
    %v3723 = vadd.f32 %v3721, %v3722
    %v3724 = vadd.f32 %v3260, %v3268
    %v3725 = vadd.f32 %v3724, %v3276
    %v3726 = vadd.f32 %v3725, %v3284
    %v3727 = vrot.slane %v3726, 4
    %v3728 = vadd.f32 %v3726, %v3727
    %v3729 = vrot.slane %v3728, 2
    %v3730 = vadd.f32 %v3728, %v3729
    %v3731 = vrot.slane %v3730, 1
    %v3732 = vadd.f32 %v3730, %v3731
    %v3733 = vadd.f32 %v3261, %v3269
    %v3734 = vadd.f32 %v3733, %v3277
    %v3735 = vadd.f32 %v3734, %v3285
    %v3736 = vrot.slane %v3735, 4
    %v3737 = vadd.f32 %v3735, %v3736
    %v3738 = vrot.slane %v3737, 2
    %v3739 = vadd.f32 %v3737, %v3738
    %v3740 = vrot.slane %v3739, 1
    %v3741 = vadd.f32 %v3739, %v3740
    %v3742 = vadd.f32 %v3262, %v3270
    %v3743 = vadd.f32 %v3742, %v3278
    %v3744 = vadd.f32 %v3743, %v3286
    %v3745 = vrot.slane %v3744, 4
    %v3746 = vadd.f32 %v3744, %v3745
    %v3747 = vrot.slane %v3746, 2
    %v3748 = vadd.f32 %v3746, %v3747
    %v3749 = vrot.slane %v3748, 1
    %v3750 = vadd.f32 %v3748, %v3749
    %v3751 = vadd.f32 %v3263, %v3271
    %v3752 = vadd.f32 %v3751, %v3279
    %v3753 = vadd.f32 %v3752, %v3287
    %v3754 = vrot.slane %v3753, 4
    %v3755 = vadd.f32 %v3753, %v3754
    %v3756 = vrot.slane %v3755, 2
    %v3757 = vadd.f32 %v3755, %v3756
    %v3758 = vrot.slane %v3757, 1
    %v3759 = vadd.f32 %v3757, %v3758
    %v3760 = vadd.f32 %v3264, %v3272
    %v3761 = vadd.f32 %v3760, %v3280
    %v3762 = vadd.f32 %v3761, %v3288
    %v3763 = vrot.slane %v3762, 4
    %v3764 = vadd.f32 %v3762, %v3763
    %v3765 = vrot.slane %v3764, 2
    %v3766 = vadd.f32 %v3764, %v3765
    %v3767 = vrot.slane %v3766, 1
    %v3768 = vadd.f32 %v3766, %v3767
    %v3769 = vadd.f32 %v3265, %v3273
    %v3770 = vadd.f32 %v3769, %v3281
    %v3771 = vadd.f32 %v3770, %v3289
    %v3772 = vrot.slane %v3771, 4
    %v3773 = vadd.f32 %v3771, %v3772
    %v3774 = vrot.slane %v3773, 2
    %v3775 = vadd.f32 %v3773, %v3774
    %v3776 = vrot.slane %v3775, 1
    %v3777 = vadd.f32 %v3775, %v3776
    %v3778 = vadd.f32 %v3266, %v3274
    %v3779 = vadd.f32 %v3778, %v3282
    %v3780 = vadd.f32 %v3779, %v3290
    %v3781 = vrot.slane %v3780, 4
    %v3782 = vadd.f32 %v3780, %v3781
    %v3783 = vrot.slane %v3782, 2
    %v3784 = vadd.f32 %v3782, %v3783
    %v3785 = vrot.slane %v3784, 1
    %v3786 = vadd.f32 %v3784, %v3785
    %v3787 = vadd.f32 %v3291, %v3299
    %v3788 = vadd.f32 %v3787, %v3307
    %v3789 = vadd.f32 %v3788, %v3315
    %v3790 = vrot.slane %v3789, 4
    %v3791 = vadd.f32 %v3789, %v3790
    %v3792 = vrot.slane %v3791, 2
    %v3793 = vadd.f32 %v3791, %v3792
    %v3794 = vrot.slane %v3793, 1
    %v3795 = vadd.f32 %v3793, %v3794
    %v3796 = vadd.f32 %v3292, %v3300
    %v3797 = vadd.f32 %v3796, %v3308
    %v3798 = vadd.f32 %v3797, %v3316
    %v3799 = vrot.slane %v3798, 4
    %v3800 = vadd.f32 %v3798, %v3799
    %v3801 = vrot.slane %v3800, 2
    %v3802 = vadd.f32 %v3800, %v3801
    %v3803 = vrot.slane %v3802, 1
    %v3804 = vadd.f32 %v3802, %v3803
    %v3805 = vadd.f32 %v3293, %v3301
    %v3806 = vadd.f32 %v3805, %v3309
    %v3807 = vadd.f32 %v3806, %v3317
    %v3808 = vrot.slane %v3807, 4
    %v3809 = vadd.f32 %v3807, %v3808
    %v3810 = vrot.slane %v3809, 2
    %v3811 = vadd.f32 %v3809, %v3810
    %v3812 = vrot.slane %v3811, 1
    %v3813 = vadd.f32 %v3811, %v3812
    %v3814 = vadd.f32 %v3294, %v3302
    %v3815 = vadd.f32 %v3814, %v3310
    %v3816 = vadd.f32 %v3815, %v3318
    %v3817 = vrot.slane %v3816, 4
    %v3818 = vadd.f32 %v3816, %v3817
    %v3819 = vrot.slane %v3818, 2
    %v3820 = vadd.f32 %v3818, %v3819
    %v3821 = vrot.slane %v3820, 1
    %v3822 = vadd.f32 %v3820, %v3821
    %v3823 = vadd.f32 %v3295, %v3303
    %v3824 = vadd.f32 %v3823, %v3311
    %v3825 = vadd.f32 %v3824, %v3319
    %v3826 = vrot.slane %v3825, 4
    %v3827 = vadd.f32 %v3825, %v3826
    %v3828 = vrot.slane %v3827, 2
    %v3829 = vadd.f32 %v3827, %v3828
    %v3830 = vrot.slane %v3829, 1
    %v3831 = vadd.f32 %v3829, %v3830
    %v3832 = vadd.f32 %v3296, %v3304
    %v3833 = vadd.f32 %v3832, %v3312
    %v3834 = vadd.f32 %v3833, %v3320
    %v3835 = vrot.slane %v3834, 4
    %v3836 = vadd.f32 %v3834, %v3835
    %v3837 = vrot.slane %v3836, 2
    %v3838 = vadd.f32 %v3836, %v3837
    %v3839 = vrot.slane %v3838, 1
    %v3840 = vadd.f32 %v3838, %v3839
    %v3841 = vadd.f32 %v3297, %v3305
    %v3842 = vadd.f32 %v3841, %v3313
    %v3843 = vadd.f32 %v3842, %v3321
    %v3844 = vrot.slane %v3843, 4
    %v3845 = vadd.f32 %v3843, %v3844
    %v3846 = vrot.slane %v3845, 2
    %v3847 = vadd.f32 %v3845, %v3846
    %v3848 = vrot.slane %v3847, 1
    %v3849 = vadd.f32 %v3847, %v3848
    %v3850 = vadd.f32 %v3298, %v3306
    %v3851 = vadd.f32 %v3850, %v3314
    %v3852 = vadd.f32 %v3851, %v3322
    %v3853 = vrot.slane %v3852, 4
    %v3854 = vadd.f32 %v3852, %v3853
    %v3855 = vrot.slane %v3854, 2
    %v3856 = vadd.f32 %v3854, %v3855
    %v3857 = vrot.slane %v3856, 1
    %v3858 = vadd.f32 %v3856, %v3857
    %v3859 = vadd.f32 %v3323, %v3331
    %v3860 = vadd.f32 %v3859, %v3339
    %v3861 = vadd.f32 %v3860, %v3347
    %v3862 = vrot.slane %v3861, 4
    %v3863 = vadd.f32 %v3861, %v3862
    %v3864 = vrot.slane %v3863, 2
    %v3865 = vadd.f32 %v3863, %v3864
    %v3866 = vrot.slane %v3865, 1
    %v3867 = vadd.f32 %v3865, %v3866
    %v3868 = vadd.f32 %v3324, %v3332
    %v3869 = vadd.f32 %v3868, %v3340
    %v3870 = vadd.f32 %v3869, %v3348
    %v3871 = vrot.slane %v3870, 4
    %v3872 = vadd.f32 %v3870, %v3871
    %v3873 = vrot.slane %v3872, 2
    %v3874 = vadd.f32 %v3872, %v3873
    %v3875 = vrot.slane %v3874, 1
    %v3876 = vadd.f32 %v3874, %v3875
    %v3877 = vadd.f32 %v3325, %v3333
    %v3878 = vadd.f32 %v3877, %v3341
    %v3879 = vadd.f32 %v3878, %v3349
    %v3880 = vrot.slane %v3879, 4
    %v3881 = vadd.f32 %v3879, %v3880
    %v3882 = vrot.slane %v3881, 2
    %v3883 = vadd.f32 %v3881, %v3882
    %v3884 = vrot.slane %v3883, 1
    %v3885 = vadd.f32 %v3883, %v3884
    %v3886 = vadd.f32 %v3326, %v3334
    %v3887 = vadd.f32 %v3886, %v3342
    %v3888 = vadd.f32 %v3887, %v3350
    %v3889 = vrot.slane %v3888, 4
    %v3890 = vadd.f32 %v3888, %v3889
    %v3891 = vrot.slane %v3890, 2
    %v3892 = vadd.f32 %v3890, %v3891
    %v3893 = vrot.slane %v3892, 1
    %v3894 = vadd.f32 %v3892, %v3893
    %v3895 = vadd.f32 %v3327, %v3335
    %v3896 = vadd.f32 %v3895, %v3343
    %v3897 = vadd.f32 %v3896, %v3351
    %v3898 = vrot.slane %v3897, 4
    %v3899 = vadd.f32 %v3897, %v3898
    %v3900 = vrot.slane %v3899, 2
    %v3901 = vadd.f32 %v3899, %v3900
    %v3902 = vrot.slane %v3901, 1
    %v3903 = vadd.f32 %v3901, %v3902
    %v3904 = vadd.f32 %v3328, %v3336
    %v3905 = vadd.f32 %v3904, %v3344
    %v3906 = vadd.f32 %v3905, %v3352
    %v3907 = vrot.slane %v3906, 4
    %v3908 = vadd.f32 %v3906, %v3907
    %v3909 = vrot.slane %v3908, 2
    %v3910 = vadd.f32 %v3908, %v3909
    %v3911 = vrot.slane %v3910, 1
    %v3912 = vadd.f32 %v3910, %v3911
    %v3913 = vadd.f32 %v3329, %v3337
    %v3914 = vadd.f32 %v3913, %v3345
    %v3915 = vadd.f32 %v3914, %v3353
    %v3916 = vrot.slane %v3915, 4
    %v3917 = vadd.f32 %v3915, %v3916
    %v3918 = vrot.slane %v3917, 2
    %v3919 = vadd.f32 %v3917, %v3918
    %v3920 = vrot.slane %v3919, 1
    %v3921 = vadd.f32 %v3919, %v3920
    %v3922 = vadd.f32 %v3330, %v3338
    %v3923 = vadd.f32 %v3922, %v3346
    %v3924 = vadd.f32 %v3923, %v3354
    %v3925 = vrot.slane %v3924, 4
    %v3926 = vadd.f32 %v3924, %v3925
    %v3927 = vrot.slane %v3926, 2
    %v3928 = vadd.f32 %v3926, %v3927
    %v3929 = vrot.slane %v3928, 1
    %v3930 = vadd.f32 %v3928, %v3929
    %v3931 = vmul.f32 %v3363, %v476
    %v3932 = vmul.f32 %v3372, %v476
    %v3933 = vmul.f32 %v3381, %v476
    %v3934 = vmul.f32 %v3390, %v476
    %v3935 = vmul.f32 %v3399, %v476
    %v3936 = vmul.f32 %v3408, %v476
    %v3937 = vmul.f32 %v3417, %v476
    %v3938 = vmul.f32 %v3426, %v476
    %v3939 = vmul.f32 %v3435, %v476
    %v3940 = vmul.f32 %v3444, %v476
    %v3941 = vmul.f32 %v3453, %v476
    %v3942 = vmul.f32 %v3462, %v476
    %v3943 = vmul.f32 %v3471, %v476
    %v3944 = vmul.f32 %v3480, %v476
    %v3945 = vmul.f32 %v3489, %v476
    %v3946 = vmul.f32 %v3498, %v476
    %v3947 = vmul.f32 %v3507, %v476
    %v3948 = vmul.f32 %v3516, %v476
    %v3949 = vmul.f32 %v3525, %v476
    %v3950 = vmul.f32 %v3534, %v476
    %v3951 = vmul.f32 %v3543, %v476
    %v3952 = vmul.f32 %v3552, %v476
    %v3953 = vmul.f32 %v3561, %v476
    %v3954 = vmul.f32 %v3570, %v476
    %v3955 = vmul.f32 %v3579, %v476
    %v3956 = vmul.f32 %v3588, %v476
    %v3957 = vmul.f32 %v3597, %v476
    %v3958 = vmul.f32 %v3606, %v476
    %v3959 = vmul.f32 %v3615, %v476
    %v3960 = vmul.f32 %v3624, %v476
    %v3961 = vmul.f32 %v3633, %v476
    %v3962 = vmul.f32 %v3642, %v476
    %v3963 = vmul.f32 %v3651, %v476
    %v3964 = vmul.f32 %v3660, %v476
    %v3965 = vmul.f32 %v3669, %v476
    %v3966 = vmul.f32 %v3678, %v476
    %v3967 = vmul.f32 %v3687, %v476
    %v3968 = vmul.f32 %v3696, %v476
    %v3969 = vmul.f32 %v3705, %v476
    %v3970 = vmul.f32 %v3714, %v476
    %v3971 = vmul.f32 %v3723, %v476
    %v3972 = vmul.f32 %v3732, %v476
    %v3973 = vmul.f32 %v3741, %v476
    %v3974 = vmul.f32 %v3750, %v476
    %v3975 = vmul.f32 %v3759, %v476
    %v3976 = vmul.f32 %v3768, %v476
    %v3977 = vmul.f32 %v3777, %v476
    %v3978 = vmul.f32 %v3786, %v476
    %v3979 = vmul.f32 %v3795, %v476
    %v3980 = vmul.f32 %v3804, %v476
    %v3981 = vmul.f32 %v3813, %v476
    %v3982 = vmul.f32 %v3822, %v476
    %v3983 = vmul.f32 %v3831, %v476
    %v3984 = vmul.f32 %v3840, %v476
    %v3985 = vmul.f32 %v3849, %v476
    %v3986 = vmul.f32 %v3858, %v476
    %v3987 = vmul.f32 %v3867, %v476
    %v3988 = vmul.f32 %v3876, %v476
    %v3989 = vmul.f32 %v3885, %v476
    %v3990 = vmul.f32 %v3894, %v476
    %v3991 = vmul.f32 %v3903, %v476
    %v3992 = vmul.f32 %v3912, %v476
    %v3993 = vmul.f32 %v3921, %v476
    %v3994 = vmul.f32 %v3930, %v476
    %v3995 = vmax.f32 %v1498, %v1504
    %v3996 = vmax.f32 %v3995, %v1510
    %v3997 = vmax.f32 %v3996, %v1516
    %v3998 = vrot.slane %v3997, 4
    %v3999 = vmax.f32 %v3997, %v3998
    %v4000 = vrot.slane %v3999, 2
    %v4001 = vmax.f32 %v3999, %v4000
    %v4002 = vrot.slane %v4001, 1
    %v4003 = vmax.f32 %v4001, %v4002
    %v4004 = vmax.f32 %v1500, %v1506
    %v4005 = vmax.f32 %v4004, %v1512
    %v4006 = vmax.f32 %v4005, %v1518
    %v4007 = vrot.slane %v4006, 4
    %v4008 = vmax.f32 %v4006, %v4007
    %v4009 = vrot.slane %v4008, 2
    %v4010 = vmax.f32 %v4008, %v4009
    %v4011 = vrot.slane %v4010, 1
    %v4012 = vmax.f32 %v4010, %v4011
    %v4013 = vmax.f32 %v1755, %v1761
    %v4014 = vmax.f32 %v4013, %v1767
    %v4015 = vmax.f32 %v4014, %v1773
    %v4016 = vrot.slane %v4015, 4
    %v4017 = vmax.f32 %v4015, %v4016
    %v4018 = vrot.slane %v4017, 2
    %v4019 = vmax.f32 %v4017, %v4018
    %v4020 = vrot.slane %v4019, 1
    %v4021 = vmax.f32 %v4019, %v4020
    %v4022 = vmax.f32 %v1757, %v1763
    %v4023 = vmax.f32 %v4022, %v1769
    %v4024 = vmax.f32 %v4023, %v1775
    %v4025 = vrot.slane %v4024, 4
    %v4026 = vmax.f32 %v4024, %v4025
    %v4027 = vrot.slane %v4026, 2
    %v4028 = vmax.f32 %v4026, %v4027
    %v4029 = vrot.slane %v4028, 1
    %v4030 = vmax.f32 %v4028, %v4029
    %v4031 = vmax.f32 %v2012, %v2018
    %v4032 = vmax.f32 %v4031, %v2024
    %v4033 = vmax.f32 %v4032, %v2030
    %v4034 = vrot.slane %v4033, 4
    %v4035 = vmax.f32 %v4033, %v4034
    %v4036 = vrot.slane %v4035, 2
    %v4037 = vmax.f32 %v4035, %v4036
    %v4038 = vrot.slane %v4037, 1
    %v4039 = vmax.f32 %v4037, %v4038
    %v4040 = vmax.f32 %v2014, %v2020
    %v4041 = vmax.f32 %v4040, %v2026
    %v4042 = vmax.f32 %v4041, %v2032
    %v4043 = vrot.slane %v4042, 4
    %v4044 = vmax.f32 %v4042, %v4043
    %v4045 = vrot.slane %v4044, 2
    %v4046 = vmax.f32 %v4044, %v4045
    %v4047 = vrot.slane %v4046, 1
    %v4048 = vmax.f32 %v4046, %v4047
    %v4049 = vmax.f32 %v2269, %v2275
    %v4050 = vmax.f32 %v4049, %v2281
    %v4051 = vmax.f32 %v4050, %v2287
    %v4052 = vrot.slane %v4051, 4
    %v4053 = vmax.f32 %v4051, %v4052
    %v4054 = vrot.slane %v4053, 2
    %v4055 = vmax.f32 %v4053, %v4054
    %v4056 = vrot.slane %v4055, 1
    %v4057 = vmax.f32 %v4055, %v4056
    %v4058 = vmax.f32 %v2271, %v2277
    %v4059 = vmax.f32 %v4058, %v2283
    %v4060 = vmax.f32 %v4059, %v2289
    %v4061 = vrot.slane %v4060, 4
    %v4062 = vmax.f32 %v4060, %v4061
    %v4063 = vrot.slane %v4062, 2
    %v4064 = vmax.f32 %v4062, %v4063
    %v4065 = vrot.slane %v4064, 1
    %v4066 = vmax.f32 %v4064, %v4065
    %v4067 = vmax.f32 %v1522, %v1528
    %v4068 = vmax.f32 %v4067, %v1534
    %v4069 = vmax.f32 %v4068, %v1540
    %v4070 = vrot.slane %v4069, 4
    %v4071 = vmax.f32 %v4069, %v4070
    %v4072 = vrot.slane %v4071, 2
    %v4073 = vmax.f32 %v4071, %v4072
    %v4074 = vrot.slane %v4073, 1
    %v4075 = vmax.f32 %v4073, %v4074
    %v4076 = vmax.f32 %v1524, %v1530
    %v4077 = vmax.f32 %v4076, %v1536
    %v4078 = vmax.f32 %v4077, %v1542
    %v4079 = vrot.slane %v4078, 4
    %v4080 = vmax.f32 %v4078, %v4079
    %v4081 = vrot.slane %v4080, 2
    %v4082 = vmax.f32 %v4080, %v4081
    %v4083 = vrot.slane %v4082, 1
    %v4084 = vmax.f32 %v4082, %v4083
    %v4085 = vmax.f32 %v1779, %v1785
    %v4086 = vmax.f32 %v4085, %v1791
    %v4087 = vmax.f32 %v4086, %v1797
    %v4088 = vrot.slane %v4087, 4
    %v4089 = vmax.f32 %v4087, %v4088
    %v4090 = vrot.slane %v4089, 2
    %v4091 = vmax.f32 %v4089, %v4090
    %v4092 = vrot.slane %v4091, 1
    %v4093 = vmax.f32 %v4091, %v4092
    %v4094 = vmax.f32 %v1781, %v1787
    %v4095 = vmax.f32 %v4094, %v1793
    %v4096 = vmax.f32 %v4095, %v1799
    %v4097 = vrot.slane %v4096, 4
    %v4098 = vmax.f32 %v4096, %v4097
    %v4099 = vrot.slane %v4098, 2
    %v4100 = vmax.f32 %v4098, %v4099
    %v4101 = vrot.slane %v4100, 1
    %v4102 = vmax.f32 %v4100, %v4101
    %v4103 = vmax.f32 %v2036, %v2042
    %v4104 = vmax.f32 %v4103, %v2048
    %v4105 = vmax.f32 %v4104, %v2054
    %v4106 = vrot.slane %v4105, 4
    %v4107 = vmax.f32 %v4105, %v4106
    %v4108 = vrot.slane %v4107, 2
    %v4109 = vmax.f32 %v4107, %v4108
    %v4110 = vrot.slane %v4109, 1
    %v4111 = vmax.f32 %v4109, %v4110
    %v4112 = vmax.f32 %v2038, %v2044
    %v4113 = vmax.f32 %v4112, %v2050
    %v4114 = vmax.f32 %v4113, %v2056
    %v4115 = vrot.slane %v4114, 4
    %v4116 = vmax.f32 %v4114, %v4115
    %v4117 = vrot.slane %v4116, 2
    %v4118 = vmax.f32 %v4116, %v4117
    %v4119 = vrot.slane %v4118, 1
    %v4120 = vmax.f32 %v4118, %v4119
    %v4121 = vmax.f32 %v2293, %v2299
    %v4122 = vmax.f32 %v4121, %v2305
    %v4123 = vmax.f32 %v4122, %v2311
    %v4124 = vrot.slane %v4123, 4
    %v4125 = vmax.f32 %v4123, %v4124
    %v4126 = vrot.slane %v4125, 2
    %v4127 = vmax.f32 %v4125, %v4126
    %v4128 = vrot.slane %v4127, 1
    %v4129 = vmax.f32 %v4127, %v4128
    %v4130 = vmax.f32 %v2295, %v2301
    %v4131 = vmax.f32 %v4130, %v2307
    %v4132 = vmax.f32 %v4131, %v2313
    %v4133 = vrot.slane %v4132, 4
    %v4134 = vmax.f32 %v4132, %v4133
    %v4135 = vrot.slane %v4134, 2
    %v4136 = vmax.f32 %v4134, %v4135
    %v4137 = vrot.slane %v4136, 1
    %v4138 = vmax.f32 %v4136, %v4137
    %v4139 = vmax.f32 %v1546, %v1552
    %v4140 = vmax.f32 %v4139, %v1558
    %v4141 = vmax.f32 %v4140, %v1564
    %v4142 = vrot.slane %v4141, 4
    %v4143 = vmax.f32 %v4141, %v4142
    %v4144 = vrot.slane %v4143, 2
    %v4145 = vmax.f32 %v4143, %v4144
    %v4146 = vrot.slane %v4145, 1
    %v4147 = vmax.f32 %v4145, %v4146
    %v4148 = vmax.f32 %v1548, %v1554
    %v4149 = vmax.f32 %v4148, %v1560
    %v4150 = vmax.f32 %v4149, %v1566
    %v4151 = vrot.slane %v4150, 4
    %v4152 = vmax.f32 %v4150, %v4151
    %v4153 = vrot.slane %v4152, 2
    %v4154 = vmax.f32 %v4152, %v4153
    %v4155 = vrot.slane %v4154, 1
    %v4156 = vmax.f32 %v4154, %v4155
    %v4157 = vmax.f32 %v1803, %v1809
    %v4158 = vmax.f32 %v4157, %v1815
    %v4159 = vmax.f32 %v4158, %v1821
    %v4160 = vrot.slane %v4159, 4
    %v4161 = vmax.f32 %v4159, %v4160
    %v4162 = vrot.slane %v4161, 2
    %v4163 = vmax.f32 %v4161, %v4162
    %v4164 = vrot.slane %v4163, 1
    %v4165 = vmax.f32 %v4163, %v4164
    %v4166 = vmax.f32 %v1805, %v1811
    %v4167 = vmax.f32 %v4166, %v1817
    %v4168 = vmax.f32 %v4167, %v1823
    %v4169 = vrot.slane %v4168, 4
    %v4170 = vmax.f32 %v4168, %v4169
    %v4171 = vrot.slane %v4170, 2
    %v4172 = vmax.f32 %v4170, %v4171
    %v4173 = vrot.slane %v4172, 1
    %v4174 = vmax.f32 %v4172, %v4173
    %v4175 = vmax.f32 %v2060, %v2066
    %v4176 = vmax.f32 %v4175, %v2072
    %v4177 = vmax.f32 %v4176, %v2078
    %v4178 = vrot.slane %v4177, 4
    %v4179 = vmax.f32 %v4177, %v4178
    %v4180 = vrot.slane %v4179, 2
    %v4181 = vmax.f32 %v4179, %v4180
    %v4182 = vrot.slane %v4181, 1
    %v4183 = vmax.f32 %v4181, %v4182
    %v4184 = vmax.f32 %v2062, %v2068
    %v4185 = vmax.f32 %v4184, %v2074
    %v4186 = vmax.f32 %v4185, %v2080
    %v4187 = vrot.slane %v4186, 4
    %v4188 = vmax.f32 %v4186, %v4187
    %v4189 = vrot.slane %v4188, 2
    %v4190 = vmax.f32 %v4188, %v4189
    %v4191 = vrot.slane %v4190, 1
    %v4192 = vmax.f32 %v4190, %v4191
    %v4193 = vmax.f32 %v2317, %v2323
    %v4194 = vmax.f32 %v4193, %v2329
    %v4195 = vmax.f32 %v4194, %v2335
    %v4196 = vrot.slane %v4195, 4
    %v4197 = vmax.f32 %v4195, %v4196
    %v4198 = vrot.slane %v4197, 2
    %v4199 = vmax.f32 %v4197, %v4198
    %v4200 = vrot.slane %v4199, 1
    %v4201 = vmax.f32 %v4199, %v4200
    %v4202 = vmax.f32 %v2319, %v2325
    %v4203 = vmax.f32 %v4202, %v2331
    %v4204 = vmax.f32 %v4203, %v2337
    %v4205 = vrot.slane %v4204, 4
    %v4206 = vmax.f32 %v4204, %v4205
    %v4207 = vrot.slane %v4206, 2
    %v4208 = vmax.f32 %v4206, %v4207
    %v4209 = vrot.slane %v4208, 1
    %v4210 = vmax.f32 %v4208, %v4209
    %v4211 = vmax.f32 %v1570, %v1576
    %v4212 = vmax.f32 %v4211, %v1582
    %v4213 = vmax.f32 %v4212, %v1588
    %v4214 = vrot.slane %v4213, 4
    %v4215 = vmax.f32 %v4213, %v4214
    %v4216 = vrot.slane %v4215, 2
    %v4217 = vmax.f32 %v4215, %v4216
    %v4218 = vrot.slane %v4217, 1
    %v4219 = vmax.f32 %v4217, %v4218
    %v4220 = vmax.f32 %v1572, %v1578
    %v4221 = vmax.f32 %v4220, %v1584
    %v4222 = vmax.f32 %v4221, %v1590
    %v4223 = vrot.slane %v4222, 4
    %v4224 = vmax.f32 %v4222, %v4223
    %v4225 = vrot.slane %v4224, 2
    %v4226 = vmax.f32 %v4224, %v4225
    %v4227 = vrot.slane %v4226, 1
    %v4228 = vmax.f32 %v4226, %v4227
    %v4229 = vmax.f32 %v1827, %v1833
    %v4230 = vmax.f32 %v4229, %v1839
    %v4231 = vmax.f32 %v4230, %v1845
    %v4232 = vrot.slane %v4231, 4
    %v4233 = vmax.f32 %v4231, %v4232
    %v4234 = vrot.slane %v4233, 2
    %v4235 = vmax.f32 %v4233, %v4234
    %v4236 = vrot.slane %v4235, 1
    %v4237 = vmax.f32 %v4235, %v4236
    %v4238 = vmax.f32 %v1829, %v1835
    %v4239 = vmax.f32 %v4238, %v1841
    %v4240 = vmax.f32 %v4239, %v1847
    %v4241 = vrot.slane %v4240, 4
    %v4242 = vmax.f32 %v4240, %v4241
    %v4243 = vrot.slane %v4242, 2
    %v4244 = vmax.f32 %v4242, %v4243
    %v4245 = vrot.slane %v4244, 1
    %v4246 = vmax.f32 %v4244, %v4245
    %v4247 = vmax.f32 %v2084, %v2090
    %v4248 = vmax.f32 %v4247, %v2096
    %v4249 = vmax.f32 %v4248, %v2102
    %v4250 = vrot.slane %v4249, 4
    %v4251 = vmax.f32 %v4249, %v4250
    %v4252 = vrot.slane %v4251, 2
    %v4253 = vmax.f32 %v4251, %v4252
    %v4254 = vrot.slane %v4253, 1
    %v4255 = vmax.f32 %v4253, %v4254
    %v4256 = vmax.f32 %v2086, %v2092
    %v4257 = vmax.f32 %v4256, %v2098
    %v4258 = vmax.f32 %v4257, %v2104
    %v4259 = vrot.slane %v4258, 4
    %v4260 = vmax.f32 %v4258, %v4259
    %v4261 = vrot.slane %v4260, 2
    %v4262 = vmax.f32 %v4260, %v4261
    %v4263 = vrot.slane %v4262, 1
    %v4264 = vmax.f32 %v4262, %v4263
    %v4265 = vmax.f32 %v2341, %v2347
    %v4266 = vmax.f32 %v4265, %v2353
    %v4267 = vmax.f32 %v4266, %v2359
    %v4268 = vrot.slane %v4267, 4
    %v4269 = vmax.f32 %v4267, %v4268
    %v4270 = vrot.slane %v4269, 2
    %v4271 = vmax.f32 %v4269, %v4270
    %v4272 = vrot.slane %v4271, 1
    %v4273 = vmax.f32 %v4271, %v4272
    %v4274 = vmax.f32 %v2343, %v2349
    %v4275 = vmax.f32 %v4274, %v2355
    %v4276 = vmax.f32 %v4275, %v2361
    %v4277 = vrot.slane %v4276, 4
    %v4278 = vmax.f32 %v4276, %v4277
    %v4279 = vrot.slane %v4278, 2
    %v4280 = vmax.f32 %v4278, %v4279
    %v4281 = vrot.slane %v4280, 1
    %v4282 = vmax.f32 %v4280, %v4281
    %v4283 = vmax.f32 %v1594, %v1600
    %v4284 = vmax.f32 %v4283, %v1606
    %v4285 = vmax.f32 %v4284, %v1612
    %v4286 = vrot.slane %v4285, 4
    %v4287 = vmax.f32 %v4285, %v4286
    %v4288 = vrot.slane %v4287, 2
    %v4289 = vmax.f32 %v4287, %v4288
    %v4290 = vrot.slane %v4289, 1
    %v4291 = vmax.f32 %v4289, %v4290
    %v4292 = vmax.f32 %v1596, %v1602
    %v4293 = vmax.f32 %v4292, %v1608
    %v4294 = vmax.f32 %v4293, %v1614
    %v4295 = vrot.slane %v4294, 4
    %v4296 = vmax.f32 %v4294, %v4295
    %v4297 = vrot.slane %v4296, 2
    %v4298 = vmax.f32 %v4296, %v4297
    %v4299 = vrot.slane %v4298, 1
    %v4300 = vmax.f32 %v4298, %v4299
    %v4301 = vmax.f32 %v1851, %v1857
    %v4302 = vmax.f32 %v4301, %v1863
    %v4303 = vmax.f32 %v4302, %v1869
    %v4304 = vrot.slane %v4303, 4
    %v4305 = vmax.f32 %v4303, %v4304
    %v4306 = vrot.slane %v4305, 2
    %v4307 = vmax.f32 %v4305, %v4306
    %v4308 = vrot.slane %v4307, 1
    %v4309 = vmax.f32 %v4307, %v4308
    %v4310 = vmax.f32 %v1853, %v1859
    %v4311 = vmax.f32 %v4310, %v1865
    %v4312 = vmax.f32 %v4311, %v1871
    %v4313 = vrot.slane %v4312, 4
    %v4314 = vmax.f32 %v4312, %v4313
    %v4315 = vrot.slane %v4314, 2
    %v4316 = vmax.f32 %v4314, %v4315
    %v4317 = vrot.slane %v4316, 1
    %v4318 = vmax.f32 %v4316, %v4317
    %v4319 = vmax.f32 %v2108, %v2114
    %v4320 = vmax.f32 %v4319, %v2120
    %v4321 = vmax.f32 %v4320, %v2126
    %v4322 = vrot.slane %v4321, 4
    %v4323 = vmax.f32 %v4321, %v4322
    %v4324 = vrot.slane %v4323, 2
    %v4325 = vmax.f32 %v4323, %v4324
    %v4326 = vrot.slane %v4325, 1
    %v4327 = vmax.f32 %v4325, %v4326
    %v4328 = vmax.f32 %v2110, %v2116
    %v4329 = vmax.f32 %v4328, %v2122
    %v4330 = vmax.f32 %v4329, %v2128
    %v4331 = vrot.slane %v4330, 4
    %v4332 = vmax.f32 %v4330, %v4331
    %v4333 = vrot.slane %v4332, 2
    %v4334 = vmax.f32 %v4332, %v4333
    %v4335 = vrot.slane %v4334, 1
    %v4336 = vmax.f32 %v4334, %v4335
    %v4337 = vmax.f32 %v2365, %v2371
    %v4338 = vmax.f32 %v4337, %v2377
    %v4339 = vmax.f32 %v4338, %v2383
    %v4340 = vrot.slane %v4339, 4
    %v4341 = vmax.f32 %v4339, %v4340
    %v4342 = vrot.slane %v4341, 2
    %v4343 = vmax.f32 %v4341, %v4342
    %v4344 = vrot.slane %v4343, 1
    %v4345 = vmax.f32 %v4343, %v4344
    %v4346 = vmax.f32 %v2367, %v2373
    %v4347 = vmax.f32 %v4346, %v2379
    %v4348 = vmax.f32 %v4347, %v2385
    %v4349 = vrot.slane %v4348, 4
    %v4350 = vmax.f32 %v4348, %v4349
    %v4351 = vrot.slane %v4350, 2
    %v4352 = vmax.f32 %v4350, %v4351
    %v4353 = vrot.slane %v4352, 1
    %v4354 = vmax.f32 %v4352, %v4353
    %v4355 = vmax.f32 %v1618, %v1624
    %v4356 = vmax.f32 %v4355, %v1630
    %v4357 = vmax.f32 %v4356, %v1636
    %v4358 = vrot.slane %v4357, 4
    %v4359 = vmax.f32 %v4357, %v4358
    %v4360 = vrot.slane %v4359, 2
    %v4361 = vmax.f32 %v4359, %v4360
    %v4362 = vrot.slane %v4361, 1
    %v4363 = vmax.f32 %v4361, %v4362
    %v4364 = vmax.f32 %v1620, %v1626
    %v4365 = vmax.f32 %v4364, %v1632
    %v4366 = vmax.f32 %v4365, %v1638
    %v4367 = vrot.slane %v4366, 4
    %v4368 = vmax.f32 %v4366, %v4367
    %v4369 = vrot.slane %v4368, 2
    %v4370 = vmax.f32 %v4368, %v4369
    %v4371 = vrot.slane %v4370, 1
    %v4372 = vmax.f32 %v4370, %v4371
    %v4373 = vmax.f32 %v1875, %v1881
    %v4374 = vmax.f32 %v4373, %v1887
    %v4375 = vmax.f32 %v4374, %v1893
    %v4376 = vrot.slane %v4375, 4
    %v4377 = vmax.f32 %v4375, %v4376
    %v4378 = vrot.slane %v4377, 2
    %v4379 = vmax.f32 %v4377, %v4378
    %v4380 = vrot.slane %v4379, 1
    %v4381 = vmax.f32 %v4379, %v4380
    %v4382 = vmax.f32 %v1877, %v1883
    %v4383 = vmax.f32 %v4382, %v1889
    %v4384 = vmax.f32 %v4383, %v1895
    %v4385 = vrot.slane %v4384, 4
    %v4386 = vmax.f32 %v4384, %v4385
    %v4387 = vrot.slane %v4386, 2
    %v4388 = vmax.f32 %v4386, %v4387
    %v4389 = vrot.slane %v4388, 1
    %v4390 = vmax.f32 %v4388, %v4389
    %v4391 = vmax.f32 %v2132, %v2138
    %v4392 = vmax.f32 %v4391, %v2144
    %v4393 = vmax.f32 %v4392, %v2150
    %v4394 = vrot.slane %v4393, 4
    %v4395 = vmax.f32 %v4393, %v4394
    %v4396 = vrot.slane %v4395, 2
    %v4397 = vmax.f32 %v4395, %v4396
    %v4398 = vrot.slane %v4397, 1
    %v4399 = vmax.f32 %v4397, %v4398
    %v4400 = vmax.f32 %v2134, %v2140
    %v4401 = vmax.f32 %v4400, %v2146
    %v4402 = vmax.f32 %v4401, %v2152
    %v4403 = vrot.slane %v4402, 4
    %v4404 = vmax.f32 %v4402, %v4403
    %v4405 = vrot.slane %v4404, 2
    %v4406 = vmax.f32 %v4404, %v4405
    %v4407 = vrot.slane %v4406, 1
    %v4408 = vmax.f32 %v4406, %v4407
    %v4409 = vmax.f32 %v2389, %v2395
    %v4410 = vmax.f32 %v4409, %v2401
    %v4411 = vmax.f32 %v4410, %v2407
    %v4412 = vrot.slane %v4411, 4
    %v4413 = vmax.f32 %v4411, %v4412
    %v4414 = vrot.slane %v4413, 2
    %v4415 = vmax.f32 %v4413, %v4414
    %v4416 = vrot.slane %v4415, 1
    %v4417 = vmax.f32 %v4415, %v4416
    %v4418 = vmax.f32 %v2391, %v2397
    %v4419 = vmax.f32 %v4418, %v2403
    %v4420 = vmax.f32 %v4419, %v2409
    %v4421 = vrot.slane %v4420, 4
    %v4422 = vmax.f32 %v4420, %v4421
    %v4423 = vrot.slane %v4422, 2
    %v4424 = vmax.f32 %v4422, %v4423
    %v4425 = vrot.slane %v4424, 1
    %v4426 = vmax.f32 %v4424, %v4425
    %v4427 = vmax.f32 %v1642, %v1648
    %v4428 = vmax.f32 %v4427, %v1654
    %v4429 = vmax.f32 %v4428, %v1660
    %v4430 = vrot.slane %v4429, 4
    %v4431 = vmax.f32 %v4429, %v4430
    %v4432 = vrot.slane %v4431, 2
    %v4433 = vmax.f32 %v4431, %v4432
    %v4434 = vrot.slane %v4433, 1
    %v4435 = vmax.f32 %v4433, %v4434
    %v4436 = vmax.f32 %v1644, %v1650
    %v4437 = vmax.f32 %v4436, %v1656
    %v4438 = vmax.f32 %v4437, %v1662
    %v4439 = vrot.slane %v4438, 4
    %v4440 = vmax.f32 %v4438, %v4439
    %v4441 = vrot.slane %v4440, 2
    %v4442 = vmax.f32 %v4440, %v4441
    %v4443 = vrot.slane %v4442, 1
    %v4444 = vmax.f32 %v4442, %v4443
    %v4445 = vmax.f32 %v1899, %v1905
    %v4446 = vmax.f32 %v4445, %v1911
    %v4447 = vmax.f32 %v4446, %v1917
    %v4448 = vrot.slane %v4447, 4
    %v4449 = vmax.f32 %v4447, %v4448
    %v4450 = vrot.slane %v4449, 2
    %v4451 = vmax.f32 %v4449, %v4450
    %v4452 = vrot.slane %v4451, 1
    %v4453 = vmax.f32 %v4451, %v4452
    %v4454 = vmax.f32 %v1901, %v1907
    %v4455 = vmax.f32 %v4454, %v1913
    %v4456 = vmax.f32 %v4455, %v1919
    %v4457 = vrot.slane %v4456, 4
    %v4458 = vmax.f32 %v4456, %v4457
    %v4459 = vrot.slane %v4458, 2
    %v4460 = vmax.f32 %v4458, %v4459
    %v4461 = vrot.slane %v4460, 1
    %v4462 = vmax.f32 %v4460, %v4461
    %v4463 = vmax.f32 %v2156, %v2162
    %v4464 = vmax.f32 %v4463, %v2168
    %v4465 = vmax.f32 %v4464, %v2174
    %v4466 = vrot.slane %v4465, 4
    %v4467 = vmax.f32 %v4465, %v4466
    %v4468 = vrot.slane %v4467, 2
    %v4469 = vmax.f32 %v4467, %v4468
    %v4470 = vrot.slane %v4469, 1
    %v4471 = vmax.f32 %v4469, %v4470
    %v4472 = vmax.f32 %v2158, %v2164
    %v4473 = vmax.f32 %v4472, %v2170
    %v4474 = vmax.f32 %v4473, %v2176
    %v4475 = vrot.slane %v4474, 4
    %v4476 = vmax.f32 %v4474, %v4475
    %v4477 = vrot.slane %v4476, 2
    %v4478 = vmax.f32 %v4476, %v4477
    %v4479 = vrot.slane %v4478, 1
    %v4480 = vmax.f32 %v4478, %v4479
    %v4481 = vmax.f32 %v2413, %v2419
    %v4482 = vmax.f32 %v4481, %v2425
    %v4483 = vmax.f32 %v4482, %v2431
    %v4484 = vrot.slane %v4483, 4
    %v4485 = vmax.f32 %v4483, %v4484
    %v4486 = vrot.slane %v4485, 2
    %v4487 = vmax.f32 %v4485, %v4486
    %v4488 = vrot.slane %v4487, 1
    %v4489 = vmax.f32 %v4487, %v4488
    %v4490 = vmax.f32 %v2415, %v2421
    %v4491 = vmax.f32 %v4490, %v2427
    %v4492 = vmax.f32 %v4491, %v2433
    %v4493 = vrot.slane %v4492, 4
    %v4494 = vmax.f32 %v4492, %v4493
    %v4495 = vrot.slane %v4494, 2
    %v4496 = vmax.f32 %v4494, %v4495
    %v4497 = vrot.slane %v4496, 1
    %v4498 = vmax.f32 %v4496, %v4497
    %v4499 = vmax.f32 %v1666, %v1672
    %v4500 = vmax.f32 %v4499, %v1678
    %v4501 = vmax.f32 %v4500, %v1684
    %v4502 = vrot.slane %v4501, 4
    %v4503 = vmax.f32 %v4501, %v4502
    %v4504 = vrot.slane %v4503, 2
    %v4505 = vmax.f32 %v4503, %v4504
    %v4506 = vrot.slane %v4505, 1
    %v4507 = vmax.f32 %v4505, %v4506
    %v4508 = vmax.f32 %v1668, %v1674
    %v4509 = vmax.f32 %v4508, %v1680
    %v4510 = vmax.f32 %v4509, %v1686
    %v4511 = vrot.slane %v4510, 4
    %v4512 = vmax.f32 %v4510, %v4511
    %v4513 = vrot.slane %v4512, 2
    %v4514 = vmax.f32 %v4512, %v4513
    %v4515 = vrot.slane %v4514, 1
    %v4516 = vmax.f32 %v4514, %v4515
    %v4517 = vmax.f32 %v1923, %v1929
    %v4518 = vmax.f32 %v4517, %v1935
    %v4519 = vmax.f32 %v4518, %v1941
    %v4520 = vrot.slane %v4519, 4
    %v4521 = vmax.f32 %v4519, %v4520
    %v4522 = vrot.slane %v4521, 2
    %v4523 = vmax.f32 %v4521, %v4522
    %v4524 = vrot.slane %v4523, 1
    %v4525 = vmax.f32 %v4523, %v4524
    %v4526 = vmax.f32 %v1925, %v1931
    %v4527 = vmax.f32 %v4526, %v1937
    %v4528 = vmax.f32 %v4527, %v1943
    %v4529 = vrot.slane %v4528, 4
    %v4530 = vmax.f32 %v4528, %v4529
    %v4531 = vrot.slane %v4530, 2
    %v4532 = vmax.f32 %v4530, %v4531
    %v4533 = vrot.slane %v4532, 1
    %v4534 = vmax.f32 %v4532, %v4533
    %v4535 = vmax.f32 %v2180, %v2186
    %v4536 = vmax.f32 %v4535, %v2192
    %v4537 = vmax.f32 %v4536, %v2198
    %v4538 = vrot.slane %v4537, 4
    %v4539 = vmax.f32 %v4537, %v4538
    %v4540 = vrot.slane %v4539, 2
    %v4541 = vmax.f32 %v4539, %v4540
    %v4542 = vrot.slane %v4541, 1
    %v4543 = vmax.f32 %v4541, %v4542
    %v4544 = vmax.f32 %v2182, %v2188
    %v4545 = vmax.f32 %v4544, %v2194
    %v4546 = vmax.f32 %v4545, %v2200
    %v4547 = vrot.slane %v4546, 4
    %v4548 = vmax.f32 %v4546, %v4547
    %v4549 = vrot.slane %v4548, 2
    %v4550 = vmax.f32 %v4548, %v4549
    %v4551 = vrot.slane %v4550, 1
    %v4552 = vmax.f32 %v4550, %v4551
    %v4553 = vmax.f32 %v2437, %v2443
    %v4554 = vmax.f32 %v4553, %v2449
    %v4555 = vmax.f32 %v4554, %v2455
    %v4556 = vrot.slane %v4555, 4
    %v4557 = vmax.f32 %v4555, %v4556
    %v4558 = vrot.slane %v4557, 2
    %v4559 = vmax.f32 %v4557, %v4558
    %v4560 = vrot.slane %v4559, 1
    %v4561 = vmax.f32 %v4559, %v4560
    %v4562 = vmax.f32 %v2439, %v2445
    %v4563 = vmax.f32 %v4562, %v2451
    %v4564 = vmax.f32 %v4563, %v2457
    %v4565 = vrot.slane %v4564, 4
    %v4566 = vmax.f32 %v4564, %v4565
    %v4567 = vrot.slane %v4566, 2
    %v4568 = vmax.f32 %v4566, %v4567
    %v4569 = vrot.slane %v4568, 1
    %v4570 = vmax.f32 %v4568, %v4569
    %v4571 = vmul.f32 %v3035, %v3035
    %v4572 = vmul.f32 %v3036, %v3036
    %v4573 = vmul.f32 %v3037, %v3037
    %v4574 = vmul.f32 %v3038, %v3038
    %v4575 = vmul.f32 %v3039, %v3039
    %v4576 = vmul.f32 %v3040, %v3040
    %v4577 = vmul.f32 %v3041, %v3041
    %v4578 = vmul.f32 %v3042, %v3042
    %v4579 = vmul.f32 %v3043, %v3043
    %v4580 = vmul.f32 %v3044, %v3044
    %v4581 = vmul.f32 %v3045, %v3045
    %v4582 = vmul.f32 %v3046, %v3046
    %v4583 = vmul.f32 %v3047, %v3047
    %v4584 = vmul.f32 %v3048, %v3048
    %v4585 = vmul.f32 %v3049, %v3049
    %v4586 = vmul.f32 %v3050, %v3050
    %v4587 = vmul.f32 %v3051, %v3051
    %v4588 = vmul.f32 %v3052, %v3052
    %v4589 = vmul.f32 %v3053, %v3053
    %v4590 = vmul.f32 %v3054, %v3054
    %v4591 = vmul.f32 %v3055, %v3055
    %v4592 = vmul.f32 %v3056, %v3056
    %v4593 = vmul.f32 %v3057, %v3057
    %v4594 = vmul.f32 %v3058, %v3058
    %v4595 = vmul.f32 %v3059, %v3059
    %v4596 = vmul.f32 %v3060, %v3060
    %v4597 = vmul.f32 %v3061, %v3061
    %v4598 = vmul.f32 %v3062, %v3062
    %v4599 = vmul.f32 %v3063, %v3063
    %v4600 = vmul.f32 %v3064, %v3064
    %v4601 = vmul.f32 %v3065, %v3065
    %v4602 = vmul.f32 %v3066, %v3066
    %v4603 = vmul.f32 %v3067, %v3067
    %v4604 = vmul.f32 %v3068, %v3068
    %v4605 = vmul.f32 %v3069, %v3069
    %v4606 = vmul.f32 %v3070, %v3070
    %v4607 = vmul.f32 %v3071, %v3071
    %v4608 = vmul.f32 %v3072, %v3072
    %v4609 = vmul.f32 %v3073, %v3073
    %v4610 = vmul.f32 %v3074, %v3074
    %v4611 = vmul.f32 %v3075, %v3075
    %v4612 = vmul.f32 %v3076, %v3076
    %v4613 = vmul.f32 %v3077, %v3077
    %v4614 = vmul.f32 %v3078, %v3078
    %v4615 = vmul.f32 %v3079, %v3079
    %v4616 = vmul.f32 %v3080, %v3080
    %v4617 = vmul.f32 %v3081, %v3081
    %v4618 = vmul.f32 %v3082, %v3082
    %v4619 = vmul.f32 %v3083, %v3083
    %v4620 = vmul.f32 %v3084, %v3084
    %v4621 = vmul.f32 %v3085, %v3085
    %v4622 = vmul.f32 %v3086, %v3086
    %v4623 = vmul.f32 %v3087, %v3087
    %v4624 = vmul.f32 %v3088, %v3088
    %v4625 = vmul.f32 %v3089, %v3089
    %v4626 = vmul.f32 %v3090, %v3090
    %v4627 = vmul.f32 %v3091, %v3091
    %v4628 = vmul.f32 %v3092, %v3092
    %v4629 = vmul.f32 %v3093, %v3093
    %v4630 = vmul.f32 %v3094, %v3094
    %v4631 = vmul.f32 %v3095, %v3095
    %v4632 = vmul.f32 %v3096, %v3096
    %v4633 = vmul.f32 %v3097, %v3097
    %v4634 = vmul.f32 %v3098, %v3098
    %v4635 = vsub.f32 %v3931, %v4571
    %v4636 = vsub.f32 %v3932, %v4572
    %v4637 = vsub.f32 %v3933, %v4573
    %v4638 = vsub.f32 %v3934, %v4574
    %v4639 = vsub.f32 %v3935, %v4575
    %v4640 = vsub.f32 %v3936, %v4576
    %v4641 = vsub.f32 %v3937, %v4577
    %v4642 = vsub.f32 %v3938, %v4578
    %v4643 = vsub.f32 %v3939, %v4579
    %v4644 = vsub.f32 %v3940, %v4580
    %v4645 = vsub.f32 %v3941, %v4581
    %v4646 = vsub.f32 %v3942, %v4582
    %v4647 = vsub.f32 %v3943, %v4583
    %v4648 = vsub.f32 %v3944, %v4584
    %v4649 = vsub.f32 %v3945, %v4585
    %v4650 = vsub.f32 %v3946, %v4586
    %v4651 = vsub.f32 %v3947, %v4587
    %v4652 = vsub.f32 %v3948, %v4588
    %v4653 = vsub.f32 %v3949, %v4589
    %v4654 = vsub.f32 %v3950, %v4590
    %v4655 = vsub.f32 %v3951, %v4591
    %v4656 = vsub.f32 %v3952, %v4592
    %v4657 = vsub.f32 %v3953, %v4593
    %v4658 = vsub.f32 %v3954, %v4594
    %v4659 = vsub.f32 %v3955, %v4595
    %v4660 = vsub.f32 %v3956, %v4596
    %v4661 = vsub.f32 %v3957, %v4597
    %v4662 = vsub.f32 %v3958, %v4598
    %v4663 = vsub.f32 %v3959, %v4599
    %v4664 = vsub.f32 %v3960, %v4600
    %v4665 = vsub.f32 %v3961, %v4601
    %v4666 = vsub.f32 %v3962, %v4602
    %v4667 = vsub.f32 %v3963, %v4603
    %v4668 = vsub.f32 %v3964, %v4604
    %v4669 = vsub.f32 %v3965, %v4605
    %v4670 = vsub.f32 %v3966, %v4606
    %v4671 = vsub.f32 %v3967, %v4607
    %v4672 = vsub.f32 %v3968, %v4608
    %v4673 = vsub.f32 %v3969, %v4609
    %v4674 = vsub.f32 %v3970, %v4610
    %v4675 = vsub.f32 %v3971, %v4611
    %v4676 = vsub.f32 %v3972, %v4612
    %v4677 = vsub.f32 %v3973, %v4613
    %v4678 = vsub.f32 %v3974, %v4614
    %v4679 = vsub.f32 %v3975, %v4615
    %v4680 = vsub.f32 %v3976, %v4616
    %v4681 = vsub.f32 %v3977, %v4617
    %v4682 = vsub.f32 %v3978, %v4618
    %v4683 = vsub.f32 %v3979, %v4619
    %v4684 = vsub.f32 %v3980, %v4620
    %v4685 = vsub.f32 %v3981, %v4621
    %v4686 = vsub.f32 %v3982, %v4622
    %v4687 = vsub.f32 %v3983, %v4623
    %v4688 = vsub.f32 %v3984, %v4624
    %v4689 = vsub.f32 %v3985, %v4625
    %v4690 = vsub.f32 %v3986, %v4626
    %v4691 = vsub.f32 %v3987, %v4627
    %v4692 = vsub.f32 %v3988, %v4628
    %v4693 = vsub.f32 %v3989, %v4629
    %v4694 = vsub.f32 %v3990, %v4630
    %v4695 = vsub.f32 %v3991, %v4631
    %v4696 = vsub.f32 %v3992, %v4632
    %v4697 = vsub.f32 %v3993, %v4633
    %v4698 = vsub.f32 %v3994, %v4634
    %v4699 = vmax.f32 %v4635, 0.0
    %v4700 = vmax.f32 %v4636, 0.0
    %v4701 = vmax.f32 %v4637, 0.0
    %v4702 = vmax.f32 %v4638, 0.0
    %v4703 = vmax.f32 %v4639, 0.0
    %v4704 = vmax.f32 %v4640, 0.0
    %v4705 = vmax.f32 %v4641, 0.0
    %v4706 = vmax.f32 %v4642, 0.0
    %v4707 = vmax.f32 %v4643, 0.0
    %v4708 = vmax.f32 %v4644, 0.0
    %v4709 = vmax.f32 %v4645, 0.0
    %v4710 = vmax.f32 %v4646, 0.0
    %v4711 = vmax.f32 %v4647, 0.0
    %v4712 = vmax.f32 %v4648, 0.0
    %v4713 = vmax.f32 %v4649, 0.0
    %v4714 = vmax.f32 %v4650, 0.0
    %v4715 = vmax.f32 %v4651, 0.0
    %v4716 = vmax.f32 %v4652, 0.0
    %v4717 = vmax.f32 %v4653, 0.0
    %v4718 = vmax.f32 %v4654, 0.0
    %v4719 = vmax.f32 %v4655, 0.0
    %v4720 = vmax.f32 %v4656, 0.0
    %v4721 = vmax.f32 %v4657, 0.0
    %v4722 = vmax.f32 %v4658, 0.0
    %v4723 = vmax.f32 %v4659, 0.0
    %v4724 = vmax.f32 %v4660, 0.0
    %v4725 = vmax.f32 %v4661, 0.0
    %v4726 = vmax.f32 %v4662, 0.0
    %v4727 = vmax.f32 %v4663, 0.0
    %v4728 = vmax.f32 %v4664, 0.0
    %v4729 = vmax.f32 %v4665, 0.0
    %v4730 = vmax.f32 %v4666, 0.0
    %v4731 = vmax.f32 %v4667, 0.0
    %v4732 = vmax.f32 %v4668, 0.0
    %v4733 = vmax.f32 %v4669, 0.0
    %v4734 = vmax.f32 %v4670, 0.0
    %v4735 = vmax.f32 %v4671, 0.0
    %v4736 = vmax.f32 %v4672, 0.0
    %v4737 = vmax.f32 %v4673, 0.0
    %v4738 = vmax.f32 %v4674, 0.0
    %v4739 = vmax.f32 %v4675, 0.0
    %v4740 = vmax.f32 %v4676, 0.0
    %v4741 = vmax.f32 %v4677, 0.0
    %v4742 = vmax.f32 %v4678, 0.0
    %v4743 = vmax.f32 %v4679, 0.0
    %v4744 = vmax.f32 %v4680, 0.0
    %v4745 = vmax.f32 %v4681, 0.0
    %v4746 = vmax.f32 %v4682, 0.0
    %v4747 = vmax.f32 %v4683, 0.0
    %v4748 = vmax.f32 %v4684, 0.0
    %v4749 = vmax.f32 %v4685, 0.0
    %v4750 = vmax.f32 %v4686, 0.0
    %v4751 = vmax.f32 %v4687, 0.0
    %v4752 = vmax.f32 %v4688, 0.0
    %v4753 = vmax.f32 %v4689, 0.0
    %v4754 = vmax.f32 %v4690, 0.0
    %v4755 = vmax.f32 %v4691, 0.0
    %v4756 = vmax.f32 %v4692, 0.0
    %v4757 = vmax.f32 %v4693, 0.0
    %v4758 = vmax.f32 %v4694, 0.0
    %v4759 = vmax.f32 %v4695, 0.0
    %v4760 = vmax.f32 %v4696, 0.0
    %v4761 = vmax.f32 %v4697, 0.0
    %v4762 = vmax.f32 %v4698, 0.0
    %v4763 = vsub.f32 %v4003, %v3035
    %v4764 = vsub.f32 %v4012, %v3036
    %v4765 = vsub.f32 %v4021, %v3037
    %v4766 = vsub.f32 %v4030, %v3038
    %v4767 = vsub.f32 %v4039, %v3039
    %v4768 = vsub.f32 %v4048, %v3040
    %v4769 = vsub.f32 %v4057, %v3041
    %v4770 = vsub.f32 %v4066, %v3042
    %v4771 = vsub.f32 %v4075, %v3043
    %v4772 = vsub.f32 %v4084, %v3044
    %v4773 = vsub.f32 %v4093, %v3045
    %v4774 = vsub.f32 %v4102, %v3046
    %v4775 = vsub.f32 %v4111, %v3047
    %v4776 = vsub.f32 %v4120, %v3048
    %v4777 = vsub.f32 %v4129, %v3049
    %v4778 = vsub.f32 %v4138, %v3050
    %v4779 = vsub.f32 %v4147, %v3051
    %v4780 = vsub.f32 %v4156, %v3052
    %v4781 = vsub.f32 %v4165, %v3053
    %v4782 = vsub.f32 %v4174, %v3054
    %v4783 = vsub.f32 %v4183, %v3055
    %v4784 = vsub.f32 %v4192, %v3056
    %v4785 = vsub.f32 %v4201, %v3057
    %v4786 = vsub.f32 %v4210, %v3058
    %v4787 = vsub.f32 %v4219, %v3059
    %v4788 = vsub.f32 %v4228, %v3060
    %v4789 = vsub.f32 %v4237, %v3061
    %v4790 = vsub.f32 %v4246, %v3062
    %v4791 = vsub.f32 %v4255, %v3063
    %v4792 = vsub.f32 %v4264, %v3064
    %v4793 = vsub.f32 %v4273, %v3065
    %v4794 = vsub.f32 %v4282, %v3066
    %v4795 = vsub.f32 %v4291, %v3067
    %v4796 = vsub.f32 %v4300, %v3068
    %v4797 = vsub.f32 %v4309, %v3069
    %v4798 = vsub.f32 %v4318, %v3070
    %v4799 = vsub.f32 %v4327, %v3071
    %v4800 = vsub.f32 %v4336, %v3072
    %v4801 = vsub.f32 %v4345, %v3073
    %v4802 = vsub.f32 %v4354, %v3074
    %v4803 = vsub.f32 %v4363, %v3075
    %v4804 = vsub.f32 %v4372, %v3076
    %v4805 = vsub.f32 %v4381, %v3077
    %v4806 = vsub.f32 %v4390, %v3078
    %v4807 = vsub.f32 %v4399, %v3079
    %v4808 = vsub.f32 %v4408, %v3080
    %v4809 = vsub.f32 %v4417, %v3081
    %v4810 = vsub.f32 %v4426, %v3082
    %v4811 = vsub.f32 %v4435, %v3083
    %v4812 = vsub.f32 %v4444, %v3084
    %v4813 = vsub.f32 %v4453, %v3085
    %v4814 = vsub.f32 %v4462, %v3086
    %v4815 = vsub.f32 %v4471, %v3087
    %v4816 = vsub.f32 %v4480, %v3088
    %v4817 = vsub.f32 %v4489, %v3089
    %v4818 = vsub.f32 %v4498, %v3090
    %v4819 = vsub.f32 %v4507, %v3091
    %v4820 = vsub.f32 %v4516, %v3092
    %v4821 = vsub.f32 %v4525, %v3093
    %v4822 = vsub.f32 %v4534, %v3094
    %v4823 = vsub.f32 %v4543, %v3095
    %v4824 = vsub.f32 %v4552, %v3096
    %v4825 = vsub.f32 %v4561, %v3097
    %v4826 = vsub.f32 %v4570, %v3098
    %v4827 = vadd.f32 %v4699, 1e-05
    %v4828 = vadd.f32 %v4700, 1e-05
    %v4829 = vadd.f32 %v4701, 1e-05
    %v4830 = vadd.f32 %v4702, 1e-05
    %v4831 = vadd.f32 %v4703, 1e-05
    %v4832 = vadd.f32 %v4704, 1e-05
    %v4833 = vadd.f32 %v4705, 1e-05
    %v4834 = vadd.f32 %v4706, 1e-05
    %v4835 = vadd.f32 %v4707, 1e-05
    %v4836 = vadd.f32 %v4708, 1e-05
    %v4837 = vadd.f32 %v4709, 1e-05
    %v4838 = vadd.f32 %v4710, 1e-05
    %v4839 = vadd.f32 %v4711, 1e-05
    %v4840 = vadd.f32 %v4712, 1e-05
    %v4841 = vadd.f32 %v4713, 1e-05
    %v4842 = vadd.f32 %v4714, 1e-05
    %v4843 = vadd.f32 %v4715, 1e-05
    %v4844 = vadd.f32 %v4716, 1e-05
    %v4845 = vadd.f32 %v4717, 1e-05
    %v4846 = vadd.f32 %v4718, 1e-05
    %v4847 = vadd.f32 %v4719, 1e-05
    %v4848 = vadd.f32 %v4720, 1e-05
    %v4849 = vadd.f32 %v4721, 1e-05
    %v4850 = vadd.f32 %v4722, 1e-05
    %v4851 = vadd.f32 %v4723, 1e-05
    %v4852 = vadd.f32 %v4724, 1e-05
    %v4853 = vadd.f32 %v4725, 1e-05
    %v4854 = vadd.f32 %v4726, 1e-05
    %v4855 = vadd.f32 %v4727, 1e-05
    %v4856 = vadd.f32 %v4728, 1e-05
    %v4857 = vadd.f32 %v4729, 1e-05
    %v4858 = vadd.f32 %v4730, 1e-05
    %v4859 = vadd.f32 %v4731, 1e-05
    %v4860 = vadd.f32 %v4732, 1e-05
    %v4861 = vadd.f32 %v4733, 1e-05
    %v4862 = vadd.f32 %v4734, 1e-05
    %v4863 = vadd.f32 %v4735, 1e-05
    %v4864 = vadd.f32 %v4736, 1e-05
    %v4865 = vadd.f32 %v4737, 1e-05
    %v4866 = vadd.f32 %v4738, 1e-05
    %v4867 = vadd.f32 %v4739, 1e-05
    %v4868 = vadd.f32 %v4740, 1e-05
    %v4869 = vadd.f32 %v4741, 1e-05
    %v4870 = vadd.f32 %v4742, 1e-05
    %v4871 = vadd.f32 %v4743, 1e-05
    %v4872 = vadd.f32 %v4744, 1e-05
    %v4873 = vadd.f32 %v4745, 1e-05
    %v4874 = vadd.f32 %v4746, 1e-05
    %v4875 = vadd.f32 %v4747, 1e-05
    %v4876 = vadd.f32 %v4748, 1e-05
    %v4877 = vadd.f32 %v4749, 1e-05
    %v4878 = vadd.f32 %v4750, 1e-05
    %v4879 = vadd.f32 %v4751, 1e-05
    %v4880 = vadd.f32 %v4752, 1e-05
    %v4881 = vadd.f32 %v4753, 1e-05
    %v4882 = vadd.f32 %v4754, 1e-05
    %v4883 = vadd.f32 %v4755, 1e-05
    %v4884 = vadd.f32 %v4756, 1e-05
    %v4885 = vadd.f32 %v4757, 1e-05
    %v4886 = vadd.f32 %v4758, 1e-05
    %v4887 = vadd.f32 %v4759, 1e-05
    %v4888 = vadd.f32 %v4760, 1e-05
    %v4889 = vadd.f32 %v4761, 1e-05
    %v4890 = vadd.f32 %v4762, 1e-05
    %v4891 = vrsqrt.pop %v4827
    %v4892 = vrsqrt.pop %v4828
    %v4893 = vrsqrt.pop %v4829
    %v4894 = vrsqrt.pop %v4830
    %v4895 = vrsqrt.pop %v4831
    %v4896 = vrsqrt.pop %v4832
    %v4897 = vrsqrt.pop %v4833
    %v4898 = vrsqrt.pop %v4834
    %v4899 = vrsqrt.pop %v4835
    %v4900 = vrsqrt.pop %v4836
    %v4901 = vrsqrt.pop %v4837
    %v4902 = vrsqrt.pop %v4838
    %v4903 = vrsqrt.pop %v4839
    %v4904 = vrsqrt.pop %v4840
    %v4905 = vrsqrt.pop %v4841
    %v4906 = vrsqrt.pop %v4842
    %v4907 = vrsqrt.pop %v4843
    %v4908 = vrsqrt.pop %v4844
    %v4909 = vrsqrt.pop %v4845
    %v4910 = vrsqrt.pop %v4846
    %v4911 = vrsqrt.pop %v4847
    %v4912 = vrsqrt.pop %v4848
    %v4913 = vrsqrt.pop %v4849
    %v4914 = vrsqrt.pop %v4850
    %v4915 = vrsqrt.pop %v4851
    %v4916 = vrsqrt.pop %v4852
    %v4917 = vrsqrt.pop %v4853
    %v4918 = vrsqrt.pop %v4854
    %v4919 = vrsqrt.pop %v4855
    %v4920 = vrsqrt.pop %v4856
    %v4921 = vrsqrt.pop %v4857
    %v4922 = vrsqrt.pop %v4858
    %v4923 = vrsqrt.pop %v4859
    %v4924 = vrsqrt.pop %v4860
    %v4925 = vrsqrt.pop %v4861
    %v4926 = vrsqrt.pop %v4862
    %v4927 = vrsqrt.pop %v4863
    %v4928 = vrsqrt.pop %v4864
    %v4929 = vrsqrt.pop %v4865
    %v4930 = vrsqrt.pop %v4866
    %v4931 = vrsqrt.pop %v4867
    %v4932 = vrsqrt.pop %v4868
    %v4933 = vrsqrt.pop %v4869
    %v4934 = vrsqrt.pop %v4870
    %v4935 = vrsqrt.pop %v4871
    %v4936 = vrsqrt.pop %v4872
    %v4937 = vrsqrt.pop %v4873
    %v4938 = vrsqrt.pop %v4874
    %v4939 = vrsqrt.pop %v4875
    %v4940 = vrsqrt.pop %v4876
    %v4941 = vrsqrt.pop %v4877
    %v4942 = vrsqrt.pop %v4878
    %v4943 = vrsqrt.pop %v4879
    %v4944 = vrsqrt.pop %v4880
    %v4945 = vrsqrt.pop %v4881
    %v4946 = vrsqrt.pop %v4882
    %v4947 = vrsqrt.pop %v4883
    %v4948 = vrsqrt.pop %v4884
    %v4949 = vrsqrt.pop %v4885
    %v4950 = vrsqrt.pop %v4886
    %v4951 = vrsqrt.pop %v4887
    %v4952 = vrsqrt.pop %v4888
    %v4953 = vrsqrt.pop %v4889
    %v4954 = vrsqrt.pop %v4890
    %v4955 = vmul.f32 %v4763, %v4891
    %v4956 = vmul.f32 %v4764, %v4892
    %v4957 = vmul.f32 %v4765, %v4893
    %v4958 = vmul.f32 %v4766, %v4894
    %v4959 = vmul.f32 %v4767, %v4895
    %v4960 = vmul.f32 %v4768, %v4896
    %v4961 = vmul.f32 %v4769, %v4897
    %v4962 = vmul.f32 %v4770, %v4898
    %v4963 = vmul.f32 %v4771, %v4899
    %v4964 = vmul.f32 %v4772, %v4900
    %v4965 = vmul.f32 %v4773, %v4901
    %v4966 = vmul.f32 %v4774, %v4902
    %v4967 = vmul.f32 %v4775, %v4903
    %v4968 = vmul.f32 %v4776, %v4904
    %v4969 = vmul.f32 %v4777, %v4905
    %v4970 = vmul.f32 %v4778, %v4906
    %v4971 = vmul.f32 %v4779, %v4907
    %v4972 = vmul.f32 %v4780, %v4908
    %v4973 = vmul.f32 %v4781, %v4909
    %v4974 = vmul.f32 %v4782, %v4910
    %v4975 = vmul.f32 %v4783, %v4911
    %v4976 = vmul.f32 %v4784, %v4912
    %v4977 = vmul.f32 %v4785, %v4913
    %v4978 = vmul.f32 %v4786, %v4914
    %v4979 = vmul.f32 %v4787, %v4915
    %v4980 = vmul.f32 %v4788, %v4916
    %v4981 = vmul.f32 %v4789, %v4917
    %v4982 = vmul.f32 %v4790, %v4918
    %v4983 = vmul.f32 %v4791, %v4919
    %v4984 = vmul.f32 %v4792, %v4920
    %v4985 = vmul.f32 %v4793, %v4921
    %v4986 = vmul.f32 %v4794, %v4922
    %v4987 = vmul.f32 %v4795, %v4923
    %v4988 = vmul.f32 %v4796, %v4924
    %v4989 = vmul.f32 %v4797, %v4925
    %v4990 = vmul.f32 %v4798, %v4926
    %v4991 = vmul.f32 %v4799, %v4927
    %v4992 = vmul.f32 %v4800, %v4928
    %v4993 = vmul.f32 %v4801, %v4929
    %v4994 = vmul.f32 %v4802, %v4930
    %v4995 = vmul.f32 %v4803, %v4931
    %v4996 = vmul.f32 %v4804, %v4932
    %v4997 = vmul.f32 %v4805, %v4933
    %v4998 = vmul.f32 %v4806, %v4934
    %v4999 = vmul.f32 %v4807, %v4935
    %v5000 = vmul.f32 %v4808, %v4936
    %v5001 = vmul.f32 %v4809, %v4937
    %v5002 = vmul.f32 %v4810, %v4938
    %v5003 = vmul.f32 %v4811, %v4939
    %v5004 = vmul.f32 %v4812, %v4940
    %v5005 = vmul.f32 %v4813, %v4941
    %v5006 = vmul.f32 %v4814, %v4942
    %v5007 = vmul.f32 %v4815, %v4943
    %v5008 = vmul.f32 %v4816, %v4944
    %v5009 = vmul.f32 %v4817, %v4945
    %v5010 = vmul.f32 %v4818, %v4946
    %v5011 = vmul.f32 %v4819, %v4947
    %v5012 = vmul.f32 %v4820, %v4948
    %v5013 = vmul.f32 %v4821, %v4949
    %v5014 = vmul.f32 %v4822, %v4950
    %v5015 = vmul.f32 %v4823, %v4951
    %v5016 = vmul.f32 %v4824, %v4952
    %v5017 = vmul.f32 %v4825, %v4953
    %v5018 = vmul.f32 %v4826, %v4954
    %v5019 = vmax.f32 %v4955, 0.0
    %v5020 = vmax.f32 %v4956, 0.0
    %v5021 = vmax.f32 %v4957, 0.0
    %v5022 = vmax.f32 %v4958, 0.0
    %v5023 = vmax.f32 %v4959, 0.0
    %v5024 = vmax.f32 %v4960, 0.0
    %v5025 = vmax.f32 %v4961, 0.0
    %v5026 = vmax.f32 %v4962, 0.0
    %v5027 = vmax.f32 %v4963, 0.0
    %v5028 = vmax.f32 %v4964, 0.0
    %v5029 = vmax.f32 %v4965, 0.0
    %v5030 = vmax.f32 %v4966, 0.0
    %v5031 = vmax.f32 %v4967, 0.0
    %v5032 = vmax.f32 %v4968, 0.0
    %v5033 = vmax.f32 %v4969, 0.0
    %v5034 = vmax.f32 %v4970, 0.0
    %v5035 = vmax.f32 %v4971, 0.0
    %v5036 = vmax.f32 %v4972, 0.0
    %v5037 = vmax.f32 %v4973, 0.0
    %v5038 = vmax.f32 %v4974, 0.0
    %v5039 = vmax.f32 %v4975, 0.0
    %v5040 = vmax.f32 %v4976, 0.0
    %v5041 = vmax.f32 %v4977, 0.0
    %v5042 = vmax.f32 %v4978, 0.0
    %v5043 = vmax.f32 %v4979, 0.0
    %v5044 = vmax.f32 %v4980, 0.0
    %v5045 = vmax.f32 %v4981, 0.0
    %v5046 = vmax.f32 %v4982, 0.0
    %v5047 = vmax.f32 %v4983, 0.0
    %v5048 = vmax.f32 %v4984, 0.0
    %v5049 = vmax.f32 %v4985, 0.0
    %v5050 = vmax.f32 %v4986, 0.0
    %v5051 = vmax.f32 %v4987, 0.0
    %v5052 = vmax.f32 %v4988, 0.0
    %v5053 = vmax.f32 %v4989, 0.0
    %v5054 = vmax.f32 %v4990, 0.0
    %v5055 = vmax.f32 %v4991, 0.0
    %v5056 = vmax.f32 %v4992, 0.0
    %v5057 = vmax.f32 %v4993, 0.0
    %v5058 = vmax.f32 %v4994, 0.0
    %v5059 = vmax.f32 %v4995, 0.0
    %v5060 = vmax.f32 %v4996, 0.0
    %v5061 = vmax.f32 %v4997, 0.0
    %v5062 = vmax.f32 %v4998, 0.0
    %v5063 = vmax.f32 %v4999, 0.0
    %v5064 = vmax.f32 %v5000, 0.0
    %v5065 = vmax.f32 %v5001, 0.0
    %v5066 = vmax.f32 %v5002, 0.0
    %v5067 = vmax.f32 %v5003, 0.0
    %v5068 = vmax.f32 %v5004, 0.0
    %v5069 = vmax.f32 %v5005, 0.0
    %v5070 = vmax.f32 %v5006, 0.0
    %v5071 = vmax.f32 %v5007, 0.0
    %v5072 = vmax.f32 %v5008, 0.0
    %v5073 = vmax.f32 %v5009, 0.0
    %v5074 = vmax.f32 %v5010, 0.0
    %v5075 = vmax.f32 %v5011, 0.0
    %v5076 = vmax.f32 %v5012, 0.0
    %v5077 = vmax.f32 %v5013, 0.0
    %v5078 = vmax.f32 %v5014, 0.0
    %v5079 = vmax.f32 %v5015, 0.0
    %v5080 = vmax.f32 %v5016, 0.0
    %v5081 = vmax.f32 %v5017, 0.0
    %v5082 = vmax.f32 %v5018, 0.0
    %vm5147 = vcmask 1041409
    %v5148 = vsel %vm5147, %v5027, %v5019
    %vm5149 = vcmask 1042434
    %v5150 = vsel %vm5149, %v5035, %v5148
    %vm5151 = vcmask 1043459
    %v5152 = vsel %vm5151, %v5043, %v5150
    %vm5153 = vcmask 1044484
    %v5154 = vsel %vm5153, %v5051, %v5152
    %vm5155 = vcmask 1045509
    %v5156 = vsel %vm5155, %v5059, %v5154
    %vm5157 = vcmask 1046534
    %v5158 = vsel %vm5157, %v5067, %v5156
    %vm5159 = vcmask 1047559
    %v5160 = vsel %vm5159, %v5075, %v5158
    %v5161 = vsel %vm5147, %v5028, %v5020
    %v5162 = vsel %vm5149, %v5036, %v5161
    %v5163 = vsel %vm5151, %v5044, %v5162
    %v5164 = vsel %vm5153, %v5052, %v5163
    %v5165 = vsel %vm5155, %v5060, %v5164
    %v5166 = vsel %vm5157, %v5068, %v5165
    %v5167 = vsel %vm5159, %v5076, %v5166
    %v5168 = vsel %vm5147, %v5029, %v5021
    %v5169 = vsel %vm5149, %v5037, %v5168
    %v5170 = vsel %vm5151, %v5045, %v5169
    %v5171 = vsel %vm5153, %v5053, %v5170
    %v5172 = vsel %vm5155, %v5061, %v5171
    %v5173 = vsel %vm5157, %v5069, %v5172
    %v5174 = vsel %vm5159, %v5077, %v5173
    %v5175 = vsel %vm5147, %v5030, %v5022
    %v5176 = vsel %vm5149, %v5038, %v5175
    %v5177 = vsel %vm5151, %v5046, %v5176
    %v5178 = vsel %vm5153, %v5054, %v5177
    %v5179 = vsel %vm5155, %v5062, %v5178
    %v5180 = vsel %vm5157, %v5070, %v5179
    %v5181 = vsel %vm5159, %v5078, %v5180
    %v5182 = vsel %vm5147, %v5031, %v5023
    %v5183 = vsel %vm5149, %v5039, %v5182
    %v5184 = vsel %vm5151, %v5047, %v5183
    %v5185 = vsel %vm5153, %v5055, %v5184
    %v5186 = vsel %vm5155, %v5063, %v5185
    %v5187 = vsel %vm5157, %v5071, %v5186
    %v5188 = vsel %vm5159, %v5079, %v5187
    %v5189 = vsel %vm5147, %v5032, %v5024
    %v5190 = vsel %vm5149, %v5040, %v5189
    %v5191 = vsel %vm5151, %v5048, %v5190
    %v5192 = vsel %vm5153, %v5056, %v5191
    %v5193 = vsel %vm5155, %v5064, %v5192
    %v5194 = vsel %vm5157, %v5072, %v5193
    %v5195 = vsel %vm5159, %v5080, %v5194
    %v5196 = vsel %vm5147, %v5033, %v5025
    %v5197 = vsel %vm5149, %v5041, %v5196
    %v5198 = vsel %vm5151, %v5049, %v5197
    %v5199 = vsel %vm5153, %v5057, %v5198
    %v5200 = vsel %vm5155, %v5065, %v5199
    %v5201 = vsel %vm5157, %v5073, %v5200
    %v5202 = vsel %vm5159, %v5081, %v5201
    %v5203 = vsel %vm5147, %v5034, %v5026
    %v5204 = vsel %vm5149, %v5042, %v5203
    %v5205 = vsel %vm5151, %v5050, %v5204
    %v5206 = vsel %vm5153, %v5058, %v5205
    %v5207 = vsel %vm5155, %v5066, %v5206
    %v5208 = vsel %vm5157, %v5074, %v5207
    %v5209 = vsel %vm5159, %v5082, %v5208
    %5218 = vst [vmem:[#allocation5] sm:$0xff] %v5160
    %5219 = vst [vmem:[#allocation5 + $0x8] sm:$0xff] %v5167
    %5220 = vst [vmem:[#allocation5 + $0x10] sm:$0xff] %v5174
    %5221 = vst [vmem:[#allocation5 + $0x18] sm:$0xff] %v5181
    %5222 = vst [vmem:[#allocation5 + $0x20] sm:$0xff] %v5188
    %5223 = vst [vmem:[#allocation5 + $0x28] sm:$0xff] %v5195
    %5224 = vst [vmem:[#allocation5 + $0x30] sm:$0xff] %v5202
    %5225 = vst [vmem:[#allocation5 + $0x38] sm:$0xff] %v5209
    // Predicated region
    $region34: #{tpu_custom_call.1} parent=1 // pred_check
      _
    $region35: #{tpu_custom_call.1} parent=1 // pred_check_branch
      %5227 = sbr.rel (0) target = $region37
    $region36: #{tpu_custom_call.1} parent=1 // pred_region
      %s5229 = ssub.s32 1024, 1024
      %5230 = vsyncadd [#allocation4], %s5229
      %s5232 = sshll.u32 [#allocation5], 4
      %s5233 = int_to_ptr.vmem [resolvable:$true] %s5232
      %5235 = dma.vmem_to_hbm [thread:$0]  %s5233, 1024, %s7, [#allocation4]
    $region37: #{tpu_custom_call.1} parent=1 // pred_fallthru
      _
    // Predicated region
    $region38: #{tpu_custom_call.1} parent=1 // pred_check
      _
    $region39: #{tpu_custom_call.1} parent=1 // pred_check_branch
      %5237 = sbr.rel (0) target = $region41
    $region40: #{tpu_custom_call.1} parent=1 // pred_region
      %5238 = dma.done [#allocation4], 1024
    $region41: #{tpu_custom_call.1} parent=1 // pred_fallthru
      _
    %5239 = vsyncpa [#allocation3], 1
    %5240 = vsyncpa [#allocation4], 1

</llo_original>
